<compile_context>
chip_gen: v7x
topology: tpu7x:2x2x1
jax: 0.10.0
libtpu: 0.0.40
codegen_flags: <defaults>
</compile_context>

<pallas_src>
import functools
import math

import jax
import jax.numpy as jnp
from jax.experimental import pallas as pl
from jax.experimental.pallas import tpu as pltpu


def _encoder_kernel(x_ref,
                    g1_ref, b1_ref,
                    wqkv_ref, bqkv_ref,
                    wo_ref, bo_ref,
                    g2_ref, b2_ref,
                    w1_ref, bf1_ref, w2_ref, bf2_ref,
                    o_ref,
                    ctx_ref,
                    *, num_heads, valid_len, ff_chunks):
    eps = 1e-5                                   # torch.nn.LayerNorm default
    f32, bf16 = jnp.float32, jnp.bfloat16
    bt, s, d = x_ref.shape
    hd = d // num_heads

    x = x_ref[...].astype(f32).reshape(bt * s, d)             # (Bt*S, D)

    def layernorm(v, g, b):
        mu = jnp.mean(v, axis=-1, keepdims=True)
        var = jnp.mean((v - mu) ** 2, axis=-1, keepdims=True)
        return (v - mu) * jax.lax.rsqrt(var + eps) * g + b

    # ---- LN -> fused QKV projection (single bf16 MXU pass, f32 accumulation) ----
    nx = layernorm(x, g1_ref[...], b1_ref[...])
    qkv = jnp.dot(nx.astype(bf16), wqkv_ref[...],
                  preferred_element_type=f32) + bqkv_ref[...]          # (Bt*S, 3D)

    # Lane-aligned Q/K/V splits (offsets 0/D/2D, multiples of 128 for D%128==0),
    # hoisted out of the head loop.
    q_all = qkv[:, :d]
    k_all = qkv[:, d:2 * d]
    v_all = qkv[:, 2 * d:]

    # Key-padding mask, only materialized when the wrapper padded the sequence.
    if s != valid_len:
        key_idx = jax.lax.broadcasted_iota(jnp.int32, (1, 1, s), 2)
        key_mask = jnp.where(key_idx < valid_len, 0.0, -1e30).astype(f32)
    else:
        key_mask = None

    # ---- multi-head self-attention ----
    # Per-head scores / softmax / PV with a single batch dim (bt); each head's
    # context is stored (bf16) into VMEM scratch at its lane offset so the output
    # projection is one full-K matmul. Per-iteration temporaries die immediately,
    # keeping the unrolled loop's live set bounded.
    # TODO(synk): a fully head-batched einsum ('bqhd,bkhd->bhqk') would need a
    # (b,s,h,hd)->(b,h,s,hd) relayout / multi-batch-dim dot_general; kept as a
    # per-head loop with single-batch-dim einsums for robust Mosaic lowering.
    for h in range(num_heads):                   # static, small H
        lo = h * hd
        # Wq / bq already carry the 1/sqrt(hd) scale (folded at pack time).
        qh = q_all[:, lo:lo + hd].reshape(bt, s, hd).astype(bf16)
        kh = k_all[:, lo:lo + hd].reshape(bt, s, hd).astype(bf16)
        vh = v_all[:, lo:lo + hd].reshape(bt, s, hd).astype(bf16)

        sc = jnp.einsum('bqd,bkd->bqk', qh, kh,
                        preferred_element_type=f32)                    # (Bt,S,S)
        if key_mask is not None:
            sc = sc + key_mask
        sc = sc - jnp.max(sc, axis=-1, keepdims=True)
        p = jnp.exp(sc)
        # approx reciprocal -> EUP slot; fine for inference (no backward here).
        p = p * pl.reciprocal(jnp.sum(p, axis=-1, keepdims=True), approx=True)

        oh = jnp.einsum('bqk,bkd->bqd', p.astype(bf16), vh,
                        preferred_element_type=f32)                    # (Bt,S,hd)
        ctx_ref[:, lo:lo + hd] = oh.reshape(bt * s, hd).astype(bf16)

    # Single full-K output projection (one MXU pass instead of H small-K passes).
    attn = jnp.dot(ctx_ref[...], wo_ref[...], preferred_element_type=f32)
    x1 = x + attn + bo_ref[...]                  # residual 1

    # ---- LN -> FeedForward, hidden dim processed in lane-aligned chunks ----
    # The full (Bt*S, FF) intermediate is never materialized; the post-activation
    # value is kept in bf16 (it is consumed as bf16 by the MXU anyway).
    # TODO(synk): FeedForward source not provided; assuming a single hidden dim
    # with Linear -> GELU -> Dropout -> Linear -> Dropout.
    nx2 = layernorm(x1, g2_ref[...], b2_ref[...]).astype(bf16)
    ff = jnp.zeros((bt * s, d), f32)
    for lo, sz in ff_chunks:                     # static, few chunks
        hch = jnp.dot(nx2, w1_ref[:, lo:lo + sz],
                      preferred_element_type=f32) + bf1_ref[:, lo:lo + sz]
        hch = jax.nn.gelu(hch, approximate=True).astype(bf16)
        ff = ff + jnp.dot(hch, w2_ref[lo:lo + sz, :],
                          preferred_element_type=f32)

    o_ref[...] = (x1 + ff + bf2_ref[...]).reshape(bt, s, d).astype(o_ref.dtype)


def pack_params(p, dim, num_heads):
    """Pack f32 'torch-like' params into the kernel layout: fused QKV weight/bias,
    1/sqrt(hd) folded into Wq/bq, bf16 matmul weights, f32 biases/LN params."""
    scale = 1.0 / math.sqrt(dim // num_heads)
    wqkv = jnp.concatenate([p["wq"] * scale, p["wk"], p["wv"]], axis=1)
    bqkv = jnp.concatenate([p["bq"] * scale, p["bk"], p["bv"]], axis=1)
    return dict(
        g1=p["g1"], b1=p["b1"],
        wqkv=wqkv.astype(jnp.bfloat16), bqkv=bqkv,
        wo=p["wo"].astype(jnp.bfloat16), bo=p["bo"],
        g2=p["g2"], b2=p["b2"],
        w1=p["w1"].astype(jnp.bfloat16), bf1=p["bf1"],
        w2=p["w2"].astype(jnp.bfloat16), bf2=p["bf2"],
    )


def encoder_forward(x, kp, num_heads, block_b=2, ff_chunk=512):
    B, S, D = x.shape
    assert D % num_heads == 0

    # Pad the sequence to a sublane multiple (8): in-kernel reshapes become free
    # and output stores are unmasked; padded keys are masked inside the kernel.
    S_pad = ((S + 7) // 8) * 8
    xp = x if S_pad == S else jnp.pad(x, ((0, 0), (0, S_pad - S), (0, 0)))

    # Batch tile. Keep >= 2 grid steps when possible so the "parallel" axis can
    # shard across both v7x TensorCores (v5e/v6e are single-TC -> just a loop).
    block_b = max(1, min(block_b, B))
    while B % block_b:
        block_b -= 1
    if B // block_b < 2 and block_b > 1:
        block_b = max(1, block_b // 2)
        while B % block_b:
            block_b -= 1

    # Lane-aligned FFN hidden chunks (K-tiling of the MLP for VMEM residency).
    FF = kp["w1"].shape[1]
    if FF <= ff_chunk:
        ff_chunks = ((0, FF),)
    else:
        ff_chunk = max(128, (ff_chunk // 128) * 128)
        ff_chunks = tuple((lo, min(ff_chunk, FF - lo))
                          for lo in range(0, FF, ff_chunk))

    weights = (kp["g1"], kp["b1"], kp["wqkv"], kp["bqkv"], kp["wo"], kp["bo"],
               kp["g2"], kp["b2"], kp["w1"], kp["bf1"], kp["w2"], kp["bf2"])

    # Explicit VMEM budget: single-buffered weights + activations + 2x margin.
    toks = block_b * S_pad
    weight_bytes = sum(int(w.size) * w.dtype.itemsize for w in weights)
    act_bytes = (toks * D * (4 * 8 + 2)                       # f32 temps + bf16 ctx
                 + block_b * S_pad * S_pad * 4 * 3            # per-head scores/probs
                 + toks * max(sz for _, sz in ff_chunks) * 6  # FFN chunk temps
                 + 4 * toks * D * x.dtype.itemsize)           # dbl-buffered x/out
    vmem_limit = int(min(100 * 2 ** 20,
                         max(32 * 2 ** 20, 2 * (weight_bytes + act_bytes))))

    kernel = functools.partial(_encoder_kernel, num_heads=num_heads,
                               valid_len=S, ff_chunks=ff_chunks)

    def _call(single_buffer_weights):
        in_specs = [pl.BlockSpec((block_b, S_pad, D), lambda b: (b, 0, 0))]
        for w in weights:
            nd = w.ndim
            kw = (dict(pipeline_mode=pl.Buffered(1))
                  if single_buffer_weights else {})
            # Grid-invariant weight block (same tile every step -> stays in VMEM).
            in_specs.append(
                pl.BlockSpec(w.shape, lambda b, _nd=nd: (0,) * _nd, **kw))
        return pl.pallas_call(
            kernel,
            out_shape=jax.ShapeDtypeStruct((B, S_pad, D), x.dtype),
            grid=(B // block_b,),
            in_specs=in_specs,
            out_specs=pl.BlockSpec((block_b, S_pad, D), lambda b: (b, 0, 0)),
            scratch_shapes=[pltpu.VMEM((block_b * S_pad, D), jnp.bfloat16)],
            compiler_params=pltpu.CompilerParams(
                dimension_semantics=("parallel",),
                vmem_limit_bytes=vmem_limit),
        )(xp, *weights)

    try:
        out = _call(True)       # single-buffered resident weights (preferred)
    except Exception:
        # TODO(synk): pipeline_mode=pl.Buffered(1) unsupported on this JAX
        # version -> fall back to default (double-buffered) weight specs.
        out = _call(False)

    return out if S_pad == S else out[:, :S, :]


def _reference(x, p, num_heads):
    """Pure-JAX f32 reference of the same forward pass (for validation)."""
    eps = 1e-5
    B, S, D = x.shape
    hd = D // num_heads

    def ln(v, g, b):
        mu = jnp.mean(v, -1, keepdims=True)
        var = jnp.mean((v - mu) ** 2, -1, keepdims=True)
        return (v - mu) / jnp.sqrt(var + eps) * g + b

    nx = ln(x, p["g1"], p["b1"])
    q = nx @ p["wq"] + p["bq"]
    k = nx @ p["wk"] + p["bk"]
    v = nx @ p["wv"] + p["bv"]
    q = q.reshape(B, S, num_heads, hd).transpose(0, 2, 1, 3)
    k = k.reshape(B, S, num_heads, hd).transpose(0, 2, 1, 3)
    v = v.reshape(B, S, num_heads, hd).transpose(0, 2, 1, 3)
    s = jnp.einsum("bhqd,bhkd->bhqk", q, k) / math.sqrt(hd)
    a = jax.nn.softmax(s, axis=-1)
    o = jnp.einsum("bhqk,bhkd->bhqd", a, v).transpose(0, 2, 1, 3).reshape(B, S, D)
    y = o @ p["wo"] + p["bo"]
    x1 = x + y
    nx2 = ln(x1, p["g2"], p["b2"])
    h = jax.nn.gelu(nx2 @ p["w1"] + p["bf1"], approximate=True)
    ff = h @ p["w2"] + p["bf2"]
    return x1 + ff


def init_params(key, dim, num_heads, ff_hidden):
    ks = jax.random.split(key, 8)
    sd = 1.0 / math.sqrt(dim)
    sh = 1.0 / math.sqrt(ff_hidden)
    return {
        "g1": jnp.ones((1, dim), jnp.float32),
        "b1": jnp.zeros((1, dim), jnp.float32),
        # attention in-proj (stored pre-transposed: (D, D)) and out-proj
        "wq": jax.random.uniform(ks[0], (dim, dim), jnp.float32, -sd, sd),
        "bq": jax.random.uniform(ks[1], (1, dim), jnp.float32, -sd, sd),
        "wk": jax.random.uniform(ks[2], (dim, dim), jnp.float32, -sd, sd),
        "bk": jnp.zeros((1, dim), jnp.float32),
        "wv": jax.random.uniform(ks[3], (dim, dim), jnp.float32, -sd, sd),
        "bv": jnp.zeros((1, dim), jnp.float32),
        "wo": jax.random.uniform(ks[4], (dim, dim), jnp.float32, -sd, sd),
        "bo": jnp.zeros((1, dim), jnp.float32),
        "g2": jnp.ones((1, dim), jnp.float32),
        "b2": jnp.zeros((1, dim), jnp.float32),
        # feed-forward: dim -> ff_hidden -> dim  (weights pre-transposed)
        "w1": jax.random.uniform(ks[5], (dim, ff_hidden), jnp.float32, -sd, sd),
        "bf1": jax.random.uniform(ks[6], (1, ff_hidden), jnp.float32, -sd, sd),
        "w2": jax.random.uniform(ks[7], (ff_hidden, dim), jnp.float32, -sh, sh),
        "bf2": jnp.zeros((1, dim), jnp.float32),
    }


def _run_case(B, S, D, H, FF, block_b, kx, kparams_key):
    x = jax.random.normal(kx, (B, S, D), jnp.float32)
    params = init_params(kparams_key, D, H, FF)       # f32 reference params
    kparams = pack_params(params, D, H)               # fused / bf16 kernel params
    out = jax.block_until_ready(encoder_forward(x, kparams, H, block_b=block_b))
    ref = _reference(x, params, H)
    assert out.shape == (B, S, D)
    err = float(jnp.max(jnp.abs(out - ref)))
    # bf16 MXU operands vs f32 reference -> loosened tolerance.
    assert jnp.allclose(out, ref, rtol=3e-2, atol=3e-2), f"max abs err = {err}"


if __name__ == "__main__":
    key = jax.random.PRNGKey(0)

    # Case 1: sublane-aligned sequence (S multiple of 8), 2 grid steps.
    kx, kp = jax.random.split(key)
    _run_case(B=4, S=16, D=128, H=4, FF=256, block_b=2, kx=kx, kparams_key=kp)

    # Case 2: unaligned sequence (S=12 -> padded to 16 with masked keys).
    kx2, kp2 = jax.random.split(jax.random.fold_in(key, 1))
    _run_case(B=2, S=12, D=128, H=4, FF=256, block_b=1, kx=kx2, kparams_key=kp2)

    print("KERNEL_OK")
</pallas_src>

<mosaic_0001>
module attributes {stable_mosaic.version = 11 : i64} {
  func.func @_encoder_kernel(%arg0: i32, %arg1: memref<2x16x128xf32, #tpu.memory_space<vmem>>, %arg2: memref<1x128xf32, #tpu.memory_space<vmem>>, %arg3: memref<1x128xf32, #tpu.memory_space<vmem>>, %arg4: memref<128x384xbf16, #tpu.memory_space<vmem>>, %arg5: memref<1x384xf32, #tpu.memory_space<vmem>>, %arg6: memref<128x128xbf16, #tpu.memory_space<vmem>>, %arg7: memref<1x128xf32, #tpu.memory_space<vmem>>, %arg8: memref<1x128xf32, #tpu.memory_space<vmem>>, %arg9: memref<1x128xf32, #tpu.memory_space<vmem>>, %arg10: memref<128x256xbf16, #tpu.memory_space<vmem>>, %arg11: memref<1x256xf32, #tpu.memory_space<vmem>>, %arg12: memref<256x128xbf16, #tpu.memory_space<vmem>>, %arg13: memref<1x128xf32, #tpu.memory_space<vmem>>, %arg14: memref<2x16x128xf32, #tpu.memory_space<vmem>>, %arg15: memref<32x128xbf16, #tpu.memory_space<vmem>>) attributes {dimension_semantics = [#tpu.dimension_semantics<parallel>], iteration_bounds = array<i64: 2>, scalar_prefetch = 0 : i64, scratch_operands = 1 : i64, tpu.core_type = #tpu.core_type<tc>, window_params = [{transform_indices = @transform_0, window_bounds = array<i64: 2, 16, 128>}, {pipeline_mode = #tpu.pipeline_mode<synchronous>, transform_indices = @transform_1, window_bounds = array<i64: 1, 128>}, {pipeline_mode = #tpu.pipeline_mode<synchronous>, transform_indices = @transform_2, window_bounds = array<i64: 1, 128>}, {pipeline_mode = #tpu.pipeline_mode<synchronous>, transform_indices = @transform_3, window_bounds = array<i64: 128, 384>}, {pipeline_mode = #tpu.pipeline_mode<synchronous>, transform_indices = @transform_4, window_bounds = array<i64: 1, 384>}, {pipeline_mode = #tpu.pipeline_mode<synchronous>, transform_indices = @transform_5, window_bounds = array<i64: 128, 128>}, {pipeline_mode = #tpu.pipeline_mode<synchronous>, transform_indices = @transform_6, window_bounds = array<i64: 1, 128>}, {pipeline_mode = #tpu.pipeline_mode<synchronous>, transform_indices = @transform_7, window_bounds = array<i64: 1, 128>}, {pipeline_mode = #tpu.pipeline_mode<synchronous>, transform_indices = @transform_8, window_bounds = array<i64: 1, 128>}, {pipeline_mode = #tpu.pipeline_mode<synchronous>, transform_indices = @transform_9, window_bounds = array<i64: 128, 256>}, {pipeline_mode = #tpu.pipeline_mode<synchronous>, transform_indices = @transform_10, window_bounds = array<i64: 1, 256>}, {pipeline_mode = #tpu.pipeline_mode<synchronous>, transform_indices = @transform_11, window_bounds = array<i64: 256, 128>}, {pipeline_mode = #tpu.pipeline_mode<synchronous>, transform_indices = @transform_12, window_bounds = array<i64: 1, 128>}, {transform_indices = @transform_13, window_bounds = array<i64: 2, 16, 128>}]} {
    %c0 = arith.constant 0 : index
    %c0_0 = arith.constant 0 : index
    %c0_1 = arith.constant 0 : index
    %0 = vector.load %arg1[%c0, %c0_0, %c0_1] : memref<2x16x128xf32, #tpu.memory_space<vmem>>, vector<2x16x128xf32>
    %1 = vector.shape_cast %0 : vector<2x16x128xf32> to vector<32x128xf32>
    %c0_2 = arith.constant 0 : index
    %c0_3 = arith.constant 0 : index
    %2 = vector.load %arg2[%c0_2, %c0_3] : memref<1x128xf32, #tpu.memory_space<vmem>>, vector<1x128xf32>
    %c0_4 = arith.constant 0 : index
    %c0_5 = arith.constant 0 : index
    %3 = vector.load %arg3[%c0_4, %c0_5] : memref<1x128xf32, #tpu.memory_space<vmem>>, vector<1x128xf32>
    %cst = arith.constant dense<0.000000e+00> : vector<32xf32>
    %4 = vector.multi_reduction <add>, %1, %cst [1] : vector<32x128xf32> to vector<32xf32>
    %5 = vector.shape_cast %4 : vector<32xf32> to vector<32x1xf32>
    %cst_6 = arith.constant 1.280000e+02 : f32
    %6 = vector.broadcast %cst_6 : f32 to vector<32x1xf32>
    %7 = arith.divf %5, %6 : vector<32x1xf32>
    %8 = vector.broadcast %7 : vector<32x1xf32> to vector<32x128xf32>
    %9 = arith.subf %1, %8 : vector<32x128xf32>
    %10 = arith.mulf %9, %9 : vector<32x128xf32>
    %cst_7 = arith.constant dense<0.000000e+00> : vector<32xf32>
    %11 = vector.multi_reduction <add>, %10, %cst_7 [1] : vector<32x128xf32> to vector<32xf32>
    %12 = vector.shape_cast %11 : vector<32xf32> to vector<32x1xf32>
    %cst_8 = arith.constant 1.280000e+02 : f32
    %13 = vector.broadcast %cst_8 : f32 to vector<32x1xf32>
    %14 = arith.divf %12, %13 : vector<32x1xf32>
    %15 = vector.broadcast %7 : vector<32x1xf32> to vector<32x128xf32>
    %16 = arith.subf %1, %15 : vector<32x128xf32>
    %cst_9 = arith.constant 9.99999974E-6 : f32
    %17 = vector.broadcast %cst_9 : f32 to vector<32x1xf32>
    %18 = arith.addf %14, %17 : vector<32x1xf32>
    %19 = math.rsqrt %18 : vector<32x1xf32>
    %20 = vector.broadcast %19 : vector<32x1xf32> to vector<32x128xf32>
    %21 = arith.mulf %16, %20 : vector<32x128xf32>
    %22 = vector.broadcast %2 : vector<1x128xf32> to vector<32x128xf32>
    %23 = arith.mulf %21, %22 : vector<32x128xf32>
    %24 = vector.broadcast %3 : vector<1x128xf32> to vector<32x128xf32>
    %25 = arith.addf %23, %24 : vector<32x128xf32>
    %26 = arith.truncf %25 : vector<32x128xf32> to vector<32x128xbf16>
    %c0_10 = arith.constant 0 : index
    %c0_11 = arith.constant 0 : index
    %27 = vector.load %arg4[%c0_10, %c0_11] : memref<128x384xbf16, #tpu.memory_space<vmem>>, vector<128x384xbf16>
    %cst_12 = arith.constant dense<0.000000e+00> : vector<32x384xf32>
    %28 = tpu.matmul %26, %27, %cst_12 {dimension_numbers = #tpu.dot_dimension_numbers<[1], [0], [0], [1], [0, 0, 1, 1], [], []>} : vector<32x128xbf16>, vector<128x384xbf16>, vector<32x384xf32> -> vector<32x384xf32>
    %c0_13 = arith.constant 0 : index
    %c0_14 = arith.constant 0 : index
    %29 = vector.load %arg5[%c0_13, %c0_14] : memref<1x384xf32, #tpu.memory_space<vmem>>, vector<1x384xf32>
    %30 = vector.broadcast %29 : vector<1x384xf32> to vector<32x384xf32>
    %31 = arith.addf %28, %30 : vector<32x384xf32>
    %32 = vector.extract_strided_slice %31 {offsets = [0, 0], sizes = [32, 128], strides = [1, 1]} : vector<32x384xf32> to vector<32x128xf32>
    %33 = vector.extract_strided_slice %31 {offsets = [0, 128], sizes = [32, 128], strides = [1, 1]} : vector<32x384xf32> to vector<32x128xf32>
    %34 = vector.extract_strided_slice %31 {offsets = [0, 256], sizes = [32, 128], strides = [1, 1]} : vector<32x384xf32> to vector<32x128xf32>
    %35 = vector.extract_strided_slice %32 {offsets = [0, 0], sizes = [32, 32], strides = [1, 1]} : vector<32x128xf32> to vector<32x32xf32>
    %36 = vector.shape_cast %35 : vector<32x32xf32> to vector<2x16x32xf32>
    %37 = arith.truncf %36 : vector<2x16x32xf32> to vector<2x16x32xbf16>
    %38 = vector.extract_strided_slice %33 {offsets = [0, 0], sizes = [32, 32], strides = [1, 1]} : vector<32x128xf32> to vector<32x32xf32>
    %39 = vector.shape_cast %38 : vector<32x32xf32> to vector<2x16x32xf32>
    %40 = arith.truncf %39 : vector<2x16x32xf32> to vector<2x16x32xbf16>
    %41 = vector.extract_strided_slice %34 {offsets = [0, 0], sizes = [32, 32], strides = [1, 1]} : vector<32x128xf32> to vector<32x32xf32>
    %42 = vector.shape_cast %41 : vector<32x32xf32> to vector<2x16x32xf32>
    %43 = arith.truncf %42 : vector<2x16x32xf32> to vector<2x16x32xbf16>
    "tpu.trace_start"() <{level = 10 : i32, message = "bqd,bkd->bqk"}> : () -> ()
    %cst_15 = arith.constant dense<0.000000e+00> : vector<2x16x16xf32>
    %44 = tpu.matmul %37, %40, %cst_15 {dimension_numbers = #tpu.dot_dimension_numbers<[2], [2], [1], [1], [0, 0, 0, 1, 1, 1], [0], [0]>} : vector<2x16x32xbf16>, vector<2x16x32xbf16>, vector<2x16x16xf32> -> vector<2x16x16xf32>
    "tpu.trace_stop"() : () -> ()
    %cst_16 = arith.constant dense<0xFF800000> : vector<2x16xf32>
    %45 = vector.multi_reduction <maximumf>, %44, %cst_16 [2] : vector<2x16x16xf32> to vector<2x16xf32>
    %46 = vector.shape_cast %45 : vector<2x16xf32> to vector<2x16x1xf32>
    %47 = vector.broadcast %46 : vector<2x16x1xf32> to vector<2x16x16xf32>
    %48 = arith.subf %44, %47 : vector<2x16x16xf32>
    %49 = math.exp %48 : vector<2x16x16xf32>
    %cst_17 = arith.constant dense<0.000000e+00> : vector<2x16xf32>
    %50 = vector.multi_reduction <add>, %49, %cst_17 [2] : vector<2x16x16xf32> to vector<2x16xf32>
    %51 = vector.shape_cast %50 : vector<2x16xf32> to vector<2x16x1xf32>
    %52 = tpu.reciprocal %51 {approx = true} : vector<2x16x1xf32> -> vector<2x16x1xf32>
    %53 = vector.broadcast %52 : vector<2x16x1xf32> to vector<2x16x16xf32>
    %54 = arith.mulf %49, %53 : vector<2x16x16xf32>
    %55 = arith.truncf %54 : vector<2x16x16xf32> to vector<2x16x16xbf16>
    "tpu.trace_start"() <{level = 10 : i32, message = "bqk,bkd->bqd"}> : () -> ()
    %cst_18 = arith.constant dense<0.000000e+00> : vector<2x16x32xf32>
    %56 = tpu.matmul %55, %43, %cst_18 {dimension_numbers = #tpu.dot_dimension_numbers<[2], [1], [1], [2], [0, 0, 0, 1, 1, 2], [0], [0]>} : vector<2x16x16xbf16>, vector<2x16x32xbf16>, vector<2x16x32xf32> -> vector<2x16x32xf32>
    "tpu.trace_stop"() : () -> ()
    %57 = vector.shape_cast %56 : vector<2x16x32xf32> to vector<32x32xf32>
    %58 = arith.truncf %57 : vector<32x32xf32> to vector<32x32xbf16>
    %c0_19 = arith.constant 0 : index
    %c0_20 = arith.constant 0 : index
    %59 = vector.load %arg15[%c0_19, %c0_20] : memref<32x128xbf16, #tpu.memory_space<vmem>>, vector<32x32xbf16>
    tpu.vector_store %arg15[%c0_19, %c0_20], %58 {strides = array<i32>} : memref<32x128xbf16, #tpu.memory_space<vmem>>, vector<32x32xbf16>,
    %60 = vector.extract_strided_slice %32 {offsets = [0, 32], sizes = [32, 32], strides = [1, 1]} : vector<32x128xf32> to vector<32x32xf32>
    %61 = vector.shape_cast %60 : vector<32x32xf32> to vector<2x16x32xf32>
    %62 = arith.truncf %61 : vector<2x16x32xf32> to vector<2x16x32xbf16>
    %63 = vector.extract_strided_slice %33 {offsets = [0, 32], sizes = [32, 32], strides = [1, 1]} : vector<32x128xf32> to vector<32x32xf32>
    %64 = vector.shape_cast %63 : vector<32x32xf32> to vector<2x16x32xf32>
    %65 = arith.truncf %64 : vector<2x16x32xf32> to vector<2x16x32xbf16>
    %66 = vector.extract_strided_slice %34 {offsets = [0, 32], sizes = [32, 32], strides = [1, 1]} : vector<32x128xf32> to vector<32x32xf32>
    %67 = vector.shape_cast %66 : vector<32x32xf32> to vector<2x16x32xf32>
    %68 = arith.truncf %67 : vector<2x16x32xf32> to vector<2x16x32xbf16>
    "tpu.trace_start"() <{level = 10 : i32, message = "bqd,bkd->bqk"}> : () -> ()
    %cst_21 = arith.constant dense<0.000000e+00> : vector<2x16x16xf32>
    %69 = tpu.matmul %62, %65, %cst_21 {dimension_numbers = #tpu.dot_dimension_numbers<[2], [2], [1], [1], [0, 0, 0, 1, 1, 1], [0], [0]>} : vector<2x16x32xbf16>, vector<2x16x32xbf16>, vector<2x16x16xf32> -> vector<2x16x16xf32>
    "tpu.trace_stop"() : () -> ()
    %cst_22 = arith.constant dense<0xFF800000> : vector<2x16xf32>
    %70 = vector.multi_reduction <maximumf>, %69, %cst_22 [2] : vector<2x16x16xf32> to vector<2x16xf32>
    %71 = vector.shape_cast %70 : vector<2x16xf32> to vector<2x16x1xf32>
    %72 = vector.broadcast %71 : vector<2x16x1xf32> to vector<2x16x16xf32>
    %73 = arith.subf %69, %72 : vector<2x16x16xf32>
    %74 = math.exp %73 : vector<2x16x16xf32>
    %cst_23 = arith.constant dense<0.000000e+00> : vector<2x16xf32>
    %75 = vector.multi_reduction <add>, %74, %cst_23 [2] : vector<2x16x16xf32> to vector<2x16xf32>
    %76 = vector.shape_cast %75 : vector<2x16xf32> to vector<2x16x1xf32>
    %77 = tpu.reciprocal %76 {approx = true} : vector<2x16x1xf32> -> vector<2x16x1xf32>
    %78 = vector.broadcast %77 : vector<2x16x1xf32> to vector<2x16x16xf32>
    %79 = arith.mulf %74, %78 : vector<2x16x16xf32>
    %80 = arith.truncf %79 : vector<2x16x16xf32> to vector<2x16x16xbf16>
    "tpu.trace_start"() <{level = 10 : i32, message = "bqk,bkd->bqd"}> : () -> ()
    %cst_24 = arith.constant dense<0.000000e+00> : vector<2x16x32xf32>
    %81 = tpu.matmul %80, %68, %cst_24 {dimension_numbers = #tpu.dot_dimension_numbers<[2], [1], [1], [2], [0, 0, 0, 1, 1, 2], [0], [0]>} : vector<2x16x16xbf16>, vector<2x16x32xbf16>, vector<2x16x32xf32> -> vector<2x16x32xf32>
    "tpu.trace_stop"() : () -> ()
    %82 = vector.shape_cast %81 : vector<2x16x32xf32> to vector<32x32xf32>
    %83 = arith.truncf %82 : vector<32x32xf32> to vector<32x32xbf16>
    %c0_25 = arith.constant 0 : index
    %c32 = arith.constant 32 : index
    %84 = vector.load %arg15[%c0_25, %c32] : memref<32x128xbf16, #tpu.memory_space<vmem>>, vector<32x32xbf16>
    tpu.vector_store %arg15[%c0_25, %c32], %83 {strides = array<i32>} : memref<32x128xbf16, #tpu.memory_space<vmem>>, vector<32x32xbf16>,
    %85 = vector.extract_strided_slice %32 {offsets = [0, 64], sizes = [32, 32], strides = [1, 1]} : vector<32x128xf32> to vector<32x32xf32>
    %86 = vector.shape_cast %85 : vector<32x32xf32> to vector<2x16x32xf32>
    %87 = arith.truncf %86 : vector<2x16x32xf32> to vector<2x16x32xbf16>
    %88 = vector.extract_strided_slice %33 {offsets = [0, 64], sizes = [32, 32], strides = [1, 1]} : vector<32x128xf32> to vector<32x32xf32>
    %89 = vector.shape_cast %88 : vector<32x32xf32> to vector<2x16x32xf32>
    %90 = arith.truncf %89 : vector<2x16x32xf32> to vector<2x16x32xbf16>
    %91 = vector.extract_strided_slice %34 {offsets = [0, 64], sizes = [32, 32], strides = [1, 1]} : vector<32x128xf32> to vector<32x32xf32>
    %92 = vector.shape_cast %91 : vector<32x32xf32> to vector<2x16x32xf32>
    %93 = arith.truncf %92 : vector<2x16x32xf32> to vector<2x16x32xbf16>
    "tpu.trace_start"() <{level = 10 : i32, message = "bqd,bkd->bqk"}> : () -> ()
    %cst_26 = arith.constant dense<0.000000e+00> : vector<2x16x16xf32>
    %94 = tpu.matmul %87, %90, %cst_26 {dimension_numbers = #tpu.dot_dimension_numbers<[2], [2], [1], [1], [0, 0, 0, 1, 1, 1], [0], [0]>} : vector<2x16x32xbf16>, vector<2x16x32xbf16>, vector<2x16x16xf32> -> vector<2x16x16xf32>
    "tpu.trace_stop"() : () -> ()
    %cst_27 = arith.constant dense<0xFF800000> : vector<2x16xf32>
    %95 = vector.multi_reduction <maximumf>, %94, %cst_27 [2] : vector<2x16x16xf32> to vector<2x16xf32>
    %96 = vector.shape_cast %95 : vector<2x16xf32> to vector<2x16x1xf32>
    %97 = vector.broadcast %96 : vector<2x16x1xf32> to vector<2x16x16xf32>
    %98 = arith.subf %94, %97 : vector<2x16x16xf32>
    %99 = math.exp %98 : vector<2x16x16xf32>
    %cst_28 = arith.constant dense<0.000000e+00> : vector<2x16xf32>
    %100 = vector.multi_reduction <add>, %99, %cst_28 [2] : vector<2x16x16xf32> to vector<2x16xf32>
    %101 = vector.shape_cast %100 : vector<2x16xf32> to vector<2x16x1xf32>
    %102 = tpu.reciprocal %101 {approx = true} : vector<2x16x1xf32> -> vector<2x16x1xf32>
    %103 = vector.broadcast %102 : vector<2x16x1xf32> to vector<2x16x16xf32>
    %104 = arith.mulf %99, %103 : vector<2x16x16xf32>
    %105 = arith.truncf %104 : vector<2x16x16xf32> to vector<2x16x16xbf16>
    "tpu.trace_start"() <{level = 10 : i32, message = "bqk,bkd->bqd"}> : () -> ()
    %cst_29 = arith.constant dense<0.000000e+00> : vector<2x16x32xf32>
    %106 = tpu.matmul %105, %93, %cst_29 {dimension_numbers = #tpu.dot_dimension_numbers<[2], [1], [1], [2], [0, 0, 0, 1, 1, 2], [0], [0]>} : vector<2x16x16xbf16>, vector<2x16x32xbf16>, vector<2x16x32xf32> -> vector<2x16x32xf32>
    "tpu.trace_stop"() : () -> ()
    %107 = vector.shape_cast %106 : vector<2x16x32xf32> to vector<32x32xf32>
    %108 = arith.truncf %107 : vector<32x32xf32> to vector<32x32xbf16>
    %c0_30 = arith.constant 0 : index
    %c64 = arith.constant 64 : index
    %109 = vector.load %arg15[%c0_30, %c64] : memref<32x128xbf16, #tpu.memory_space<vmem>>, vector<32x32xbf16>
    tpu.vector_store %arg15[%c0_30, %c64], %108 {strides = array<i32>} : memref<32x128xbf16, #tpu.memory_space<vmem>>, vector<32x32xbf16>,
    %110 = vector.extract_strided_slice %32 {offsets = [0, 96], sizes = [32, 32], strides = [1, 1]} : vector<32x128xf32> to vector<32x32xf32>
    %111 = vector.shape_cast %110 : vector<32x32xf32> to vector<2x16x32xf32>
    %112 = arith.truncf %111 : vector<2x16x32xf32> to vector<2x16x32xbf16>
    %113 = vector.extract_strided_slice %33 {offsets = [0, 96], sizes = [32, 32], strides = [1, 1]} : vector<32x128xf32> to vector<32x32xf32>
    %114 = vector.shape_cast %113 : vector<32x32xf32> to vector<2x16x32xf32>
    %115 = arith.truncf %114 : vector<2x16x32xf32> to vector<2x16x32xbf16>
    %116 = vector.extract_strided_slice %34 {offsets = [0, 96], sizes = [32, 32], strides = [1, 1]} : vector<32x128xf32> to vector<32x32xf32>
    %117 = vector.shape_cast %116 : vector<32x32xf32> to vector<2x16x32xf32>
    %118 = arith.truncf %117 : vector<2x16x32xf32> to vector<2x16x32xbf16>
    "tpu.trace_start"() <{level = 10 : i32, message = "bqd,bkd->bqk"}> : () -> ()
    %cst_31 = arith.constant dense<0.000000e+00> : vector<2x16x16xf32>
    %119 = tpu.matmul %112, %115, %cst_31 {dimension_numbers = #tpu.dot_dimension_numbers<[2], [2], [1], [1], [0, 0, 0, 1, 1, 1], [0], [0]>} : vector<2x16x32xbf16>, vector<2x16x32xbf16>, vector<2x16x16xf32> -> vector<2x16x16xf32>
    "tpu.trace_stop"() : () -> ()
    %cst_32 = arith.constant dense<0xFF800000> : vector<2x16xf32>
    %120 = vector.multi_reduction <maximumf>, %119, %cst_32 [2] : vector<2x16x16xf32> to vector<2x16xf32>
    %121 = vector.shape_cast %120 : vector<2x16xf32> to vector<2x16x1xf32>
    %122 = vector.broadcast %121 : vector<2x16x1xf32> to vector<2x16x16xf32>
    %123 = arith.subf %119, %122 : vector<2x16x16xf32>
    %124 = math.exp %123 : vector<2x16x16xf32>
    %cst_33 = arith.constant dense<0.000000e+00> : vector<2x16xf32>
    %125 = vector.multi_reduction <add>, %124, %cst_33 [2] : vector<2x16x16xf32> to vector<2x16xf32>
    %126 = vector.shape_cast %125 : vector<2x16xf32> to vector<2x16x1xf32>
    %127 = tpu.reciprocal %126 {approx = true} : vector<2x16x1xf32> -> vector<2x16x1xf32>
    %128 = vector.broadcast %127 : vector<2x16x1xf32> to vector<2x16x16xf32>
    %129 = arith.mulf %124, %128 : vector<2x16x16xf32>
    %130 = arith.truncf %129 : vector<2x16x16xf32> to vector<2x16x16xbf16>
    "tpu.trace_start"() <{level = 10 : i32, message = "bqk,bkd->bqd"}> : () -> ()
    %cst_34 = arith.constant dense<0.000000e+00> : vector<2x16x32xf32>
    %131 = tpu.matmul %130, %118, %cst_34 {dimension_numbers = #tpu.dot_dimension_numbers<[2], [1], [1], [2], [0, 0, 0, 1, 1, 2], [0], [0]>} : vector<2x16x16xbf16>, vector<2x16x32xbf16>, vector<2x16x32xf32> -> vector<2x16x32xf32>
    "tpu.trace_stop"() : () -> ()
    %132 = vector.shape_cast %131 : vector<2x16x32xf32> to vector<32x32xf32>
    %133 = arith.truncf %132 : vector<32x32xf32> to vector<32x32xbf16>
    %c0_35 = arith.constant 0 : index
    %c96 = arith.constant 96 : index
    %134 = vector.load %arg15[%c0_35, %c96] : memref<32x128xbf16, #tpu.memory_space<vmem>>, vector<32x32xbf16>
    tpu.vector_store %arg15[%c0_35, %c96], %133 {strides = array<i32>} : memref<32x128xbf16, #tpu.memory_space<vmem>>, vector<32x32xbf16>,
    %c0_36 = arith.constant 0 : index
    %c0_37 = arith.constant 0 : index
    %135 = vector.load %arg15[%c0_36, %c0_37] : memref<32x128xbf16, #tpu.memory_space<vmem>>, vector<32x128xbf16>
    %c0_38 = arith.constant 0 : index
    %c0_39 = arith.constant 0 : index
    %136 = vector.load %arg6[%c0_38, %c0_39] : memref<128x128xbf16, #tpu.memory_space<vmem>>, vector<128x128xbf16>
    %cst_40 = arith.constant dense<0.000000e+00> : vector<32x128xf32>
    %137 = tpu.matmul %135, %136, %cst_40 {dimension_numbers = #tpu.dot_dimension_numbers<[1], [0], [0], [1], [0, 0, 1, 1], [], []>} : vector<32x128xbf16>, vector<128x128xbf16>, vector<32x128xf32> -> vector<32x128xf32>
    %138 = arith.addf %1, %137 : vector<32x128xf32>
    %c0_41 = arith.constant 0 : index
    %c0_42 = arith.constant 0 : index
    %139 = vector.load %arg7[%c0_41, %c0_42] : memref<1x128xf32, #tpu.memory_space<vmem>>, vector<1x128xf32>
    %140 = vector.broadcast %139 : vector<1x128xf32> to vector<32x128xf32>
    %141 = arith.addf %138, %140 : vector<32x128xf32>
    %c0_43 = arith.constant 0 : index
    %c0_44 = arith.constant 0 : index
    %142 = vector.load %arg8[%c0_43, %c0_44] : memref<1x128xf32, #tpu.memory_space<vmem>>, vector<1x128xf32>
    %c0_45 = arith.constant 0 : index
    %c0_46 = arith.constant 0 : index
    %143 = vector.load %arg9[%c0_45, %c0_46] : memref<1x128xf32, #tpu.memory_space<vmem>>, vector<1x128xf32>
    %cst_47 = arith.constant dense<0.000000e+00> : vector<32xf32>
    %144 = vector.multi_reduction <add>, %141, %cst_47 [1] : vector<32x128xf32> to vector<32xf32>
    %145 = vector.shape_cast %144 : vector<32xf32> to vector<32x1xf32>
    %cst_48 = arith.constant 1.280000e+02 : f32
    %146 = vector.broadcast %cst_48 : f32 to vector<32x1xf32>
    %147 = arith.divf %145, %146 : vector<32x1xf32>
    %148 = vector.broadcast %147 : vector<32x1xf32> to vector<32x128xf32>
    %149 = arith.subf %141, %148 : vector<32x128xf32>
    %150 = arith.mulf %149, %149 : vector<32x128xf32>
    %cst_49 = arith.constant dense<0.000000e+00> : vector<32xf32>
    %151 = vector.multi_reduction <add>, %150, %cst_49 [1] : vector<32x128xf32> to vector<32xf32>
    %152 = vector.shape_cast %151 : vector<32xf32> to vector<32x1xf32>
    %cst_50 = arith.constant 1.280000e+02 : f32
    %153 = vector.broadcast %cst_50 : f32 to vector<32x1xf32>
    %154 = arith.divf %152, %153 : vector<32x1xf32>
    %155 = vector.broadcast %147 : vector<32x1xf32> to vector<32x128xf32>
    %156 = arith.subf %141, %155 : vector<32x128xf32>
    %cst_51 = arith.constant 9.99999974E-6 : f32
    %157 = vector.broadcast %cst_51 : f32 to vector<32x1xf32>
    %158 = arith.addf %154, %157 : vector<32x1xf32>
    %159 = math.rsqrt %158 : vector<32x1xf32>
    %160 = vector.broadcast %159 : vector<32x1xf32> to vector<32x128xf32>
    %161 = arith.mulf %156, %160 : vector<32x128xf32>
    %162 = vector.broadcast %142 : vector<1x128xf32> to vector<32x128xf32>
    %163 = arith.mulf %161, %162 : vector<32x128xf32>
    %164 = vector.broadcast %143 : vector<1x128xf32> to vector<32x128xf32>
    %165 = arith.addf %163, %164 : vector<32x128xf32>
    %166 = arith.truncf %165 : vector<32x128xf32> to vector<32x128xbf16>
    %cst_52 = arith.constant 0.000000e+00 : f32
    %167 = vector.broadcast %cst_52 : f32 to vector<32x128xf32>
    %c0_53 = arith.constant 0 : index
    %c0_54 = arith.constant 0 : index
    %168 = vector.load %arg10[%c0_53, %c0_54] : memref<128x256xbf16, #tpu.memory_space<vmem>>, vector<128x256xbf16>
    %cst_55 = arith.constant dense<0.000000e+00> : vector<32x256xf32>
    %169 = tpu.matmul %166, %168, %cst_55 {dimension_numbers = #tpu.dot_dimension_numbers<[1], [0], [0], [1], [0, 0, 1, 1], [], []>} : vector<32x128xbf16>, vector<128x256xbf16>, vector<32x256xf32> -> vector<32x256xf32>
    %c0_56 = arith.constant 0 : index
    %c0_57 = arith.constant 0 : index
    %170 = vector.load %arg11[%c0_56, %c0_57] : memref<1x256xf32, #tpu.memory_space<vmem>>, vector<1x256xf32>
    %171 = vector.broadcast %170 : vector<1x256xf32> to vector<32x256xf32>
    %172 = arith.addf %169, %171 : vector<32x256xf32>
    %173 = arith.mulf %172, %172 : vector<32x256xf32>
    %174 = arith.mulf %172, %173 : vector<32x256xf32>
    %cst_58 = arith.constant 4.471500e-02 : f32
    %175 = vector.broadcast %cst_58 : f32 to vector<32x256xf32>
    %176 = arith.mulf %175, %174 : vector<32x256xf32>
    %177 = arith.addf %172, %176 : vector<32x256xf32>
    %cst_59 = arith.constant 0.797884583 : f32
    %178 = vector.broadcast %cst_59 : f32 to vector<32x256xf32>
    %179 = arith.mulf %178, %177 : vector<32x256xf32>
    %180 = math.tanh %179 : vector<32x256xf32>
    %cst_60 = arith.constant 1.000000e+00 : f32
    %181 = vector.broadcast %cst_60 : f32 to vector<32x256xf32>
    %182 = arith.addf %181, %180 : vector<32x256xf32>
    %cst_61 = arith.constant 5.000000e-01 : f32
    %183 = vector.broadcast %cst_61 : f32 to vector<32x256xf32>
    %184 = arith.mulf %183, %182 : vector<32x256xf32>
    %185 = arith.mulf %172, %184 : vector<32x256xf32>
    %186 = arith.truncf %185 : vector<32x256xf32> to vector<32x256xbf16>
    %c0_62 = arith.constant 0 : index
    %c0_63 = arith.constant 0 : index
    %187 = vector.load %arg12[%c0_62, %c0_63] : memref<256x128xbf16, #tpu.memory_space<vmem>>, vector<256x128xbf16>
    %cst_64 = arith.constant dense<0.000000e+00> : vector<32x128xf32>
    %188 = tpu.matmul %186, %187, %cst_64 {dimension_numbers = #tpu.dot_dimension_numbers<[1], [0], [0], [1], [0, 0, 1, 1], [], []>} : vector<32x256xbf16>, vector<256x128xbf16>, vector<32x128xf32> -> vector<32x128xf32>
    %189 = arith.addf %167, %188 : vector<32x128xf32>
    %190 = arith.addf %141, %189 : vector<32x128xf32>
    %c0_65 = arith.constant 0 : index
    %c0_66 = arith.constant 0 : index
    %191 = vector.load %arg13[%c0_65, %c0_66] : memref<1x128xf32, #tpu.memory_space<vmem>>, vector<1x128xf32>
    %192 = vector.broadcast %191 : vector<1x128xf32> to vector<32x128xf32>
    %193 = arith.addf %190, %192 : vector<32x128xf32>
    %194 = vector.shape_cast %193 : vector<32x128xf32> to vector<2x16x128xf32>
    %c0_67 = arith.constant 0 : index
    %c0_68 = arith.constant 0 : index
    %c0_69 = arith.constant 0 : index
    %195 = vector.load %arg14[%c0_67, %c0_68, %c0_69] : memref<2x16x128xf32, #tpu.memory_space<vmem>>, vector<2x16x128xf32>
    tpu.vector_store %arg14[%c0_67, %c0_68, %c0_69], %194 {strides = array<i32>} : memref<2x16x128xf32, #tpu.memory_space<vmem>>, vector<2x16x128xf32>,
    return
  }
  func.func @transform_0(%arg0: i32) -> (i32, i32, i32) {
    %c0_i32 = arith.constant 0 : i32
    %c0_i32_0 = arith.constant 0 : i32
    %c0_i32_1 = arith.constant 0 : i32
    return %arg0, %c0_i32, %c0_i32_0 : i32, i32, i32
  }
  func.func @transform_1(%arg0: i32) -> (i32, i32) {
    %c0_i32 = arith.constant 0 : i32
    %c0_i32_0 = arith.constant 0 : i32
    %c0_i32_1 = arith.constant 0 : i32
    return %c0_i32, %c0_i32_0 : i32, i32
  }
  func.func @transform_2(%arg0: i32) -> (i32, i32) {
    %c0_i32 = arith.constant 0 : i32
    %c0_i32_0 = arith.constant 0 : i32
    %c0_i32_1 = arith.constant 0 : i32
    return %c0_i32, %c0_i32_0 : i32, i32
  }
  func.func @transform_3(%arg0: i32) -> (i32, i32) {
    %c0_i32 = arith.constant 0 : i32
    %c0_i32_0 = arith.constant 0 : i32
    %c0_i32_1 = arith.constant 0 : i32
    return %c0_i32, %c0_i32_0 : i32, i32
  }
  func.func @transform_4(%arg0: i32) -> (i32, i32) {
    %c0_i32 = arith.constant 0 : i32
    %c0_i32_0 = arith.constant 0 : i32
    %c0_i32_1 = arith.constant 0 : i32
    return %c0_i32, %c0_i32_0 : i32, i32
  }
  func.func @transform_5(%arg0: i32) -> (i32, i32) {
    %c0_i32 = arith.constant 0 : i32
    %c0_i32_0 = arith.constant 0 : i32
    %c0_i32_1 = arith.constant 0 : i32
    return %c0_i32, %c0_i32_0 : i32, i32
  }
  func.func @transform_6(%arg0: i32) -> (i32, i32) {
    %c0_i32 = arith.constant 0 : i32
    %c0_i32_0 = arith.constant 0 : i32
    %c0_i32_1 = arith.constant 0 : i32
    return %c0_i32, %c0_i32_0 : i32, i32
  }
  func.func @transform_7(%arg0: i32) -> (i32, i32) {
    %c0_i32 = arith.constant 0 : i32
    %c0_i32_0 = arith.constant 0 : i32
    %c0_i32_1 = arith.constant 0 : i32
    return %c0_i32, %c0_i32_0 : i32, i32
  }
  func.func @transform_8(%arg0: i32) -> (i32, i32) {
    %c0_i32 = arith.constant 0 : i32
    %c0_i32_0 = arith.constant 0 : i32
    %c0_i32_1 = arith.constant 0 : i32
    return %c0_i32, %c0_i32_0 : i32, i32
  }
  func.func @transform_9(%arg0: i32) -> (i32, i32) {
    %c0_i32 = arith.constant 0 : i32
    %c0_i32_0 = arith.constant 0 : i32
    %c0_i32_1 = arith.constant 0 : i32
    return %c0_i32, %c0_i32_0 : i32, i32
  }
  func.func @transform_10(%arg0: i32) -> (i32, i32) {
    %c0_i32 = arith.constant 0 : i32
    %c0_i32_0 = arith.constant 0 : i32
    %c0_i32_1 = arith.constant 0 : i32
    return %c0_i32, %c0_i32_0 : i32, i32
  }
  func.func @transform_11(%arg0: i32) -> (i32, i32) {
    %c0_i32 = arith.constant 0 : i32
    %c0_i32_0 = arith.constant 0 : i32
    %c0_i32_1 = arith.constant 0 : i32
    return %c0_i32, %c0_i32_0 : i32, i32
  }
  func.func @transform_12(%arg0: i32) -> (i32, i32) {
    %c0_i32 = arith.constant 0 : i32
    %c0_i32_0 = arith.constant 0 : i32
    %c0_i32_1 = arith.constant 0 : i32
    return %c0_i32, %c0_i32_0 : i32, i32
  }
  func.func @transform_13(%arg0: i32) -> (i32, i32, i32) {
    %c0_i32 = arith.constant 0 : i32
    %c0_i32_0 = arith.constant 0 : i32
    %c0_i32_1 = arith.constant 0 : i32
    return %arg0, %c0_i32, %c0_i32_0 : i32, i32, i32
  }
}

module attributes {stable_mosaic.version = 11 : i64} {
  func.func @_encoder_kernel(%arg0: i32, %arg1: memref<2x16x128xf32, #tpu.memory_space<vmem>>, %arg2: memref<1x128xf32, #tpu.memory_space<vmem>>, %arg3: memref<1x128xf32, #tpu.memory_space<vmem>>, %arg4: memref<128x384xbf16, #tpu.memory_space<vmem>>, %arg5: memref<1x384xf32, #tpu.memory_space<vmem>>, %arg6: memref<128x128xbf16, #tpu.memory_space<vmem>>, %arg7: memref<1x128xf32, #tpu.memory_space<vmem>>, %arg8: memref<1x128xf32, #tpu.memory_space<vmem>>, %arg9: memref<1x128xf32, #tpu.memory_space<vmem>>, %arg10: memref<128x256xbf16, #tpu.memory_space<vmem>>, %arg11: memref<1x256xf32, #tpu.memory_space<vmem>>, %arg12: memref<256x128xbf16, #tpu.memory_space<vmem>>, %arg13: memref<1x128xf32, #tpu.memory_space<vmem>>, %arg14: memref<2x16x128xf32, #tpu.memory_space<vmem>>, %arg15: memref<32x128xbf16, #tpu.memory_space<vmem>>) attributes {dimension_semantics = [#tpu.dimension_semantics<parallel>], iteration_bounds = array<i64: 2>, scalar_prefetch = 0 : i64, scratch_operands = 1 : i64, tpu.core_type = #tpu.core_type<tc>, window_params = [{transform_indices = @transform_0, window_bounds = array<i64: 2, 16, 128>}, {pipeline_mode = #tpu.pipeline_mode<synchronous>, transform_indices = @transform_1, window_bounds = array<i64: 1, 128>}, {pipeline_mode = #tpu.pipeline_mode<synchronous>, transform_indices = @transform_2, window_bounds = array<i64: 1, 128>}, {pipeline_mode = #tpu.pipeline_mode<synchronous>, transform_indices = @transform_3, window_bounds = array<i64: 128, 384>}, {pipeline_mode = #tpu.pipeline_mode<synchronous>, transform_indices = @transform_4, window_bounds = array<i64: 1, 384>}, {pipeline_mode = #tpu.pipeline_mode<synchronous>, transform_indices = @transform_5, window_bounds = array<i64: 128, 128>}, {pipeline_mode = #tpu.pipeline_mode<synchronous>, transform_indices = @transform_6, window_bounds = array<i64: 1, 128>}, {pipeline_mode = #tpu.pipeline_mode<synchronous>, transform_indices = @transform_7, window_bounds = array<i64: 1, 128>}, {pipeline_mode = #tpu.pipeline_mode<synchronous>, transform_indices = @transform_8, window_bounds = array<i64: 1, 128>}, {pipeline_mode = #tpu.pipeline_mode<synchronous>, transform_indices = @transform_9, window_bounds = array<i64: 128, 256>}, {pipeline_mode = #tpu.pipeline_mode<synchronous>, transform_indices = @transform_10, window_bounds = array<i64: 1, 256>}, {pipeline_mode = #tpu.pipeline_mode<synchronous>, transform_indices = @transform_11, window_bounds = array<i64: 256, 128>}, {pipeline_mode = #tpu.pipeline_mode<synchronous>, transform_indices = @transform_12, window_bounds = array<i64: 1, 128>}, {transform_indices = @transform_13, window_bounds = array<i64: 2, 16, 128>}]} {
    %c0 = arith.constant 0 : index
    %c0_0 = arith.constant 0 : index
    %c0_1 = arith.constant 0 : index
    %0 = vector.load %arg1[%c0, %c0_0, %c0_1] : memref<2x16x128xf32, #tpu.memory_space<vmem>>, vector<2x16x128xf32>
    %1 = vector.shape_cast %0 : vector<2x16x128xf32> to vector<32x128xf32>
    %c0_2 = arith.constant 0 : index
    %c0_3 = arith.constant 0 : index
    %2 = vector.load %arg2[%c0_2, %c0_3] : memref<1x128xf32, #tpu.memory_space<vmem>>, vector<1x128xf32>
    %c0_4 = arith.constant 0 : index
    %c0_5 = arith.constant 0 : index
    %3 = vector.load %arg3[%c0_4, %c0_5] : memref<1x128xf32, #tpu.memory_space<vmem>>, vector<1x128xf32>
    %cst = arith.constant dense<0.000000e+00> : vector<32xf32>
    %4 = vector.multi_reduction <add>, %1, %cst [1] : vector<32x128xf32> to vector<32xf32>
    %5 = vector.shape_cast %4 : vector<32xf32> to vector<32x1xf32>
    %cst_6 = arith.constant 1.280000e+02 : f32
    %6 = vector.broadcast %cst_6 : f32 to vector<32x1xf32>
    %7 = arith.divf %5, %6 : vector<32x1xf32>
    %8 = vector.broadcast %7 : vector<32x1xf32> to vector<32x128xf32>
    %9 = arith.subf %1, %8 : vector<32x128xf32>
    %10 = arith.mulf %9, %9 : vector<32x128xf32>
    %cst_7 = arith.constant dense<0.000000e+00> : vector<32xf32>
    %11 = vector.multi_reduction <add>, %10, %cst_7 [1] : vector<32x128xf32> to vector<32xf32>
    %12 = vector.shape_cast %11 : vector<32xf32> to vector<32x1xf32>
    %cst_8 = arith.constant 1.280000e+02 : f32
    %13 = vector.broadcast %cst_8 : f32 to vector<32x1xf32>
    %14 = arith.divf %12, %13 : vector<32x1xf32>
    %15 = vector.broadcast %7 : vector<32x1xf32> to vector<32x128xf32>
    %16 = arith.subf %1, %15 : vector<32x128xf32>
    %cst_9 = arith.constant 9.99999974E-6 : f32
    %17 = vector.broadcast %cst_9 : f32 to vector<32x1xf32>
    %18 = arith.addf %14, %17 : vector<32x1xf32>
    %19 = math.rsqrt %18 : vector<32x1xf32>
    %20 = vector.broadcast %19 : vector<32x1xf32> to vector<32x128xf32>
    %21 = arith.mulf %16, %20 : vector<32x128xf32>
    %22 = vector.broadcast %2 : vector<1x128xf32> to vector<32x128xf32>
    %23 = arith.mulf %21, %22 : vector<32x128xf32>
    %24 = vector.broadcast %3 : vector<1x128xf32> to vector<32x128xf32>
    %25 = arith.addf %23, %24 : vector<32x128xf32>
    %26 = arith.truncf %25 : vector<32x128xf32> to vector<32x128xbf16>
    %c0_10 = arith.constant 0 : index
    %c0_11 = arith.constant 0 : index
    %27 = vector.load %arg4[%c0_10, %c0_11] : memref<128x384xbf16, #tpu.memory_space<vmem>>, vector<128x384xbf16>
    %cst_12 = arith.constant dense<0.000000e+00> : vector<32x384xf32>
    %28 = tpu.matmul %26, %27, %cst_12 {dimension_numbers = #tpu.dot_dimension_numbers<[1], [0], [0], [1], [0, 0, 1, 1], [], []>} : vector<32x128xbf16>, vector<128x384xbf16>, vector<32x384xf32> -> vector<32x384xf32>
    %c0_13 = arith.constant 0 : index
    %c0_14 = arith.constant 0 : index
    %29 = vector.load %arg5[%c0_13, %c0_14] : memref<1x384xf32, #tpu.memory_space<vmem>>, vector<1x384xf32>
    %30 = vector.broadcast %29 : vector<1x384xf32> to vector<32x384xf32>
    %31 = arith.addf %28, %30 : vector<32x384xf32>
    %32 = vector.extract_strided_slice %31 {offsets = [0, 0], sizes = [32, 128], strides = [1, 1]} : vector<32x384xf32> to vector<32x128xf32>
    %33 = vector.extract_strided_slice %31 {offsets = [0, 128], sizes = [32, 128], strides = [1, 1]} : vector<32x384xf32> to vector<32x128xf32>
    %34 = vector.extract_strided_slice %31 {offsets = [0, 256], sizes = [32, 128], strides = [1, 1]} : vector<32x384xf32> to vector<32x128xf32>
    %35 = vector.extract_strided_slice %32 {offsets = [0, 0], sizes = [32, 32], strides = [1, 1]} : vector<32x128xf32> to vector<32x32xf32>
    %36 = vector.shape_cast %35 : vector<32x32xf32> to vector<2x16x32xf32>
    %37 = arith.truncf %36 : vector<2x16x32xf32> to vector<2x16x32xbf16>
    %38 = vector.extract_strided_slice %33 {offsets = [0, 0], sizes = [32, 32], strides = [1, 1]} : vector<32x128xf32> to vector<32x32xf32>
    %39 = vector.shape_cast %38 : vector<32x32xf32> to vector<2x16x32xf32>
    %40 = arith.truncf %39 : vector<2x16x32xf32> to vector<2x16x32xbf16>
    %41 = vector.extract_strided_slice %34 {offsets = [0, 0], sizes = [32, 32], strides = [1, 1]} : vector<32x128xf32> to vector<32x32xf32>
    %42 = vector.shape_cast %41 : vector<32x32xf32> to vector<2x16x32xf32>
    %43 = arith.truncf %42 : vector<2x16x32xf32> to vector<2x16x32xbf16>
    "tpu.trace_start"() <{level = 10 : i32, message = "bqd,bkd->bqk"}> : () -> ()
    %cst_15 = arith.constant dense<0.000000e+00> : vector<2x16x16xf32>
    %44 = tpu.matmul %37, %40, %cst_15 {dimension_numbers = #tpu.dot_dimension_numbers<[2], [2], [1], [1], [0, 0, 0, 1, 1, 1], [0], [0]>} : vector<2x16x32xbf16>, vector<2x16x32xbf16>, vector<2x16x16xf32> -> vector<2x16x16xf32>
    "tpu.trace_stop"() : () -> ()
    %cst_16 = arith.constant dense<0xFF800000> : vector<2x16xf32>
    %45 = vector.multi_reduction <maximumf>, %44, %cst_16 [2] : vector<2x16x16xf32> to vector<2x16xf32>
    %46 = vector.shape_cast %45 : vector<2x16xf32> to vector<2x16x1xf32>
    %47 = vector.broadcast %46 : vector<2x16x1xf32> to vector<2x16x16xf32>
    %48 = arith.subf %44, %47 : vector<2x16x16xf32>
    %49 = math.exp %48 : vector<2x16x16xf32>
    %cst_17 = arith.constant dense<0.000000e+00> : vector<2x16xf32>
    %50 = vector.multi_reduction <add>, %49, %cst_17 [2] : vector<2x16x16xf32> to vector<2x16xf32>
    %51 = vector.shape_cast %50 : vector<2x16xf32> to vector<2x16x1xf32>
    %52 = tpu.reciprocal %51 {approx = true} : vector<2x16x1xf32> -> vector<2x16x1xf32>
    %53 = vector.broadcast %52 : vector<2x16x1xf32> to vector<2x16x16xf32>
    %54 = arith.mulf %49, %53 : vector<2x16x16xf32>
    %55 = arith.truncf %54 : vector<2x16x16xf32> to vector<2x16x16xbf16>
    "tpu.trace_start"() <{level = 10 : i32, message = "bqk,bkd->bqd"}> : () -> ()
    %cst_18 = arith.constant dense<0.000000e+00> : vector<2x16x32xf32>
    %56 = tpu.matmul %55, %43, %cst_18 {dimension_numbers = #tpu.dot_dimension_numbers<[2], [1], [1], [2], [0, 0, 0, 1, 1, 2], [0], [0]>} : vector<2x16x16xbf16>, vector<2x16x32xbf16>, vector<2x16x32xf32> -> vector<2x16x32xf32>
    "tpu.trace_stop"() : () -> ()
    %57 = vector.shape_cast %56 : vector<2x16x32xf32> to vector<32x32xf32>
    %58 = arith.truncf %57 : vector<32x32xf32> to vector<32x32xbf16>
    %c0_19 = arith.constant 0 : index
    %c0_20 = arith.constant 0 : index
    %59 = vector.load %arg15[%c0_19, %c0_20] : memref<32x128xbf16, #tpu.memory_space<vmem>>, vector<32x32xbf16>
    tpu.vector_store %arg15[%c0_19, %c0_20], %58 {strides = array<i32>} : memref<32x128xbf16, #tpu.memory_space<vmem>>, vector<32x32xbf16>,
    %60 = vector.extract_strided_slice %32 {offsets = [0, 32], sizes = [32, 32], strides = [1, 1]} : vector<32x128xf32> to vector<32x32xf32>
    %61 = vector.shape_cast %60 : vector<32x32xf32> to vector<2x16x32xf32>
    %62 = arith.truncf %61 : vector<2x16x32xf32> to vector<2x16x32xbf16>
    %63 = vector.extract_strided_slice %33 {offsets = [0, 32], sizes = [32, 32], strides = [1, 1]} : vector<32x128xf32> to vector<32x32xf32>
    %64 = vector.shape_cast %63 : vector<32x32xf32> to vector<2x16x32xf32>
    %65 = arith.truncf %64 : vector<2x16x32xf32> to vector<2x16x32xbf16>
    %66 = vector.extract_strided_slice %34 {offsets = [0, 32], sizes = [32, 32], strides = [1, 1]} : vector<32x128xf32> to vector<32x32xf32>
    %67 = vector.shape_cast %66 : vector<32x32xf32> to vector<2x16x32xf32>
    %68 = arith.truncf %67 : vector<2x16x32xf32> to vector<2x16x32xbf16>
    "tpu.trace_start"() <{level = 10 : i32, message = "bqd,bkd->bqk"}> : () -> ()
    %cst_21 = arith.constant dense<0.000000e+00> : vector<2x16x16xf32>
    %69 = tpu.matmul %62, %65, %cst_21 {dimension_numbers = #tpu.dot_dimension_numbers<[2], [2], [1], [1], [0, 0, 0, 1, 1, 1], [0], [0]>} : vector<2x16x32xbf16>, vector<2x16x32xbf16>, vector<2x16x16xf32> -> vector<2x16x16xf32>
    "tpu.trace_stop"() : () -> ()
    %cst_22 = arith.constant dense<0xFF800000> : vector<2x16xf32>
    %70 = vector.multi_reduction <maximumf>, %69, %cst_22 [2] : vector<2x16x16xf32> to vector<2x16xf32>
    %71 = vector.shape_cast %70 : vector<2x16xf32> to vector<2x16x1xf32>
    %72 = vector.broadcast %71 : vector<2x16x1xf32> to vector<2x16x16xf32>
    %73 = arith.subf %69, %72 : vector<2x16x16xf32>
    %74 = math.exp %73 : vector<2x16x16xf32>
    %cst_23 = arith.constant dense<0.000000e+00> : vector<2x16xf32>
    %75 = vector.multi_reduction <add>, %74, %cst_23 [2] : vector<2x16x16xf32> to vector<2x16xf32>
    %76 = vector.shape_cast %75 : vector<2x16xf32> to vector<2x16x1xf32>
    %77 = tpu.reciprocal %76 {approx = true} : vector<2x16x1xf32> -> vector<2x16x1xf32>
    %78 = vector.broadcast %77 : vector<2x16x1xf32> to vector<2x16x16xf32>
    %79 = arith.mulf %74, %78 : vector<2x16x16xf32>
    %80 = arith.truncf %79 : vector<2x16x16xf32> to vector<2x16x16xbf16>
    "tpu.trace_start"() <{level = 10 : i32, message = "bqk,bkd->bqd"}> : () -> ()
    %cst_24 = arith.constant dense<0.000000e+00> : vector<2x16x32xf32>
    %81 = tpu.matmul %80, %68, %cst_24 {dimension_numbers = #tpu.dot_dimension_numbers<[2], [1], [1], [2], [0, 0, 0, 1, 1, 2], [0], [0]>} : vector<2x16x16xbf16>, vector<2x16x32xbf16>, vector<2x16x32xf32> -> vector<2x16x32xf32>
    "tpu.trace_stop"() : () -> ()
    %82 = vector.shape_cast %81 : vector<2x16x32xf32> to vector<32x32xf32>
    %83 = arith.truncf %82 : vector<32x32xf32> to vector<32x32xbf16>
    %c0_25 = arith.constant 0 : index
    %c32 = arith.constant 32 : index
    %84 = vector.load %arg15[%c0_25, %c32] : memref<32x128xbf16, #tpu.memory_space<vmem>>, vector<32x32xbf16>
    tpu.vector_store %arg15[%c0_25, %c32], %83 {strides = array<i32>} : memref<32x128xbf16, #tpu.memory_space<vmem>>, vector<32x32xbf16>,
    %85 = vector.extract_strided_slice %32 {offsets = [0, 64], sizes = [32, 32], strides = [1, 1]} : vector<32x128xf32> to vector<32x32xf32>
    %86 = vector.shape_cast %85 : vector<32x32xf32> to vector<2x16x32xf32>
    %87 = arith.truncf %86 : vector<2x16x32xf32> to vector<2x16x32xbf16>
    %88 = vector.extract_strided_slice %33 {offsets = [0, 64], sizes = [32, 32], strides = [1, 1]} : vector<32x128xf32> to vector<32x32xf32>
    %89 = vector.shape_cast %88 : vector<32x32xf32> to vector<2x16x32xf32>
    %90 = arith.truncf %89 : vector<2x16x32xf32> to vector<2x16x32xbf16>
    %91 = vector.extract_strided_slice %34 {offsets = [0, 64], sizes = [32, 32], strides = [1, 1]} : vector<32x128xf32> to vector<32x32xf32>
    %92 = vector.shape_cast %91 : vector<32x32xf32> to vector<2x16x32xf32>
    %93 = arith.truncf %92 : vector<2x16x32xf32> to vector<2x16x32xbf16>
    "tpu.trace_start"() <{level = 10 : i32, message = "bqd,bkd->bqk"}> : () -> ()
    %cst_26 = arith.constant dense<0.000000e+00> : vector<2x16x16xf32>
    %94 = tpu.matmul %87, %90, %cst_26 {dimension_numbers = #tpu.dot_dimension_numbers<[2], [2], [1], [1], [0, 0, 0, 1, 1, 1], [0], [0]>} : vector<2x16x32xbf16>, vector<2x16x32xbf16>, vector<2x16x16xf32> -> vector<2x16x16xf32>
    "tpu.trace_stop"() : () -> ()
    %cst_27 = arith.constant dense<0xFF800000> : vector<2x16xf32>
    %95 = vector.multi_reduction <maximumf>, %94, %cst_27 [2] : vector<2x16x16xf32> to vector<2x16xf32>
    %96 = vector.shape_cast %95 : vector<2x16xf32> to vector<2x16x1xf32>
    %97 = vector.broadcast %96 : vector<2x16x1xf32> to vector<2x16x16xf32>
    %98 = arith.subf %94, %97 : vector<2x16x16xf32>
    %99 = math.exp %98 : vector<2x16x16xf32>
    %cst_28 = arith.constant dense<0.000000e+00> : vector<2x16xf32>
    %100 = vector.multi_reduction <add>, %99, %cst_28 [2] : vector<2x16x16xf32> to vector<2x16xf32>
    %101 = vector.shape_cast %100 : vector<2x16xf32> to vector<2x16x1xf32>
    %102 = tpu.reciprocal %101 {approx = true} : vector<2x16x1xf32> -> vector<2x16x1xf32>
    %103 = vector.broadcast %102 : vector<2x16x1xf32> to vector<2x16x16xf32>
    %104 = arith.mulf %99, %103 : vector<2x16x16xf32>
    %105 = arith.truncf %104 : vector<2x16x16xf32> to vector<2x16x16xbf16>
    "tpu.trace_start"() <{level = 10 : i32, message = "bqk,bkd->bqd"}> : () -> ()
    %cst_29 = arith.constant dense<0.000000e+00> : vector<2x16x32xf32>
    %106 = tpu.matmul %105, %93, %cst_29 {dimension_numbers = #tpu.dot_dimension_numbers<[2], [1], [1], [2], [0, 0, 0, 1, 1, 2], [0], [0]>} : vector<2x16x16xbf16>, vector<2x16x32xbf16>, vector<2x16x32xf32> -> vector<2x16x32xf32>
    "tpu.trace_stop"() : () -> ()
    %107 = vector.shape_cast %106 : vector<2x16x32xf32> to vector<32x32xf32>
    %108 = arith.truncf %107 : vector<32x32xf32> to vector<32x32xbf16>
    %c0_30 = arith.constant 0 : index
    %c64 = arith.constant 64 : index
    %109 = vector.load %arg15[%c0_30, %c64] : memref<32x128xbf16, #tpu.memory_space<vmem>>, vector<32x32xbf16>
    tpu.vector_store %arg15[%c0_30, %c64], %108 {strides = array<i32>} : memref<32x128xbf16, #tpu.memory_space<vmem>>, vector<32x32xbf16>,
    %110 = vector.extract_strided_slice %32 {offsets = [0, 96], sizes = [32, 32], strides = [1, 1]} : vector<32x128xf32> to vector<32x32xf32>
    %111 = vector.shape_cast %110 : vector<32x32xf32> to vector<2x16x32xf32>
    %112 = arith.truncf %111 : vector<2x16x32xf32> to vector<2x16x32xbf16>
    %113 = vector.extract_strided_slice %33 {offsets = [0, 96], sizes = [32, 32], strides = [1, 1]} : vector<32x128xf32> to vector<32x32xf32>
    %114 = vector.shape_cast %113 : vector<32x32xf32> to vector<2x16x32xf32>
    %115 = arith.truncf %114 : vector<2x16x32xf32> to vector<2x16x32xbf16>
    %116 = vector.extract_strided_slice %34 {offsets = [0, 96], sizes = [32, 32], strides = [1, 1]} : vector<32x128xf32> to vector<32x32xf32>
    %117 = vector.shape_cast %116 : vector<32x32xf32> to vector<2x16x32xf32>
    %118 = arith.truncf %117 : vector<2x16x32xf32> to vector<2x16x32xbf16>
    "tpu.trace_start"() <{level = 10 : i32, message = "bqd,bkd->bqk"}> : () -> ()
    %cst_31 = arith.constant dense<0.000000e+00> : vector<2x16x16xf32>
    %119 = tpu.matmul %112, %115, %cst_31 {dimension_numbers = #tpu.dot_dimension_numbers<[2], [2], [1], [1], [0, 0, 0, 1, 1, 1], [0], [0]>} : vector<2x16x32xbf16>, vector<2x16x32xbf16>, vector<2x16x16xf32> -> vector<2x16x16xf32>
    "tpu.trace_stop"() : () -> ()
    %cst_32 = arith.constant dense<0xFF800000> : vector<2x16xf32>
    %120 = vector.multi_reduction <maximumf>, %119, %cst_32 [2] : vector<2x16x16xf32> to vector<2x16xf32>
    %121 = vector.shape_cast %120 : vector<2x16xf32> to vector<2x16x1xf32>
    %122 = vector.broadcast %121 : vector<2x16x1xf32> to vector<2x16x16xf32>
    %123 = arith.subf %119, %122 : vector<2x16x16xf32>
    %124 = math.exp %123 : vector<2x16x16xf32>
    %cst_33 = arith.constant dense<0.000000e+00> : vector<2x16xf32>
    %125 = vector.multi_reduction <add>, %124, %cst_33 [2] : vector<2x16x16xf32> to vector<2x16xf32>
    %126 = vector.shape_cast %125 : vector<2x16xf32> to vector<2x16x1xf32>
    %127 = tpu.reciprocal %126 {approx = true} : vector<2x16x1xf32> -> vector<2x16x1xf32>
    %128 = vector.broadcast %127 : vector<2x16x1xf32> to vector<2x16x16xf32>
    %129 = arith.mulf %124, %128 : vector<2x16x16xf32>
    %130 = arith.truncf %129 : vector<2x16x16xf32> to vector<2x16x16xbf16>
    "tpu.trace_start"() <{level = 10 : i32, message = "bqk,bkd->bqd"}> : () -> ()
    %cst_34 = arith.constant dense<0.000000e+00> : vector<2x16x32xf32>
    %131 = tpu.matmul %130, %118, %cst_34 {dimension_numbers = #tpu.dot_dimension_numbers<[2], [1], [1], [2], [0, 0, 0, 1, 1, 2], [0], [0]>} : vector<2x16x16xbf16>, vector<2x16x32xbf16>, vector<2x16x32xf32> -> vector<2x16x32xf32>
    "tpu.trace_stop"() : () -> ()
    %132 = vector.shape_cast %131 : vector<2x16x32xf32> to vector<32x32xf32>
    %133 = arith.truncf %132 : vector<32x32xf32> to vector<32x32xbf16>
    %c0_35 = arith.constant 0 : index
    %c96 = arith.constant 96 : index
    %134 = vector.load %arg15[%c0_35, %c96] : memref<32x128xbf16, #tpu.memory_space<vmem>>, vector<32x32xbf16>
    tpu.vector_store %arg15[%c0_35, %c96], %133 {strides = array<i32>} : memref<32x128xbf16, #tpu.memory_space<vmem>>, vector<32x32xbf16>,
    %c0_36 = arith.constant 0 : index
    %c0_37 = arith.constant 0 : index
    %135 = vector.load %arg15[%c0_36, %c0_37] : memref<32x128xbf16, #tpu.memory_space<vmem>>, vector<32x128xbf16>
    %c0_38 = arith.constant 0 : index
    %c0_39 = arith.constant 0 : index
    %136 = vector.load %arg6[%c0_38, %c0_39] : memref<128x128xbf16, #tpu.memory_space<vmem>>, vector<128x128xbf16>
    %cst_40 = arith.constant dense<0.000000e+00> : vector<32x128xf32>
    %137 = tpu.matmul %135, %136, %cst_40 {dimension_numbers = #tpu.dot_dimension_numbers<[1], [0], [0], [1], [0, 0, 1, 1], [], []>} : vector<32x128xbf16>, vector<128x128xbf16>, vector<32x128xf32> -> vector<32x128xf32>
    %138 = arith.addf %1, %137 : vector<32x128xf32>
    %c0_41 = arith.constant 0 : index
    %c0_42 = arith.constant 0 : index
    %139 = vector.load %arg7[%c0_41, %c0_42] : memref<1x128xf32, #tpu.memory_space<vmem>>, vector<1x128xf32>
    %140 = vector.broadcast %139 : vector<1x128xf32> to vector<32x128xf32>
    %141 = arith.addf %138, %140 : vector<32x128xf32>
    %c0_43 = arith.constant 0 : index
    %c0_44 = arith.constant 0 : index
    %142 = vector.load %arg8[%c0_43, %c0_44] : memref<1x128xf32, #tpu.memory_space<vmem>>, vector<1x128xf32>
    %c0_45 = arith.constant 0 : index
    %c0_46 = arith.constant 0 : index
    %143 = vector.load %arg9[%c0_45, %c0_46] : memref<1x128xf32, #tpu.memory_space<vmem>>, vector<1x128xf32>
    %cst_47 = arith.constant dense<0.000000e+00> : vector<32xf32>
    %144 = vector.multi_reduction <add>, %141, %cst_47 [1] : vector<32x128xf32> to vector<32xf32>
    %145 = vector.shape_cast %144 : vector<32xf32> to vector<32x1xf32>
    %cst_48 = arith.constant 1.280000e+02 : f32
    %146 = vector.broadcast %cst_48 : f32 to vector<32x1xf32>
    %147 = arith.divf %145, %146 : vector<32x1xf32>
    %148 = vector.broadcast %147 : vector<32x1xf32> to vector<32x128xf32>
    %149 = arith.subf %141, %148 : vector<32x128xf32>
    %150 = arith.mulf %149, %149 : vector<32x128xf32>
    %cst_49 = arith.constant dense<0.000000e+00> : vector<32xf32>
    %151 = vector.multi_reduction <add>, %150, %cst_49 [1] : vector<32x128xf32> to vector<32xf32>
    %152 = vector.shape_cast %151 : vector<32xf32> to vector<32x1xf32>
    %cst_50 = arith.constant 1.280000e+02 : f32
    %153 = vector.broadcast %cst_50 : f32 to vector<32x1xf32>
    %154 = arith.divf %152, %153 : vector<32x1xf32>
    %155 = vector.broadcast %147 : vector<32x1xf32> to vector<32x128xf32>
    %156 = arith.subf %141, %155 : vector<32x128xf32>
    %cst_51 = arith.constant 9.99999974E-6 : f32
    %157 = vector.broadcast %cst_51 : f32 to vector<32x1xf32>
    %158 = arith.addf %154, %157 : vector<32x1xf32>
    %159 = math.rsqrt %158 : vector<32x1xf32>
    %160 = vector.broadcast %159 : vector<32x1xf32> to vector<32x128xf32>
    %161 = arith.mulf %156, %160 : vector<32x128xf32>
    %162 = vector.broadcast %142 : vector<1x128xf32> to vector<32x128xf32>
    %163 = arith.mulf %161, %162 : vector<32x128xf32>
    %164 = vector.broadcast %143 : vector<1x128xf32> to vector<32x128xf32>
    %165 = arith.addf %163, %164 : vector<32x128xf32>
    %166 = arith.truncf %165 : vector<32x128xf32> to vector<32x128xbf16>
    %cst_52 = arith.constant 0.000000e+00 : f32
    %167 = vector.broadcast %cst_52 : f32 to vector<32x128xf32>
    %c0_53 = arith.constant 0 : index
    %c0_54 = arith.constant 0 : index
    %168 = vector.load %arg10[%c0_53, %c0_54] : memref<128x256xbf16, #tpu.memory_space<vmem>>, vector<128x256xbf16>
    %cst_55 = arith.constant dense<0.000000e+00> : vector<32x256xf32>
    %169 = tpu.matmul %166, %168, %cst_55 {dimension_numbers = #tpu.dot_dimension_numbers<[1], [0], [0], [1], [0, 0, 1, 1], [], []>} : vector<32x128xbf16>, vector<128x256xbf16>, vector<32x256xf32> -> vector<32x256xf32>
    %c0_56 = arith.constant 0 : index
    %c0_57 = arith.constant 0 : index
    %170 = vector.load %arg11[%c0_56, %c0_57] : memref<1x256xf32, #tpu.memory_space<vmem>>, vector<1x256xf32>
    %171 = vector.broadcast %170 : vector<1x256xf32> to vector<32x256xf32>
    %172 = arith.addf %169, %171 : vector<32x256xf32>
    %173 = arith.mulf %172, %172 : vector<32x256xf32>
    %174 = arith.mulf %172, %173 : vector<32x256xf32>
    %cst_58 = arith.constant 4.471500e-02 : f32
    %175 = vector.broadcast %cst_58 : f32 to vector<32x256xf32>
    %176 = arith.mulf %175, %174 : vector<32x256xf32>
    %177 = arith.addf %172, %176 : vector<32x256xf32>
    %cst_59 = arith.constant 0.797884583 : f32
    %178 = vector.broadcast %cst_59 : f32 to vector<32x256xf32>
    %179 = arith.mulf %178, %177 : vector<32x256xf32>
    %180 = math.tanh %179 : vector<32x256xf32>
    %cst_60 = arith.constant 1.000000e+00 : f32
    %181 = vector.broadcast %cst_60 : f32 to vector<32x256xf32>
    %182 = arith.addf %181, %180 : vector<32x256xf32>
    %cst_61 = arith.constant 5.000000e-01 : f32
    %183 = vector.broadcast %cst_61 : f32 to vector<32x256xf32>
    %184 = arith.mulf %183, %182 : vector<32x256xf32>
    %185 = arith.mulf %172, %184 : vector<32x256xf32>
    %186 = arith.truncf %185 : vector<32x256xf32> to vector<32x256xbf16>
    %c0_62 = arith.constant 0 : index
    %c0_63 = arith.constant 0 : index
    %187 = vector.load %arg12[%c0_62, %c0_63] : memref<256x128xbf16, #tpu.memory_space<vmem>>, vector<256x128xbf16>
    %cst_64 = arith.constant dense<0.000000e+00> : vector<32x128xf32>
    %188 = tpu.matmul %186, %187, %cst_64 {dimension_numbers = #tpu.dot_dimension_numbers<[1], [0], [0], [1], [0, 0, 1, 1], [], []>} : vector<32x256xbf16>, vector<256x128xbf16>, vector<32x128xf32> -> vector<32x128xf32>
    %189 = arith.addf %167, %188 : vector<32x128xf32>
    %190 = arith.addf %141, %189 : vector<32x128xf32>
    %c0_65 = arith.constant 0 : index
    %c0_66 = arith.constant 0 : index
    %191 = vector.load %arg13[%c0_65, %c0_66] : memref<1x128xf32, #tpu.memory_space<vmem>>, vector<1x128xf32>
    %192 = vector.broadcast %191 : vector<1x128xf32> to vector<32x128xf32>
    %193 = arith.addf %190, %192 : vector<32x128xf32>
    %194 = vector.shape_cast %193 : vector<32x128xf32> to vector<2x16x128xf32>
    %c0_67 = arith.constant 0 : index
    %c0_68 = arith.constant 0 : index
    %c0_69 = arith.constant 0 : index
    %195 = vector.load %arg14[%c0_67, %c0_68, %c0_69] : memref<2x16x128xf32, #tpu.memory_space<vmem>>, vector<2x16x128xf32>
    tpu.vector_store %arg14[%c0_67, %c0_68, %c0_69], %194 {strides = array<i32>} : memref<2x16x128xf32, #tpu.memory_space<vmem>>, vector<2x16x128xf32>,
    return
  }
  func.func @transform_0(%arg0: i32) -> (i32, i32, i32) {
    %c0_i32 = arith.constant 0 : i32
    %c0_i32_0 = arith.constant 0 : i32
    %c0_i32_1 = arith.constant 0 : i32
    return %arg0, %c0_i32, %c0_i32_0 : i32, i32, i32
  }
  func.func @transform_1(%arg0: i32) -> (i32, i32) {
    %c0_i32 = arith.constant 0 : i32
    %c0_i32_0 = arith.constant 0 : i32
    %c0_i32_1 = arith.constant 0 : i32
    return %c0_i32, %c0_i32_0 : i32, i32
  }
  func.func @transform_2(%arg0: i32) -> (i32, i32) {
    %c0_i32 = arith.constant 0 : i32
    %c0_i32_0 = arith.constant 0 : i32
    %c0_i32_1 = arith.constant 0 : i32
    return %c0_i32, %c0_i32_0 : i32, i32
  }
  func.func @transform_3(%arg0: i32) -> (i32, i32) {
    %c0_i32 = arith.constant 0 : i32
    %c0_i32_0 = arith.constant 0 : i32
    %c0_i32_1 = arith.constant 0 : i32
    return %c0_i32, %c0_i32_0 : i32, i32
  }
  func.func @transform_4(%arg0: i32) -> (i32, i32) {
    %c0_i32 = arith.constant 0 : i32
    %c0_i32_0 = arith.constant 0 : i32
    %c0_i32_1 = arith.constant 0 : i32
    return %c0_i32, %c0_i32_0 : i32, i32
  }
  func.func @transform_5(%arg0: i32) -> (i32, i32) {
    %c0_i32 = arith.constant 0 : i32
    %c0_i32_0 = arith.constant 0 : i32
    %c0_i32_1 = arith.constant 0 : i32
    return %c0_i32, %c0_i32_0 : i32, i32
  }
  func.func @transform_6(%arg0: i32) -> (i32, i32) {
    %c0_i32 = arith.constant 0 : i32
    %c0_i32_0 = arith.constant 0 : i32
    %c0_i32_1 = arith.constant 0 : i32
    return %c0_i32, %c0_i32_0 : i32, i32
  }
  func.func @transform_7(%arg0: i32) -> (i32, i32) {
    %c0_i32 = arith.constant 0 : i32
    %c0_i32_0 = arith.constant 0 : i32
    %c0_i32_1 = arith.constant 0 : i32
    return %c0_i32, %c0_i32_0 : i32, i32
  }
  func.func @transform_8(%arg0: i32) -> (i32, i32) {
    %c0_i32 = arith.constant 0 : i32
    %c0_i32_0 = arith.constant 0 : i32
    %c0_i32_1 = arith.constant 0 : i32
    return %c0_i32, %c0_i32_0 : i32, i32
  }
  func.func @transform_9(%arg0: i32) -> (i32, i32) {
    %c0_i32 = arith.constant 0 : i32
    %c0_i32_0 = arith.constant 0 : i32
    %c0_i32_1 = arith.constant 0 : i32
    return %c0_i32, %c0_i32_0 : i32, i32
  }
  func.func @transform_10(%arg0: i32) -> (i32, i32) {
    %c0_i32 = arith.constant 0 : i32
    %c0_i32_0 = arith.constant 0 : i32
    %c0_i32_1 = arith.constant 0 : i32
    return %c0_i32, %c0_i32_0 : i32, i32
  }
  func.func @transform_11(%arg0: i32) -> (i32, i32) {
    %c0_i32 = arith.constant 0 : i32
    %c0_i32_0 = arith.constant 0 : i32
    %c0_i32_1 = arith.constant 0 : i32
    return %c0_i32, %c0_i32_0 : i32, i32
  }
  func.func @transform_12(%arg0: i32) -> (i32, i32) {
    %c0_i32 = arith.constant 0 : i32
    %c0_i32_0 = arith.constant 0 : i32
    %c0_i32_1 = arith.constant 0 : i32
    return %c0_i32, %c0_i32_0 : i32, i32
  }
  func.func @transform_13(%arg0: i32) -> (i32, i32, i32) {
    %c0_i32 = arith.constant 0 : i32
    %c0_i32_0 = arith.constant 0 : i32
    %c0_i32_1 = arith.constant 0 : i32
    return %arg0, %c0_i32, %c0_i32_0 : i32, i32, i32
  }
}

</mosaic_0001>

<llo_original>
// kernel: tpu_custom_call.1
$region0: #{tpu_custom_call.1}
  #allocation0 [shape = 'u32[]', space=smem, size = 0x4, offset = 0x4, fixed_abs, tag = 'smem constant byte address 0x4 - core index']
  #allocation1 [shape = 'u32[144,128]{1,0:T(1,128)}', space=vmem, size = 0x12000, scoped, tag = 'internal scratch']
  #allocation2 [shape = 'bf16[32,128]{1,0:T(16,128)(2,1)}', space=vmem, size = 0x2000, scoped, tag = 'scratch operand']
  %s0 = inlined_call_operand.hbm [shape: f32[4,16,128], index: 0, kind: input, shape index: {}]
  %s1 = inlined_call_operand.vmem [shape: f32[1,128], index: 1, kind: input, shape index: {}]
  %s2 = inlined_call_operand.vmem [shape: f32[1,128], index: 2, kind: input, shape index: {}]
  %s3 = inlined_call_operand.hbm [shape: bf16[128,384], index: 3, kind: input, shape index: {}]
  %s4 = inlined_call_operand.vmem [shape: f32[1,384], index: 4, kind: input, shape index: {}]
  %s5 = inlined_call_operand.hbm [shape: bf16[128,128], index: 5, kind: input, shape index: {}]
  %s6 = inlined_call_operand.vmem [shape: f32[1,128], index: 6, kind: input, shape index: {}]
  %s7 = inlined_call_operand.vmem [shape: f32[1,128], index: 7, kind: input, shape index: {}]
  %s8 = inlined_call_operand.vmem [shape: f32[1,128], index: 8, kind: input, shape index: {}]
  %s9 = inlined_call_operand.hbm [shape: bf16[128,256], index: 9, kind: input, shape index: {}]
  %s10 = inlined_call_operand.vmem [shape: f32[1,256], index: 10, kind: input, shape index: {}]
  %s11 = inlined_call_operand.hbm [shape: bf16[256,128], index: 11, kind: input, shape index: {}]
  %s12 = inlined_call_operand.vmem [shape: f32[1,128], index: 12, kind: input, shape index: {}]
  %s13 = inlined_call_operand.hbm [shape: f32[4,16,128], index: 13, kind: output, shape index: {}]
  %s14 = sld [smem:[#allocation0]]
  $region105: #{tpu_custom_call.1} parent=0
    _
  %s16 = ssub.s32 1, %s14
  %s17 = scalar_select 0, %s16, %s14
  $region1: #{tpu_custom_call.1} parent=0
    #allocation3 [shape = 'u8[32768]{0}', space=vmem, size = 0x8000, scoped, tag = 'input window, operand 0']
    #allocation4 [shape = 's32[2]{0}', space=sflag, size = 0x8, scoped, tag = 'scoped memory for tpu_custom_call.1']
    #allocation5 [shape = 's32[2]{0}', space=sflag, size = 0x8, scoped, tag = 'scoped memory for tpu_custom_call.1']
    #allocation6 [shape = 'u8[98304]{0}', space=vmem, size = 0x18000, scoped, tag = 'input window, operand 3, single buffered']
    #allocation7 [shape = 's32[1]{0}', space=sflag, size = 0x4, scoped, tag = 'scoped memory for tpu_custom_call.1']
    #allocation8 [shape = 'u8[32768]{0}', space=vmem, size = 0x8000, scoped, tag = 'input window, operand 5, single buffered']
    #allocation9 [shape = 'u8[65536]{0}', space=vmem, size = 0x10000, scoped, tag = 'input window, operand 9, single buffered']
    #allocation10 [shape = 's32[1]{0}', space=sflag, size = 0x4, scoped, tag = 'scoped memory for tpu_custom_call.1']
    #allocation11 [shape = 'u8[65536]{0}', space=vmem, size = 0x10000, scoped, tag = 'input window, operand 11, single buffered']
    #allocation12 [shape = 'u8[32768]{0}', space=vmem, size = 0x8000, scoped, tag = 'output window, operand 0']
    %18 = vsyncpa [#allocation4], 0
    %s19 = scalar_lea.sflag [#allocation4], 1
    %20 = vsyncpa %s19, 0
    %21 = vsyncpa [#allocation7], 0
    %22 = vsyncpa [#allocation10], 0
    %23 = vsyncpa [#allocation5], 0
    %s24 = scalar_lea.sflag [#allocation5], 1
    %25 = vsyncpa %s24, 0
    loop: start=0, step=1, limit=4
    $region2: #{tpu_custom_call.1} parent=1 // loop_pre_header
      _
    $region3: #{tpu_custom_call.1} parent=1 // loop_header
      %s27 = sphi 0, %s31
      %p28 = scmp.ge.s32.totalorder %s27, 4
      %s37 = sphi 0, %s39
      %s40 = sphi 0, %s37
      %s41 = sphi 0, %s40
      %s57 = sphi 0, %s41
      %s61 = sphi 0, %s61
      %s63 = sphi 0, %s61
      %s64 = sphi 0, %s63
      %s78 = sphi 0, %s64
      %s82 = sphi 0, %s82
      %s84 = sphi 0, %s82
      %s85 = sphi 0, %s84
      %s99 = sphi 0, %s85
      %s103 = sphi 0, %s103
      %s105 = sphi 0, %s103
      %s106 = sphi 0, %s105
      %s120 = sphi 0, %s106
      %s124 = sphi 0, %s124
      %s126 = sphi 0, %s124
      %s127 = sphi 0, %s126
      %s141 = sphi 0, %s127
      %s145 = sphi 0, %s145
      %s147 = sphi 0, %s145
      %s148 = sphi 0, %s147
      %s162 = sphi 0, %s148
      %s166 = sphi 0, %s166
      %s168 = sphi 0, %s166
      %s169 = sphi 0, %s168
      %s183 = sphi 0, %s169
      %s187 = sphi 0, %s187
      %s189 = sphi 0, %s187
      %s190 = sphi 0, %s189
      %s204 = sphi 0, %s190
      %s208 = sphi 0, %s208
      %s210 = sphi 0, %s208
      %s211 = sphi 0, %s210
      %s225 = sphi 0, %s211
      %s229 = sphi 0, %s229
      %s231 = sphi 0, %s229
      %s232 = sphi 0, %s231
      %s246 = sphi 0, %s232
      %s250 = sphi 0, %s250
      %s252 = sphi 0, %s250
      %s253 = sphi 0, %s252
      %s267 = sphi 0, %s253
      %s271 = sphi 0, %s271
      %s273 = sphi 0, %s271
      %s274 = sphi 0, %s273
      %s288 = sphi 0, %s274
      %s292 = sphi 0, %s292
      %s294 = sphi 0, %s292
      %s295 = sphi 0, %s294
      %s309 = sphi 0, %s295
      %s315 = sphi 0, %s317
      %s318 = sphi 0, %s315
      %s319 = sphi 0, %s318
      %s335 = sphi 0, %s319
    $region4: #{tpu_custom_call.1} parent=1 // loop_header_branch
      %30 = sbr.rel (%p28) target = $region8
    $region5: #{tpu_custom_call.1} parent=1 // loop_body
      %s32 = ssub.s32 %s27, 1
      %s33 = ssub.s32 %s27, 2
      %s34 = sadd.s32 %s27, 1
      %s35 = ssub.s32 %s27, %s34
      %p36 = scmp.eq.s32.totalorder %s35, 0
      %s38 = sadd.s32 %s37, 1
      %s39 = scalar_select %p36, %s37, %s38
      %p42 = pneg %p36
      %p43 = scmp.eq.s32.totalorder %s27, 1
      %p44 = por %p42, %p43
      %p45 = scmp.ne.s32.totalorder %s37, %s40
      %p46 = scmp.eq.s32.totalorder %s27, 0
      %p47 = por %p45, %p46
      %p48 = scmp.ne.s32.totalorder %s37, %s40
      %p49 = scmp.eq.s32.totalorder %s32, 1
      %p50 = por %p48, %p49
      %p51 = scmp.ne.s32.totalorder %s40, %s41
      %p52 = scmp.eq.s32.totalorder %s32, 0
      %p53 = por %p51, %p52
      %p54 = scmp.ne.s32.totalorder %s40, %s41
      %p55 = scmp.eq.s32.totalorder %s33, 1
      %p56 = por %p54, %p55
      %p58 = scmp.ne.s32.totalorder %s41, %s57
      %p59 = scmp.eq.s32.totalorder %s33, 0
      %p60 = por %p58, %p59
      %s62 = sadd.s32 %s61, 1
      %p65 = scmp.eq.s32.totalorder %s27, 1
      %p66 = scmp.ne.s32.totalorder %s61, %s63
      %p67 = scmp.eq.s32.totalorder %s27, 0
      %p68 = por %p66, %p67
      %p69 = scmp.ne.s32.totalorder %s61, %s63
      %p70 = scmp.eq.s32.totalorder %s32, 1
      %p71 = por %p69, %p70
      %p72 = scmp.ne.s32.totalorder %s63, %s64
      %p73 = scmp.eq.s32.totalorder %s32, 0
      %p74 = por %p72, %p73
      %p75 = scmp.ne.s32.totalorder %s63, %s64
      %p76 = scmp.eq.s32.totalorder %s33, 1
      %p77 = por %p75, %p76
      %p79 = scmp.ne.s32.totalorder %s64, %s78
      %p80 = scmp.eq.s32.totalorder %s33, 0
      %p81 = por %p79, %p80
      %s83 = sadd.s32 %s82, 1
      %p86 = scmp.eq.s32.totalorder %s27, 1
      %p87 = scmp.ne.s32.totalorder %s82, %s84
      %p88 = scmp.eq.s32.totalorder %s27, 0
      %p89 = por %p87, %p88
      %p90 = scmp.ne.s32.totalorder %s82, %s84
      %p91 = scmp.eq.s32.totalorder %s32, 1
      %p92 = por %p90, %p91
      %p93 = scmp.ne.s32.totalorder %s84, %s85
      %p94 = scmp.eq.s32.totalorder %s32, 0
      %p95 = por %p93, %p94
      %p96 = scmp.ne.s32.totalorder %s84, %s85
      %p97 = scmp.eq.s32.totalorder %s33, 1
      %p98 = por %p96, %p97
      %p100 = scmp.ne.s32.totalorder %s85, %s99
      %p101 = scmp.eq.s32.totalorder %s33, 0
      %p102 = por %p100, %p101
      %s104 = sadd.s32 %s103, 1
      %p107 = scmp.eq.s32.totalorder %s27, 1
      %p108 = scmp.ne.s32.totalorder %s103, %s105
      %p109 = scmp.eq.s32.totalorder %s27, 0
      %p110 = por %p108, %p109
      %p111 = scmp.ne.s32.totalorder %s103, %s105
      %p112 = scmp.eq.s32.totalorder %s32, 1
      %p113 = por %p111, %p112
      %p114 = scmp.ne.s32.totalorder %s105, %s106
      %p115 = scmp.eq.s32.totalorder %s32, 0
      %p116 = por %p114, %p115
      %p117 = scmp.ne.s32.totalorder %s105, %s106
      %p118 = scmp.eq.s32.totalorder %s33, 1
      %p119 = por %p117, %p118
      %p121 = scmp.ne.s32.totalorder %s106, %s120
      %p122 = scmp.eq.s32.totalorder %s33, 0
      %p123 = por %p121, %p122
      %s125 = sadd.s32 %s124, 1
      %p128 = scmp.eq.s32.totalorder %s27, 1
      %p129 = scmp.ne.s32.totalorder %s124, %s126
      %p130 = scmp.eq.s32.totalorder %s27, 0
      %p131 = por %p129, %p130
      %p132 = scmp.ne.s32.totalorder %s124, %s126
      %p133 = scmp.eq.s32.totalorder %s32, 1
      %p134 = por %p132, %p133
      %p135 = scmp.ne.s32.totalorder %s126, %s127
      %p136 = scmp.eq.s32.totalorder %s32, 0
      %p137 = por %p135, %p136
      %p138 = scmp.ne.s32.totalorder %s126, %s127
      %p139 = scmp.eq.s32.totalorder %s33, 1
      %p140 = por %p138, %p139
      %p142 = scmp.ne.s32.totalorder %s127, %s141
      %p143 = scmp.eq.s32.totalorder %s33, 0
      %p144 = por %p142, %p143
      %s146 = sadd.s32 %s145, 1
      %p149 = scmp.eq.s32.totalorder %s27, 1
      %p150 = scmp.ne.s32.totalorder %s145, %s147
      %p151 = scmp.eq.s32.totalorder %s27, 0
      %p152 = por %p150, %p151
      %p153 = scmp.ne.s32.totalorder %s145, %s147
      %p154 = scmp.eq.s32.totalorder %s32, 1
      %p155 = por %p153, %p154
      %p156 = scmp.ne.s32.totalorder %s147, %s148
      %p157 = scmp.eq.s32.totalorder %s32, 0
      %p158 = por %p156, %p157
      %p159 = scmp.ne.s32.totalorder %s147, %s148
      %p160 = scmp.eq.s32.totalorder %s33, 1
      %p161 = por %p159, %p160
      %p163 = scmp.ne.s32.totalorder %s148, %s162
      %p164 = scmp.eq.s32.totalorder %s33, 0
      %p165 = por %p163, %p164
      %s167 = sadd.s32 %s166, 1
      %p170 = scmp.eq.s32.totalorder %s27, 1
      %p171 = scmp.ne.s32.totalorder %s166, %s168
      %p172 = scmp.eq.s32.totalorder %s27, 0
      %p173 = por %p171, %p172
      %p174 = scmp.ne.s32.totalorder %s166, %s168
      %p175 = scmp.eq.s32.totalorder %s32, 1
      %p176 = por %p174, %p175
      %p177 = scmp.ne.s32.totalorder %s168, %s169
      %p178 = scmp.eq.s32.totalorder %s32, 0
      %p179 = por %p177, %p178
      %p180 = scmp.ne.s32.totalorder %s168, %s169
      %p181 = scmp.eq.s32.totalorder %s33, 1
      %p182 = por %p180, %p181
      %p184 = scmp.ne.s32.totalorder %s169, %s183
      %p185 = scmp.eq.s32.totalorder %s33, 0
      %p186 = por %p184, %p185
      %s188 = sadd.s32 %s187, 1
      %p191 = scmp.eq.s32.totalorder %s27, 1
      %p192 = scmp.ne.s32.totalorder %s187, %s189
      %p193 = scmp.eq.s32.totalorder %s27, 0
      %p194 = por %p192, %p193
      %p195 = scmp.ne.s32.totalorder %s187, %s189
      %p196 = scmp.eq.s32.totalorder %s32, 1
      %p197 = por %p195, %p196
      %p198 = scmp.ne.s32.totalorder %s189, %s190
      %p199 = scmp.eq.s32.totalorder %s32, 0
      %p200 = por %p198, %p199
      %p201 = scmp.ne.s32.totalorder %s189, %s190
      %p202 = scmp.eq.s32.totalorder %s33, 1
      %p203 = por %p201, %p202
      %p205 = scmp.ne.s32.totalorder %s190, %s204
      %p206 = scmp.eq.s32.totalorder %s33, 0
      %p207 = por %p205, %p206
      %s209 = sadd.s32 %s208, 1
      %p212 = scmp.eq.s32.totalorder %s27, 1
      %p213 = scmp.ne.s32.totalorder %s208, %s210
      %p214 = scmp.eq.s32.totalorder %s27, 0
      %p215 = por %p213, %p214
      %p216 = scmp.ne.s32.totalorder %s208, %s210
      %p217 = scmp.eq.s32.totalorder %s32, 1
      %p218 = por %p216, %p217
      %p219 = scmp.ne.s32.totalorder %s210, %s211
      %p220 = scmp.eq.s32.totalorder %s32, 0
      %p221 = por %p219, %p220
      %p222 = scmp.ne.s32.totalorder %s210, %s211
      %p223 = scmp.eq.s32.totalorder %s33, 1
      %p224 = por %p222, %p223
      %p226 = scmp.ne.s32.totalorder %s211, %s225
      %p227 = scmp.eq.s32.totalorder %s33, 0
      %p228 = por %p226, %p227
      %s230 = sadd.s32 %s229, 1
      %p233 = scmp.eq.s32.totalorder %s27, 1
      %p234 = scmp.ne.s32.totalorder %s229, %s231
      %p235 = scmp.eq.s32.totalorder %s27, 0
      %p236 = por %p234, %p235
      %p237 = scmp.ne.s32.totalorder %s229, %s231
      %p238 = scmp.eq.s32.totalorder %s32, 1
      %p239 = por %p237, %p238
      %p240 = scmp.ne.s32.totalorder %s231, %s232
      %p241 = scmp.eq.s32.totalorder %s32, 0
      %p242 = por %p240, %p241
      %p243 = scmp.ne.s32.totalorder %s231, %s232
      %p244 = scmp.eq.s32.totalorder %s33, 1
      %p245 = por %p243, %p244
      %p247 = scmp.ne.s32.totalorder %s232, %s246
      %p248 = scmp.eq.s32.totalorder %s33, 0
      %p249 = por %p247, %p248
      %s251 = sadd.s32 %s250, 1
      %p254 = scmp.eq.s32.totalorder %s27, 1
      %p255 = scmp.ne.s32.totalorder %s250, %s252
      %p256 = scmp.eq.s32.totalorder %s27, 0
      %p257 = por %p255, %p256
      %p258 = scmp.ne.s32.totalorder %s250, %s252
      %p259 = scmp.eq.s32.totalorder %s32, 1
      %p260 = por %p258, %p259
      %p261 = scmp.ne.s32.totalorder %s252, %s253
      %p262 = scmp.eq.s32.totalorder %s32, 0
      %p263 = por %p261, %p262
      %p264 = scmp.ne.s32.totalorder %s252, %s253
      %p265 = scmp.eq.s32.totalorder %s33, 1
      %p266 = por %p264, %p265
      %p268 = scmp.ne.s32.totalorder %s253, %s267
      %p269 = scmp.eq.s32.totalorder %s33, 0
      %p270 = por %p268, %p269
      %s272 = sadd.s32 %s271, 1
      %p275 = scmp.eq.s32.totalorder %s27, 1
      %p276 = scmp.ne.s32.totalorder %s271, %s273
      %p277 = scmp.eq.s32.totalorder %s27, 0
      %p278 = por %p276, %p277
      %p279 = scmp.ne.s32.totalorder %s271, %s273
      %p280 = scmp.eq.s32.totalorder %s32, 1
      %p281 = por %p279, %p280
      %p282 = scmp.ne.s32.totalorder %s273, %s274
      %p283 = scmp.eq.s32.totalorder %s32, 0
      %p284 = por %p282, %p283
      %p285 = scmp.ne.s32.totalorder %s273, %s274
      %p286 = scmp.eq.s32.totalorder %s33, 1
      %p287 = por %p285, %p286
      %p289 = scmp.ne.s32.totalorder %s274, %s288
      %p290 = scmp.eq.s32.totalorder %s33, 0
      %p291 = por %p289, %p290
      %s293 = sadd.s32 %s292, 1
      %p296 = scmp.eq.s32.totalorder %s27, 1
      %p297 = scmp.ne.s32.totalorder %s292, %s294
      %p298 = scmp.eq.s32.totalorder %s27, 0
      %p299 = por %p297, %p298
      %p300 = scmp.ne.s32.totalorder %s292, %s294
      %p301 = scmp.eq.s32.totalorder %s32, 1
      %p302 = por %p300, %p301
      %p303 = scmp.ne.s32.totalorder %s294, %s295
      %p304 = scmp.eq.s32.totalorder %s32, 0
      %p305 = por %p303, %p304
      %p306 = scmp.ne.s32.totalorder %s294, %s295
      %p307 = scmp.eq.s32.totalorder %s33, 1
      %p308 = por %p306, %p307
      %p310 = scmp.ne.s32.totalorder %s295, %s309
      %p311 = scmp.eq.s32.totalorder %s33, 0
      %p312 = por %p310, %p311
      %s313 = ssub.s32 %s27, %s34
      %p314 = scmp.eq.s32.totalorder %s313, 0
      %s316 = sadd.s32 %s315, 1
      %s317 = scalar_select %p314, %s315, %s316
      %p320 = pneg %p314
      %p321 = scmp.eq.s32.totalorder %s27, 1
      %p322 = por %p320, %p321
      %p323 = scmp.ne.s32.totalorder %s315, %s318
      %p324 = scmp.eq.s32.totalorder %s27, 0
      %p325 = por %p323, %p324
      %p326 = scmp.ne.s32.totalorder %s315, %s318
      %p327 = scmp.eq.s32.totalorder %s32, 1
      %p328 = por %p326, %p327
      %p329 = scmp.ne.s32.totalorder %s318, %s319
      %p330 = scmp.eq.s32.totalorder %s32, 0
      %p331 = por %p329, %p330
      %p332 = scmp.ne.s32.totalorder %s318, %s319
      %p333 = scmp.eq.s32.totalorder %s33, 1
      %p334 = por %p332, %p333
      %p336 = scmp.ne.s32.totalorder %s319, %s335
      %p337 = scmp.eq.s32.totalorder %s33, 0
      %p338 = por %p336, %p337
      %p339 = scmp.le.s32.totalorder 1, %s27
      %p340 = scmp.lt.s32.totalorder %s27, 3
      %p341 = pnand %p339, %p340
      %p342 = pneg %p341
      // Predicated region
      $region9: #{tpu_custom_call.1} parent=5 // pred_check
        _
      $region10: #{tpu_custom_call.1} parent=5 // pred_check_branch
        %344 = sbr.rel (%p341) target = $region12
      $region11: #{tpu_custom_call.1} parent=5 // pred_region
        %s345 = ssub.s32 %s27, 1
        // Predicated region
        $region13: #{tpu_custom_call.1} parent=11 // pred_check
          %p346 = pneg %p74
        $region14: #{tpu_custom_call.1} parent=11 // pred_check_branch
          %348 = sbr.rel (%p346) target = $region16
        $region15: #{tpu_custom_call.1} parent=11 // pred_region
          _
        $region16: #{tpu_custom_call.1} parent=11 // pred_fallthru
          _
        // Predicated region
        $region17: #{tpu_custom_call.1} parent=11 // pred_check
          %p349 = pneg %p95
        $region18: #{tpu_custom_call.1} parent=11 // pred_check_branch
          %351 = sbr.rel (%p349) target = $region20
        $region19: #{tpu_custom_call.1} parent=11 // pred_region
          _
        $region20: #{tpu_custom_call.1} parent=11 // pred_fallthru
          _
        // Predicated region
        $region21: #{tpu_custom_call.1} parent=11 // pred_check
          %p352 = pneg %p116
        $region22: #{tpu_custom_call.1} parent=11 // pred_check_branch
          %354 = sbr.rel (%p352) target = $region24
        $region23: #{tpu_custom_call.1} parent=11 // pred_region
          %s356 = ssub.s32 3072, 3072
          %357 = vsyncadd [#allocation7], %s356
          %s358 = sshll.u32 [#allocation6], 4
          %s359 = int_to_ptr.vmem [resolvable:$true] %s358
          %364 = dma.hbm_to_vmem [thread:$0]  %s3, 3072, %s359, [#allocation7], 192, 192, 12
        $region24: #{tpu_custom_call.1} parent=11 // pred_fallthru
          _
        // Predicated region
        $region25: #{tpu_custom_call.1} parent=11 // pred_check
          %p365 = pneg %p137
        $region26: #{tpu_custom_call.1} parent=11 // pred_check_branch
          %367 = sbr.rel (%p365) target = $region28
        $region27: #{tpu_custom_call.1} parent=11 // pred_region
          _
        $region28: #{tpu_custom_call.1} parent=11 // pred_fallthru
          _
        // Predicated region
        $region29: #{tpu_custom_call.1} parent=11 // pred_check
          %p368 = pneg %p158
        $region30: #{tpu_custom_call.1} parent=11 // pred_check_branch
          %370 = sbr.rel (%p368) target = $region32
        $region31: #{tpu_custom_call.1} parent=11 // pred_region
          %s372 = ssub.s32 1024, 1024
          %373 = vsyncadd [#allocation7], %s372
          %s374 = sshll.u32 [#allocation8], 4
          %s375 = int_to_ptr.vmem [resolvable:$true] %s374
          %380 = dma.hbm_to_vmem [thread:$0]  %s5, 1024, %s375, [#allocation7], 64, 64, 4
        $region32: #{tpu_custom_call.1} parent=11 // pred_fallthru
          _
        // Predicated region
        $region33: #{tpu_custom_call.1} parent=11 // pred_check
          %p381 = pneg %p179
        $region34: #{tpu_custom_call.1} parent=11 // pred_check_branch
          %383 = sbr.rel (%p381) target = $region36
        $region35: #{tpu_custom_call.1} parent=11 // pred_region
          _
        $region36: #{tpu_custom_call.1} parent=11 // pred_fallthru
          _
        // Predicated region
        $region37: #{tpu_custom_call.1} parent=11 // pred_check
          %p384 = pneg %p200
        $region38: #{tpu_custom_call.1} parent=11 // pred_check_branch
          %386 = sbr.rel (%p384) target = $region40
        $region39: #{tpu_custom_call.1} parent=11 // pred_region
          _
        $region40: #{tpu_custom_call.1} parent=11 // pred_fallthru
          _
        // Predicated region
        $region41: #{tpu_custom_call.1} parent=11 // pred_check
          %p387 = pneg %p221
        $region42: #{tpu_custom_call.1} parent=11 // pred_check_branch
          %389 = sbr.rel (%p387) target = $region44
        $region43: #{tpu_custom_call.1} parent=11 // pred_region
          _
        $region44: #{tpu_custom_call.1} parent=11 // pred_fallthru
          _
        // Predicated region
        $region45: #{tpu_custom_call.1} parent=11 // pred_check
          %p390 = pneg %p242
        $region46: #{tpu_custom_call.1} parent=11 // pred_check_branch
          %392 = sbr.rel (%p390) target = $region48
        $region47: #{tpu_custom_call.1} parent=11 // pred_region
          %s394 = ssub.s32 2048, 2048
          %395 = vsyncadd [#allocation10], %s394
          %s396 = sshll.u32 [#allocation9], 4
          %s397 = int_to_ptr.vmem [resolvable:$true] %s396
          %402 = dma.hbm_to_vmem [thread:$0]  %s9, 2048, %s397, [#allocation10], 128, 128, 8
        $region48: #{tpu_custom_call.1} parent=11 // pred_fallthru
          _
        // Predicated region
        $region49: #{tpu_custom_call.1} parent=11 // pred_check
          %p403 = pneg %p263
        $region50: #{tpu_custom_call.1} parent=11 // pred_check_branch
          %405 = sbr.rel (%p403) target = $region52
        $region51: #{tpu_custom_call.1} parent=11 // pred_region
          _
        $region52: #{tpu_custom_call.1} parent=11 // pred_fallthru
          _
        // Predicated region
        $region53: #{tpu_custom_call.1} parent=11 // pred_check
          %p406 = pneg %p284
        $region54: #{tpu_custom_call.1} parent=11 // pred_check_branch
          %408 = sbr.rel (%p406) target = $region56
        $region55: #{tpu_custom_call.1} parent=11 // pred_region
          %s410 = ssub.s32 2048, 2048
          %411 = vsyncadd [#allocation10], %s410
          %s412 = sshll.u32 [#allocation11], 4
          %s413 = int_to_ptr.vmem [resolvable:$true] %s412
          %418 = dma.hbm_to_vmem [thread:$0]  %s11, 2048, %s413, [#allocation10], 64, 64, 4
        $region56: #{tpu_custom_call.1} parent=11 // pred_fallthru
          _
        // Predicated region
        $region57: #{tpu_custom_call.1} parent=11 // pred_check
          %p419 = pneg %p305
        $region58: #{tpu_custom_call.1} parent=11 // pred_check_branch
          %421 = sbr.rel (%p419) target = $region60
        $region59: #{tpu_custom_call.1} parent=11 // pred_region
          _
        $region60: #{tpu_custom_call.1} parent=11 // pred_fallthru
          _
      $region12: #{tpu_custom_call.1} parent=5 // pred_fallthru
        _
      %p422 = scmp.lt.s32.totalorder %s27, 2
      // Predicated region
      $region61: #{tpu_custom_call.1} parent=5 // pred_check
        %p423 = pneg %p422
      $region62: #{tpu_custom_call.1} parent=5 // pred_check_branch
        %425 = sbr.rel (%p423) target = $region64
      $region63: #{tpu_custom_call.1} parent=5 // pred_region
        // Predicated region
        $region65: #{tpu_custom_call.1} parent=63 // pred_check
          %p426 = pneg %p47
        $region66: #{tpu_custom_call.1} parent=63 // pred_check_branch
          %428 = sbr.rel (%p426) target = $region68
        $region67: #{tpu_custom_call.1} parent=63 // pred_region
          %s429 = sand.u32 %s37, 1
          %s430 = scalar_lea.sflag [#allocation4], %s429
          %s431 = sand.u32 %s37, 1
          %s432 = smul.addr %s431, 32
          %s433 = scalar_lea.vmem [#allocation3], %s432
          %s434 = smul.u32 2, %s27
          %s436 = ssub.s32 512, 512
          %437 = vsyncadd %s430, %s436
          %s438 = smul.addr %s434, 2
          %s439 = smul.addr %s438, 128
          %s440 = scalar_lea.hbm %s0, %s439
          %s441 = sshll.u32 %s433, 4
          %s442 = int_to_ptr.vmem [resolvable:$true] %s441
          %447 = dma.hbm_to_vmem [thread:$0]  %s440, 512, %s442, %s430, 128, 128, 8
        $region68: #{tpu_custom_call.1} parent=63 // pred_fallthru
          _
      $region64: #{tpu_custom_call.1} parent=5 // pred_fallthru
        _
      %p448 = scmp.le.s32.totalorder 1, %s27
      %p449 = scmp.lt.s32.totalorder %s27, 3
      %p450 = pnand %p448, %p449
      %p451 = pneg %p450
      // Predicated region
      $region69: #{tpu_custom_call.1} parent=5 // pred_check
        _
      $region70: #{tpu_custom_call.1} parent=5 // pred_check_branch
        %453 = sbr.rel (%p450) target = $region72
      $region71: #{tpu_custom_call.1} parent=5 // pred_region
        %s454 = ssub.s32 %s27, 1
        %s455 = sand.u32 %s40, 1
        %s456 = scalar_lea.sflag [#allocation4], %s455
        %s457 = sand.u32 %s40, 1
        %s458 = smul.addr %s457, 32
        %s459 = scalar_lea.vmem [#allocation3], %s458
        // Predicated region
        $region73: #{tpu_custom_call.1} parent=71 // pred_check
          %p460 = pneg %p53
        $region74: #{tpu_custom_call.1} parent=71 // pred_check_branch
          %462 = sbr.rel (%p460) target = $region76
        $region75: #{tpu_custom_call.1} parent=71 // pred_region
          %463 = dma.done %s456, 512
        $region76: #{tpu_custom_call.1} parent=71 // pred_fallthru
          _
        // Predicated region
        $region77: #{tpu_custom_call.1} parent=71 // pred_check
          %p464 = pneg %p116
        $region78: #{tpu_custom_call.1} parent=71 // pred_check_branch
          %466 = sbr.rel (%p464) target = $region80
        $region79: #{tpu_custom_call.1} parent=71 // pred_region
          %467 = dma.done [#allocation7], 3072
        $region80: #{tpu_custom_call.1} parent=71 // pred_fallthru
          _
        // Predicated region
        $region81: #{tpu_custom_call.1} parent=71 // pred_check
          %p468 = pneg %p158
        $region82: #{tpu_custom_call.1} parent=71 // pred_check_branch
          %470 = sbr.rel (%p468) target = $region84
        $region83: #{tpu_custom_call.1} parent=71 // pred_region
          %471 = dma.done [#allocation7], 1024
        $region84: #{tpu_custom_call.1} parent=71 // pred_fallthru
          _
        // Predicated region
        $region85: #{tpu_custom_call.1} parent=71 // pred_check
          %p472 = pneg %p242
        $region86: #{tpu_custom_call.1} parent=71 // pred_check_branch
          %474 = sbr.rel (%p472) target = $region88
        $region87: #{tpu_custom_call.1} parent=71 // pred_region
          %475 = dma.done [#allocation10], 2048
        $region88: #{tpu_custom_call.1} parent=71 // pred_fallthru
          _
        // Predicated region
        $region89: #{tpu_custom_call.1} parent=71 // pred_check
          %p476 = pneg %p284
        $region90: #{tpu_custom_call.1} parent=71 // pred_check_branch
          %478 = sbr.rel (%p476) target = $region92
        $region91: #{tpu_custom_call.1} parent=71 // pred_region
          %479 = dma.done [#allocation10], 2048
        $region92: #{tpu_custom_call.1} parent=71 // pred_fallthru
          _
        %s480 = sand.u32 %s40, 1
        %s481 = scalar_lea.sflag [#allocation4], %s480
        %s482 = sand.u32 %s40, 1
        %s483 = smul.addr %s482, 32
        %s484 = scalar_lea.vmem [#allocation3], %s483
        %p485 = pneg %p53
        %p486 = pneg %p50
        %p487 = pneg %p74
        %p488 = pneg %p71
        %p489 = pneg %p95
        %p490 = pneg %p92
        %p491 = pneg %p116
        %p492 = pneg %p113
        %p493 = pneg %p137
        %p494 = pneg %p134
        %p495 = pneg %p158
        %p496 = pneg %p155
        %p497 = pneg %p179
        %p498 = pneg %p176
        %p499 = pneg %p200
        %p500 = pneg %p197
        %p501 = pneg %p221
        %p502 = pneg %p218
        %p503 = pneg %p242
        %p504 = pneg %p239
        %p505 = pneg %p263
        %p506 = pneg %p260
        %p507 = pneg %p284
        %p508 = pneg %p281
        %p509 = pneg %p305
        %p510 = pneg %p302
        %p511 = pneg %p331
        %p512 = pneg %p328
        %s513 = sand.u32 %s318, 1
        %s514 = scalar_lea.sflag [#allocation5], %s513
        %s515 = sand.u32 %s318, 1
        %s516 = smul.addr %s515, 32
        %s517 = scalar_lea.vmem [#allocation12], %s516
        %s518 = smul.u32 2, %s32
        %s519 = smul.u32 2, %s32
        %v521 = vld [vmem:[%s459] sm:$0xff]
        %v522 = vld [vmem:[%s459 + $0x8] sm:$0xff]
        %v523 = vld [vmem:[%s459 + $0x10] sm:$0xff]
        %v524 = vld [vmem:[%s459 + $0x18] sm:$0xff]
        %v525 = vld [vmem:[%s1] sm:$0x1]
        %v526 = vld [vmem:[%s2] sm:$0x1]
        %527 = vadd.xlane.f32.xlu0 %v521
        %v528 = vpop.xlane.xlu0 %527
        %529 = vadd.xlane.f32.xlu0 %v522
        %v530 = vpop.xlane.xlu0 %529
        %531 = vadd.xlane.f32.xlu0 %v523
        %v532 = vpop.xlane.xlu0 %531
        %533 = vadd.xlane.f32.xlu0 %v524
        %v534 = vpop.xlane.xlu0 %533
        %v535 = vrcp.pop 128.0
        %v536 = vmul.f32 %v528, %v535
        %v537 = vmul.f32 %v530, %v535
        %v538 = vmul.f32 %v532, %v535
        %v539 = vmul.f32 %v534, %v535
        %v540 = vsub.f32 %v521, %v536
        %v541 = vsub.f32 %v522, %v537
        %v542 = vsub.f32 %v523, %v538
        %v543 = vsub.f32 %v524, %v539
        %v544 = vmul.f32 %v540, %v540
        %v545 = vmul.f32 %v541, %v541
        %v546 = vmul.f32 %v542, %v542
        %v547 = vmul.f32 %v543, %v543
        %548 = vadd.xlane.f32.xlu0 %v544
        %v549 = vpop.xlane.xlu0 %548
        %550 = vadd.xlane.f32.xlu0 %v545
        %v551 = vpop.xlane.xlu0 %550
        %552 = vadd.xlane.f32.xlu0 %v546
        %v553 = vpop.xlane.xlu0 %552
        %554 = vadd.xlane.f32.xlu0 %v547
        %v555 = vpop.xlane.xlu0 %554
        %v556 = vmul.f32 %v549, %v535
        %v557 = vmul.f32 %v551, %v535
        %v558 = vmul.f32 %v553, %v535
        %v559 = vmul.f32 %v555, %v535
        %v560 = vadd.f32 %v556, 1e-05
        %v561 = vadd.f32 %v557, 1e-05
        %v562 = vadd.f32 %v558, 1e-05
        %v563 = vadd.f32 %v559, 1e-05
        %v564 = vrsqrt.pop %v560
        %v565 = vrsqrt.pop %v561
        %v566 = vrsqrt.pop %v562
        %v567 = vrsqrt.pop %v563
        %v568 = vmul.f32 %v540, %v564
        %v569 = vmul.f32 %v541, %v565
        %v570 = vmul.f32 %v542, %v566
        %v571 = vmul.f32 %v543, %v567
        %v573 = vlaneseq
        %v574 = vshrl.u32 %v573, 7
        %v575 = vsub.s32 0, %v574
        %v576 = vrot.slane %v525, %v575
        %v578 = vmul.f32 %v568, %v576
        %v579 = vmul.f32 %v569, %v576
        %v580 = vmul.f32 %v570, %v576
        %v581 = vmul.f32 %v571, %v576
        %v583 = vlaneseq
        %v584 = vshrl.u32 %v583, 7
        %v585 = vsub.s32 0, %v584
        %v586 = vrot.slane %v526, %v585
        %v588 = vadd.f32 %v578, %v586
        %v589 = vadd.f32 %v579, %v586
        %v590 = vadd.f32 %v580, %v586
        %v591 = vadd.f32 %v581, %v586
        %v592 = vpack.c.bf16 %v589, %v588
        %v593 = vpack.c.bf16 %v591, %v590
        %v594 = vld [vmem:[#allocation6] sm:$0xff]
        %v595 = vld [vmem:[#allocation6 + $0x8] sm:$0xf]
        %v596 = vld [vmem:[#allocation6 + $0xc] sm:$0xff]
        %v597 = vld [vmem:[#allocation6 + $0x14] sm:$0xf]
        %v598 = vld [vmem:[#allocation6 + $0x18] sm:$0xff]
        %v599 = vld [vmem:[#allocation6 + $0x20] sm:$0xf]
        %v600 = vld [vmem:[#allocation6 + $0x24] sm:$0xff]
        %v601 = vld [vmem:[#allocation6 + $0x2c] sm:$0xf]
        %v602 = vld [vmem:[#allocation6 + $0x30] sm:$0xff]
        %v603 = vld [vmem:[#allocation6 + $0x38] sm:$0xf]
        %v604 = vld [vmem:[#allocation6 + $0x3c] sm:$0xff]
        %v605 = vld [vmem:[#allocation6 + $0x44] sm:$0xf]
        %v606 = vld [vmem:[#allocation6 + $0x48] sm:$0xff]
        %v607 = vld [vmem:[#allocation6 + $0x50] sm:$0xf]
        %v608 = vld [vmem:[#allocation6 + $0x54] sm:$0xff]
        %v609 = vld [vmem:[#allocation6 + $0x5c] sm:$0xf]
        %v610 = vld [vmem:[#allocation6 + $0x60] sm:$0xff]
        %v611 = vld [vmem:[#allocation6 + $0x68] sm:$0xf]
        %v612 = vld [vmem:[#allocation6 + $0x6c] sm:$0xff]
        %v613 = vld [vmem:[#allocation6 + $0x74] sm:$0xf]
        %v614 = vld [vmem:[#allocation6 + $0x78] sm:$0xff]
        %v615 = vld [vmem:[#allocation6 + $0x80] sm:$0xf]
        %v616 = vld [vmem:[#allocation6 + $0x84] sm:$0xff]
        %v617 = vld [vmem:[#allocation6 + $0x8c] sm:$0xf]
        %v618 = vld [vmem:[#allocation6 + $0x90] sm:$0xff]
        %v619 = vld [vmem:[#allocation6 + $0x98] sm:$0xf]
        %v620 = vld [vmem:[#allocation6 + $0x9c] sm:$0xff]
        %v621 = vld [vmem:[#allocation6 + $0xa4] sm:$0xf]
        %v622 = vld [vmem:[#allocation6 + $0xa8] sm:$0xff]
        %v623 = vld [vmem:[#allocation6 + $0xb0] sm:$0xf]
        %v624 = vld [vmem:[#allocation6 + $0xb4] sm:$0xff]
        %v625 = vld [vmem:[#allocation6 + $0xbc] sm:$0xf]
        %v626 = vld [vmem:[%s4] sm:$0x7]
        %v628 = vlaneseq
        %v629 = vshrl.u32 %v628, 7
        %v630 = vsub.s32 0, %v629
        %v631 = vrot.slane %v626, %v630
        %v632 = vlaneseq
        %v633 = vshrl.u32 %v632, 7
        %v634 = vsub.s32 1, %v633
        %v635 = vrot.slane %v626, %v634
        %v636 = vlaneseq
        %v637 = vshrl.u32 %v636, 7
        %v638 = vsub.s32 2, %v637
        %v639 = vrot.slane %v626, %v638
        %v675 = vunpack.c.l.b16 %v594
        %v676 = vunpack.c.h.b16 %v594
        %v677 = vunpack.c.l.b16 %v595
        %v678 = vunpack.c.l.b16 %v596
        %v679 = vunpack.c.h.b16 %v596
        %v680 = vunpack.c.l.b16 %v597
        %v681 = vunpack.c.l.b16 %v598
        %v682 = vunpack.c.h.b16 %v598
        %v683 = vunpack.c.l.b16 %v599
        %v684 = vunpack.c.l.b16 %v600
        %v685 = vunpack.c.h.b16 %v600
        %v686 = vunpack.c.l.b16 %v601
        %v687 = vunpack.c.l.b16 %v602
        %v688 = vunpack.c.h.b16 %v602
        %v689 = vunpack.c.l.b16 %v603
        %v690 = vunpack.c.l.b16 %v604
        %v691 = vunpack.c.h.b16 %v604
        %v692 = vunpack.c.l.b16 %v605
        %v693 = vunpack.c.l.b16 %v606
        %v694 = vunpack.c.h.b16 %v606
        %v695 = vunpack.c.l.b16 %v607
        %v696 = vunpack.c.l.b16 %v608
        %v697 = vunpack.c.h.b16 %v608
        %v698 = vunpack.c.l.b16 %v609
        %v699 = vunpack.c.l.b16 %v610
        %v700 = vunpack.c.h.b16 %v610
        %v701 = vunpack.c.l.b16 %v611
        %v702 = vunpack.c.l.b16 %v612
        %v703 = vunpack.c.h.b16 %v612
        %v704 = vunpack.c.l.b16 %v613
        %v705 = vunpack.c.l.b16 %v614
        %v706 = vunpack.c.h.b16 %v614
        %v707 = vunpack.c.l.b16 %v615
        %v708 = vunpack.c.l.b16 %v616
        %v709 = vunpack.c.h.b16 %v616
        %v710 = vunpack.c.l.b16 %v617
        %v711 = vunpack.c.l.b16 %v618
        %v712 = vunpack.c.h.b16 %v618
        %v713 = vunpack.c.l.b16 %v619
        %v714 = vunpack.c.l.b16 %v620
        %v715 = vunpack.c.h.b16 %v620
        %v716 = vunpack.c.l.b16 %v621
        %v717 = vunpack.c.l.b16 %v622
        %v718 = vunpack.c.h.b16 %v622
        %v719 = vunpack.c.l.b16 %v623
        %v720 = vunpack.c.l.b16 %v624
        %v721 = vunpack.c.h.b16 %v624
        %v722 = vunpack.c.l.b16 %v625
        %v723 = vpack.c.b16 %v678, %v675
        %v724 = vpack.c.b16 %v679, %v676
        %v725 = vpack.c.b16 %v680, %v677
        %v726 = vpack.c.b16 %v684, %v681
        %v727 = vpack.c.b16 %v685, %v682
        %v728 = vpack.c.b16 %v686, %v683
        %v729 = vpack.c.b16 %v690, %v687
        %v730 = vpack.c.b16 %v691, %v688
        %v731 = vpack.c.b16 %v692, %v689
        %v732 = vpack.c.b16 %v696, %v693
        %v733 = vpack.c.b16 %v697, %v694
        %v734 = vpack.c.b16 %v698, %v695
        %v735 = vpack.c.b16 %v702, %v699
        %v736 = vpack.c.b16 %v703, %v700
        %v737 = vpack.c.b16 %v704, %v701
        %v738 = vpack.c.b16 %v708, %v705
        %v739 = vpack.c.b16 %v709, %v706
        %v740 = vpack.c.b16 %v710, %v707
        %v741 = vpack.c.b16 %v714, %v711
        %v742 = vpack.c.b16 %v715, %v712
        %v743 = vpack.c.b16 %v716, %v713
        %v744 = vpack.c.b16 %v720, %v717
        %v745 = vpack.c.b16 %v721, %v718
        %v746 = vpack.c.b16 %v722, %v719
        %771 = vmatprep.subr.bf16.mxu0 %v724
        %772 = vmatpush1.bf16.msra.mxu0 %v723
        %773 = vmatprep.subr.bf16.mxu0 %v727
        %774 = vmatpush1.bf16.msra.mxu0 %v726
        %775 = vmatprep.subr.bf16.mxu0 %v730
        %776 = vmatpush1.bf16.msra.mxu0 %v729
        %777 = vmatprep.subr.bf16.mxu0 %v733
        %778 = vmatpush1.bf16.msra.mxu0 %v732
        %779 = vmatprep.subr.bf16.mxu0 %v736
        %780 = vmatpush1.bf16.msra.mxu0 %v735
        %781 = vmatprep.subr.bf16.mxu0 %v739
        %782 = vmatpush1.bf16.msra.mxu0 %v738
        %783 = vmatprep.subr.bf16.mxu0 %v742
        %784 = vmatpush1.bf16.msra.mxu0 %v741
        %785 = vmatprep.subr.bf16.mxu0 %v745
        %786 = vmatpush1.bf16.msra.mxu0 %v744
        %787 = vmatprep.subr.bf16.mxu0 0
        %788 = vmatpush1.bf16.msra.mxu0 0
        %789 = vmatprep.subr.bf16.mxu0 0
        %790 = vmatpush1.bf16.msra.mxu0 0
        %791 = vmatprep.subr.bf16.mxu0 0
        %792 = vmatpush1.bf16.msra.mxu0 0
        %793 = vmatprep.subr.bf16.mxu0 0
        %794 = vmatpush1.bf16.msra.mxu0 0
        %795 = vmatprep.subr.bf16.mxu0 0
        %796 = vmatpush1.bf16.msra.mxu0 0
        %797 = vmatprep.subr.bf16.mxu0 0
        %798 = vmatpush1.bf16.msra.mxu0 0
        %799 = vmatprep.subr.bf16.mxu0 0
        %800 = vmatpush1.bf16.msra.mxu0 0
        %801 = vmatprep.subr.bf16.mxu0 0
        %802 = vmatpush1.bf16.msra.mxu0 0
        %803 = vmatprep.mubr.bf16.mxu0 0
        %804 = vmatmul.mubr.bf16.gmra.mrb[0].mxu0 %v592
        %v805 = vpop.f32.mrb[0].mxu0
        %v806 = vadd.f32 %v631, %v805
        %v807 = vpop.f32.mrb[0].mxu0
        %v808 = vadd.f32 %v635, %v807
        %v809 = vpop.f32.mrb[0].mxu0
        %v810 = vadd.f32 %v631, %v809
        %v811 = vpop.f32.mrb[0].mxu0
        %v812 = vadd.f32 %v635, %v811
        %813 = vmatprep.mubr.bf16.mxu0 0
        %814 = vmatmul.mubr.bf16.gmra.mrb[0].mxu0 %v593
        %v815 = vpop.f32.mrb[0].mxu0
        %v816 = vadd.f32 %v631, %v815
        %v817 = vpop.f32.mrb[0].mxu0
        %v818 = vadd.f32 %v635, %v817
        %v819 = vpop.f32.mrb[0].mxu0
        %v820 = vadd.f32 %v631, %v819
        %v821 = vpop.f32.mrb[0].mxu0
        %v822 = vadd.f32 %v635, %v821
        %823 = vdwg.mxu0
        %824 = vmatprep.subr.bf16.mxu0 0
        %825 = vmatpush1.bf16.msra.mxu0 %v725
        %826 = vmatprep.subr.bf16.mxu0 0
        %827 = vmatpush1.bf16.msra.mxu0 %v728
        %828 = vmatprep.subr.bf16.mxu0 0
        %829 = vmatpush1.bf16.msra.mxu0 %v731
        %830 = vmatprep.subr.bf16.mxu0 0
        %831 = vmatpush1.bf16.msra.mxu0 %v734
        %832 = vmatprep.subr.bf16.mxu0 0
        %833 = vmatpush1.bf16.msra.mxu0 %v737
        %834 = vmatprep.subr.bf16.mxu0 0
        %835 = vmatpush1.bf16.msra.mxu0 %v740
        %836 = vmatprep.subr.bf16.mxu0 0
        %837 = vmatpush1.bf16.msra.mxu0 %v743
        %838 = vmatprep.subr.bf16.mxu0 0
        %839 = vmatpush1.bf16.msra.mxu0 %v746
        %840 = vmatprep.subr.bf16.mxu0 0
        %841 = vmatpush1.bf16.msra.mxu0 0
        %842 = vmatprep.subr.bf16.mxu0 0
        %843 = vmatpush1.bf16.msra.mxu0 0
        %844 = vmatprep.subr.bf16.mxu0 0
        %845 = vmatpush1.bf16.msra.mxu0 0
        %846 = vmatprep.subr.bf16.mxu0 0
        %847 = vmatpush1.bf16.msra.mxu0 0
        %848 = vmatprep.subr.bf16.mxu0 0
        %849 = vmatpush1.bf16.msra.mxu0 0
        %850 = vmatprep.subr.bf16.mxu0 0
        %851 = vmatpush1.bf16.msra.mxu0 0
        %852 = vmatprep.subr.bf16.mxu0 0
        %853 = vmatpush1.bf16.msra.mxu0 0
        %854 = vmatprep.subr.bf16.mxu0 0
        %855 = vmatpush1.bf16.msra.mxu0 0
        %856 = vmatprep.mubr.bf16.mxu0 0
        %857 = vmatmul.mubr.bf16.gmra.mrb[0].mxu0 %v592
        %v858 = vpop.f32.mrb[0].mxu0
        %v859 = vadd.f32 %v639, %v858
        %v860 = vpop.f32.mrb[0].mxu0
        %v861 = vpop.f32.mrb[0].mxu0
        %v862 = vadd.f32 %v639, %v861
        %v863 = vpop.f32.mrb[0].mxu0
        %864 = vmatprep.mubr.bf16.mxu0 0
        %865 = vmatmul.mubr.bf16.gmra.mrb[0].mxu0 %v593
        %v866 = vpop.f32.mrb[0].mxu0
        %v867 = vadd.f32 %v639, %v866
        %v868 = vpop.f32.mrb[0].mxu0
        %v869 = vpop.f32.mrb[0].mxu0
        %v870 = vadd.f32 %v639, %v869
        %v871 = vpop.f32.mrb[0].mxu0
        %872 = vdwg.mxu0
        %v873 = vpack.c.bf16 %v810, %v806
        %v874 = vpack.c.bf16 %v820, %v816
        %v875 = vpack.c.bf16 %v812, %v808
        %v876 = vpack.c.bf16 %v822, %v818
        %v877 = vpack.c.bf16 %v862, %v859
        %v878 = vpack.c.bf16 %v870, %v867
        %vm879 = vcmask 261120
        %v881 = vsel %vm879, %v873, 0
        %v884 = vsel %vm879, %v875, 0
        %886 = vmatprep.subr.bf16.mxu0 0
        %887 = vmatpush1.bf16.xpose.msra.mxu0 %v884
        %888 = vmatprep.subr.bf16.mxu0 0
        %889 = vmatpush1.bf16.xpose.msra.mxu0 0
        %890 = vmatprep.subr.bf16.mxu0 0
        %891 = vmatpush1.bf16.xpose.msra.mxu0 0
        %892 = vmatprep.subr.bf16.mxu0 0
        %893 = vmatpush1.bf16.xpose.msra.mxu0 0
        %894 = vmatprep.subr.bf16.mxu0 0
        %895 = vmatpush1.bf16.xpose.msra.mxu0 0
        %896 = vmatprep.subr.bf16.mxu0 0
        %897 = vmatpush1.bf16.xpose.msra.mxu0 0
        %898 = vmatprep.subr.bf16.mxu0 0
        %899 = vmatpush1.bf16.xpose.msra.mxu0 0
        %900 = vmatprep.subr.bf16.mxu0 0
        %901 = vmatpush1.bf16.xpose.msra.mxu0 0
        %902 = vmatprep.subr.bf16.mxu0 0
        %903 = vmatpush1.bf16.xpose.msra.mxu0 0
        %904 = vmatprep.subr.bf16.mxu0 0
        %905 = vmatpush1.bf16.xpose.msra.mxu0 0
        %906 = vmatprep.subr.bf16.mxu0 0
        %907 = vmatpush1.bf16.xpose.msra.mxu0 0
        %908 = vmatprep.subr.bf16.mxu0 0
        %909 = vmatpush1.bf16.xpose.msra.mxu0 0
        %910 = vmatprep.subr.bf16.mxu0 0
        %911 = vmatpush1.bf16.xpose.msra.mxu0 0
        %912 = vmatprep.subr.bf16.mxu0 0
        %913 = vmatpush1.bf16.xpose.msra.mxu0 0
        %914 = vmatprep.subr.bf16.mxu0 0
        %915 = vmatpush1.bf16.xpose.msra.mxu0 0
        %916 = vmatprep.subr.bf16.mxu0 0
        %917 = vmatpush1.bf16.xpose.msra.mxu0 0
        %918 = vmatprep.mubr.bf16.mxu0 0
        %919 = vmatmul.mubr.bf16.gmra.mrb[0].mxu0 %v881
        %v920 = vpop.f32.mrb[0].mxu0
        %v921 = vadd.f32 0.0, %v920
        %v922 = vpop.f32.mrb[0].mxu0
        %v923 = vpop.f32.mrb[0].mxu0
        %v924 = vadd.f32 0.0, %v923
        %v925 = vpop.f32.mrb[0].mxu0
        %926 = vdwg.mxu0
        %v928 = vsel %vm879, %v874, 0
        %v931 = vsel %vm879, %v876, 0
        %933 = vmatprep.subr.bf16.mxu0 0
        %934 = vmatpush1.bf16.xpose.msra.mxu0 %v931
        %935 = vmatprep.subr.bf16.mxu0 0
        %936 = vmatpush1.bf16.xpose.msra.mxu0 0
        %937 = vmatprep.subr.bf16.mxu0 0
        %938 = vmatpush1.bf16.xpose.msra.mxu0 0
        %939 = vmatprep.subr.bf16.mxu0 0
        %940 = vmatpush1.bf16.xpose.msra.mxu0 0
        %941 = vmatprep.subr.bf16.mxu0 0
        %942 = vmatpush1.bf16.xpose.msra.mxu0 0
        %943 = vmatprep.subr.bf16.mxu0 0
        %944 = vmatpush1.bf16.xpose.msra.mxu0 0
        %945 = vmatprep.subr.bf16.mxu0 0
        %946 = vmatpush1.bf16.xpose.msra.mxu0 0
        %947 = vmatprep.subr.bf16.mxu0 0
        %948 = vmatpush1.bf16.xpose.msra.mxu0 0
        %949 = vmatprep.subr.bf16.mxu0 0
        %950 = vmatpush1.bf16.xpose.msra.mxu0 0
        %951 = vmatprep.subr.bf16.mxu0 0
        %952 = vmatpush1.bf16.xpose.msra.mxu0 0
        %953 = vmatprep.subr.bf16.mxu0 0
        %954 = vmatpush1.bf16.xpose.msra.mxu0 0
        %955 = vmatprep.subr.bf16.mxu0 0
        %956 = vmatpush1.bf16.xpose.msra.mxu0 0
        %957 = vmatprep.subr.bf16.mxu0 0
        %958 = vmatpush1.bf16.xpose.msra.mxu0 0
        %959 = vmatprep.subr.bf16.mxu0 0
        %960 = vmatpush1.bf16.xpose.msra.mxu0 0
        %961 = vmatprep.subr.bf16.mxu0 0
        %962 = vmatpush1.bf16.xpose.msra.mxu0 0
        %963 = vmatprep.subr.bf16.mxu0 0
        %964 = vmatpush1.bf16.xpose.msra.mxu0 0
        %965 = vmatprep.mubr.bf16.mxu0 0
        %966 = vmatmul.mubr.bf16.gmra.mrb[0].mxu0 %v928
        %v967 = vpop.f32.mrb[0].mxu0
        %v968 = vadd.f32 0.0, %v967
        %v969 = vpop.f32.mrb[0].mxu0
        %v970 = vpop.f32.mrb[0].mxu0
        %v971 = vadd.f32 0.0, %v970
        %v972 = vpop.f32.mrb[0].mxu0
        %973 = vdwg.mxu0
        %vm974 = vcmask 130048
        %v975 = vsel %vm974, %v921, -inf
        %976 = vmax.xlane.f32.xlu0 %v975
        %v977 = vpop.xlane.xlu0 %976
        %v978 = vsel %vm974, %v924, -inf
        %979 = vmax.xlane.f32.xlu0 %v978
        %v980 = vpop.xlane.xlu0 %979
        %v981 = vsel %vm974, %v968, -inf
        %982 = vmax.xlane.f32.xlu0 %v981
        %v983 = vpop.xlane.xlu0 %982
        %v984 = vsel %vm974, %v971, -inf
        %985 = vmax.xlane.f32.xlu0 %v984
        %v986 = vpop.xlane.xlu0 %985
        %v987 = vsub.f32 %v921, %v977
        %v988 = vsub.f32 %v924, %v980
        %v989 = vsub.f32 %v968, %v983
        %v990 = vsub.f32 %v971, %v986
        %v991 = vmul.f32 %v987, 1.442695
        %v992 = vpow.pop %v991
        %v993 = vmul.f32 %v988, 1.442695
        %v994 = vpow.pop %v993
        %v995 = vmul.f32 %v989, 1.442695
        %v996 = vpow.pop %v995
        %v997 = vmul.f32 %v990, 1.442695
        %v998 = vpow.pop %v997
        %v999 = vsel %vm974, %v992, 0.0
        %1000 = vadd.xlane.f32.xlu0 %v999
        %v1001 = vpop.xlane.xlu0 %1000
        %v1002 = vsel %vm974, %v994, 0.0
        %1003 = vadd.xlane.f32.xlu0 %v1002
        %v1004 = vpop.xlane.xlu0 %1003
        %v1005 = vsel %vm974, %v996, 0.0
        %1006 = vadd.xlane.f32.xlu0 %v1005
        %v1007 = vpop.xlane.xlu0 %1006
        %v1008 = vsel %vm974, %v998, 0.0
        %1009 = vadd.xlane.f32.xlu0 %v1008
        %v1010 = vpop.xlane.xlu0 %1009
        %v1011 = vrcp.pop %v1001
        %v1012 = vrcp.pop %v1004
        %v1013 = vrcp.pop %v1007
        %v1014 = vrcp.pop %v1010
        %v1015 = vmul.f32 %v992, %v1011
        %v1016 = vmul.f32 %v994, %v1012
        %v1017 = vmul.f32 %v996, %v1013
        %v1018 = vmul.f32 %v998, %v1014
        %v1019 = vpack.c.bf16 %v1016, %v1015
        %v1020 = vpack.c.bf16 %v1018, %v1017
        %v1022 = vsel %vm974, %v1019, 0
        %1024 = vmatprep.subr.bf16.mxu0 0
        %1025 = vmatpush1.bf16.msra.mxu0 %v877
        %1026 = vmatprep.subr.bf16.mxu0 0
        %1027 = vmatpush1.bf16.msra.mxu0 0
        %1028 = vmatprep.subr.bf16.mxu0 0
        %1029 = vmatpush1.bf16.msra.mxu0 0
        %1030 = vmatprep.subr.bf16.mxu0 0
        %1031 = vmatpush1.bf16.msra.mxu0 0
        %1032 = vmatprep.subr.bf16.mxu0 0
        %1033 = vmatpush1.bf16.msra.mxu0 0
        %1034 = vmatprep.subr.bf16.mxu0 0
        %1035 = vmatpush1.bf16.msra.mxu0 0
        %1036 = vmatprep.subr.bf16.mxu0 0
        %1037 = vmatpush1.bf16.msra.mxu0 0
        %1038 = vmatprep.subr.bf16.mxu0 0
        %1039 = vmatpush1.bf16.msra.mxu0 0
        %1040 = vmatprep.subr.bf16.mxu0 0
        %1041 = vmatpush1.bf16.msra.mxu0 0
        %1042 = vmatprep.subr.bf16.mxu0 0
        %1043 = vmatpush1.bf16.msra.mxu0 0
        %1044 = vmatprep.subr.bf16.mxu0 0
        %1045 = vmatpush1.bf16.msra.mxu0 0
        %1046 = vmatprep.subr.bf16.mxu0 0
        %1047 = vmatpush1.bf16.msra.mxu0 0
        %1048 = vmatprep.subr.bf16.mxu0 0
        %1049 = vmatpush1.bf16.msra.mxu0 0
        %1050 = vmatprep.subr.bf16.mxu0 0
        %1051 = vmatpush1.bf16.msra.mxu0 0
        %1052 = vmatprep.subr.bf16.mxu0 0
        %1053 = vmatpush1.bf16.msra.mxu0 0
        %1054 = vmatprep.subr.bf16.mxu0 0
        %1055 = vmatpush1.bf16.msra.mxu0 0
        %1056 = vmatprep.mubr.bf16.mxu0 0
        %1057 = vmatmul.mubr.bf16.gmra.mrb[0].mxu0 %v1022
        %v1058 = vpop.f32.mrb[0].mxu0
        %v1059 = vadd.f32 0.0, %v1058
        %v1060 = vpop.f32.mrb[0].mxu0
        %v1061 = vpop.f32.mrb[0].mxu0
        %v1062 = vadd.f32 0.0, %v1061
        %v1063 = vpop.f32.mrb[0].mxu0
        %1064 = vdwg.mxu0
        %v1066 = vsel %vm974, %v1020, 0
        %1068 = vmatprep.subr.bf16.mxu0 0
        %1069 = vmatpush1.bf16.msra.mxu0 %v878
        %1070 = vmatprep.subr.bf16.mxu0 0
        %1071 = vmatpush1.bf16.msra.mxu0 0
        %1072 = vmatprep.subr.bf16.mxu0 0
        %1073 = vmatpush1.bf16.msra.mxu0 0
        %1074 = vmatprep.subr.bf16.mxu0 0
        %1075 = vmatpush1.bf16.msra.mxu0 0
        %1076 = vmatprep.subr.bf16.mxu0 0
        %1077 = vmatpush1.bf16.msra.mxu0 0
        %1078 = vmatprep.subr.bf16.mxu0 0
        %1079 = vmatpush1.bf16.msra.mxu0 0
        %1080 = vmatprep.subr.bf16.mxu0 0
        %1081 = vmatpush1.bf16.msra.mxu0 0
        %1082 = vmatprep.subr.bf16.mxu0 0
        %1083 = vmatpush1.bf16.msra.mxu0 0
        %1084 = vmatprep.subr.bf16.mxu0 0
        %1085 = vmatpush1.bf16.msra.mxu0 0
        %1086 = vmatprep.subr.bf16.mxu0 0
        %1087 = vmatpush1.bf16.msra.mxu0 0
        %1088 = vmatprep.subr.bf16.mxu0 0
        %1089 = vmatpush1.bf16.msra.mxu0 0
        %1090 = vmatprep.subr.bf16.mxu0 0
        %1091 = vmatpush1.bf16.msra.mxu0 0
        %1092 = vmatprep.subr.bf16.mxu0 0
        %1093 = vmatpush1.bf16.msra.mxu0 0
        %1094 = vmatprep.subr.bf16.mxu0 0
        %1095 = vmatpush1.bf16.msra.mxu0 0
        %1096 = vmatprep.subr.bf16.mxu0 0
        %1097 = vmatpush1.bf16.msra.mxu0 0
        %1098 = vmatprep.subr.bf16.mxu0 0
        %1099 = vmatpush1.bf16.msra.mxu0 0
        %1100 = vmatprep.mubr.bf16.mxu0 0
        %1101 = vmatmul.mubr.bf16.gmra.mrb[0].mxu0 %v1066
        %v1102 = vpop.f32.mrb[0].mxu0
        %v1103 = vadd.f32 0.0, %v1102
        %v1104 = vpop.f32.mrb[0].mxu0
        %v1105 = vpop.f32.mrb[0].mxu0
        %v1106 = vadd.f32 0.0, %v1105
        %v1107 = vpop.f32.mrb[0].mxu0
        %1108 = vdwg.mxu0
        %v1109 = vpack.c.bf16 %v1062, %v1059
        %v1110 = vpack.c.bf16 %v1106, %v1103
        %1111 = vst.msk [vmem:[#allocation2] sm:$0xff] %vm879, %v1109
        %1112 = vst.msk [vmem:[#allocation2 + $0x8] sm:$0xff] %vm879, %v1110
        %1114 = vrot.lane.b32.xlu0 %v873, 96
        %v1115 = vpop.permute.xlu0 %1114
        %1117 = vrot.lane.b32.xlu0 %v875, 96
        %v1118 = vpop.permute.xlu0 %1117
        %v1120 = vsel %vm879, %v1115, 0
        %v1123 = vsel %vm879, %v1118, 0
        %1125 = vmatprep.subr.bf16.mxu0 0
        %1126 = vmatpush1.bf16.xpose.msra.mxu0 %v1123
        %1127 = vmatprep.subr.bf16.mxu0 0
        %1128 = vmatpush1.bf16.xpose.msra.mxu0 0
        %1129 = vmatprep.subr.bf16.mxu0 0
        %1130 = vmatpush1.bf16.xpose.msra.mxu0 0
        %1131 = vmatprep.subr.bf16.mxu0 0
        %1132 = vmatpush1.bf16.xpose.msra.mxu0 0
        %1133 = vmatprep.subr.bf16.mxu0 0
        %1134 = vmatpush1.bf16.xpose.msra.mxu0 0
        %1135 = vmatprep.subr.bf16.mxu0 0
        %1136 = vmatpush1.bf16.xpose.msra.mxu0 0
        %1137 = vmatprep.subr.bf16.mxu0 0
        %1138 = vmatpush1.bf16.xpose.msra.mxu0 0
        %1139 = vmatprep.subr.bf16.mxu0 0
        %1140 = vmatpush1.bf16.xpose.msra.mxu0 0
        %1141 = vmatprep.subr.bf16.mxu0 0
        %1142 = vmatpush1.bf16.xpose.msra.mxu0 0
        %1143 = vmatprep.subr.bf16.mxu0 0
        %1144 = vmatpush1.bf16.xpose.msra.mxu0 0
        %1145 = vmatprep.subr.bf16.mxu0 0
        %1146 = vmatpush1.bf16.xpose.msra.mxu0 0
        %1147 = vmatprep.subr.bf16.mxu0 0
        %1148 = vmatpush1.bf16.xpose.msra.mxu0 0
        %1149 = vmatprep.subr.bf16.mxu0 0
        %1150 = vmatpush1.bf16.xpose.msra.mxu0 0
        %1151 = vmatprep.subr.bf16.mxu0 0
        %1152 = vmatpush1.bf16.xpose.msra.mxu0 0
        %1153 = vmatprep.subr.bf16.mxu0 0
        %1154 = vmatpush1.bf16.xpose.msra.mxu0 0
        %1155 = vmatprep.subr.bf16.mxu0 0
        %1156 = vmatpush1.bf16.xpose.msra.mxu0 0
        %1157 = vmatprep.mubr.bf16.mxu0 0
        %1158 = vmatmul.mubr.bf16.gmra.mrb[0].mxu0 %v1120
        %v1159 = vpop.f32.mrb[0].mxu0
        %v1160 = vadd.f32 0.0, %v1159
        %v1161 = vpop.f32.mrb[0].mxu0
        %v1162 = vpop.f32.mrb[0].mxu0
        %v1163 = vadd.f32 0.0, %v1162
        %v1164 = vpop.f32.mrb[0].mxu0
        %1165 = vdwg.mxu0
        %1167 = vrot.lane.b32.xlu0 %v874, 96
        %v1168 = vpop.permute.xlu0 %1167
        %1170 = vrot.lane.b32.xlu0 %v876, 96
        %v1171 = vpop.permute.xlu0 %1170
        %v1173 = vsel %vm879, %v1168, 0
        %v1176 = vsel %vm879, %v1171, 0
        %1178 = vmatprep.subr.bf16.mxu0 0
        %1179 = vmatpush1.bf16.xpose.msra.mxu0 %v1176
        %1180 = vmatprep.subr.bf16.mxu0 0
        %1181 = vmatpush1.bf16.xpose.msra.mxu0 0
        %1182 = vmatprep.subr.bf16.mxu0 0
        %1183 = vmatpush1.bf16.xpose.msra.mxu0 0
        %1184 = vmatprep.subr.bf16.mxu0 0
        %1185 = vmatpush1.bf16.xpose.msra.mxu0 0
        %1186 = vmatprep.subr.bf16.mxu0 0
        %1187 = vmatpush1.bf16.xpose.msra.mxu0 0
        %1188 = vmatprep.subr.bf16.mxu0 0
        %1189 = vmatpush1.bf16.xpose.msra.mxu0 0
        %1190 = vmatprep.subr.bf16.mxu0 0
        %1191 = vmatpush1.bf16.xpose.msra.mxu0 0
        %1192 = vmatprep.subr.bf16.mxu0 0
        %1193 = vmatpush1.bf16.xpose.msra.mxu0 0
        %1194 = vmatprep.subr.bf16.mxu0 0
        %1195 = vmatpush1.bf16.xpose.msra.mxu0 0
        %1196 = vmatprep.subr.bf16.mxu0 0
        %1197 = vmatpush1.bf16.xpose.msra.mxu0 0
        %1198 = vmatprep.subr.bf16.mxu0 0
        %1199 = vmatpush1.bf16.xpose.msra.mxu0 0
        %1200 = vmatprep.subr.bf16.mxu0 0
        %1201 = vmatpush1.bf16.xpose.msra.mxu0 0
        %1202 = vmatprep.subr.bf16.mxu0 0
        %1203 = vmatpush1.bf16.xpose.msra.mxu0 0
        %1204 = vmatprep.subr.bf16.mxu0 0
        %1205 = vmatpush1.bf16.xpose.msra.mxu0 0
        %1206 = vmatprep.subr.bf16.mxu0 0
        %1207 = vmatpush1.bf16.xpose.msra.mxu0 0
        %1208 = vmatprep.subr.bf16.mxu0 0
        %1209 = vmatpush1.bf16.xpose.msra.mxu0 0
        %1210 = vmatprep.mubr.bf16.mxu0 0
        %1211 = vmatmul.mubr.bf16.gmra.mrb[0].mxu0 %v1173
        %v1212 = vpop.f32.mrb[0].mxu0
        %v1213 = vadd.f32 0.0, %v1212
        %v1214 = vpop.f32.mrb[0].mxu0
        %v1215 = vpop.f32.mrb[0].mxu0
        %v1216 = vadd.f32 0.0, %v1215
        %v1217 = vpop.f32.mrb[0].mxu0
        %1218 = vdwg.mxu0
        %v1219 = vsel %vm974, %v1160, -inf
        %1220 = vmax.xlane.f32.xlu0 %v1219
        %v1221 = vpop.xlane.xlu0 %1220
        %v1222 = vsel %vm974, %v1163, -inf
        %1223 = vmax.xlane.f32.xlu0 %v1222
        %v1224 = vpop.xlane.xlu0 %1223
        %v1225 = vsel %vm974, %v1213, -inf
        %1226 = vmax.xlane.f32.xlu0 %v1225
        %v1227 = vpop.xlane.xlu0 %1226
        %v1228 = vsel %vm974, %v1216, -inf
        %1229 = vmax.xlane.f32.xlu0 %v1228
        %v1230 = vpop.xlane.xlu0 %1229
        %v1231 = vsub.f32 %v1160, %v1221
        %v1232 = vsub.f32 %v1163, %v1224
        %v1233 = vsub.f32 %v1213, %v1227
        %v1234 = vsub.f32 %v1216, %v1230
        %v1235 = vmul.f32 %v1231, 1.442695
        %v1236 = vpow.pop %v1235
        %v1237 = vmul.f32 %v1232, 1.442695
        %v1238 = vpow.pop %v1237
        %v1239 = vmul.f32 %v1233, 1.442695
        %v1240 = vpow.pop %v1239
        %v1241 = vmul.f32 %v1234, 1.442695
        %v1242 = vpow.pop %v1241
        %v1243 = vsel %vm974, %v1236, 0.0
        %1244 = vadd.xlane.f32.xlu0 %v1243
        %v1245 = vpop.xlane.xlu0 %1244
        %v1246 = vsel %vm974, %v1238, 0.0
        %1247 = vadd.xlane.f32.xlu0 %v1246
        %v1248 = vpop.xlane.xlu0 %1247
        %v1249 = vsel %vm974, %v1240, 0.0
        %1250 = vadd.xlane.f32.xlu0 %v1249
        %v1251 = vpop.xlane.xlu0 %1250
        %v1252 = vsel %vm974, %v1242, 0.0
        %1253 = vadd.xlane.f32.xlu0 %v1252
        %v1254 = vpop.xlane.xlu0 %1253
        %v1255 = vrcp.pop %v1245
        %v1256 = vrcp.pop %v1248
        %v1257 = vrcp.pop %v1251
        %v1258 = vrcp.pop %v1254
        %v1259 = vmul.f32 %v1236, %v1255
        %v1260 = vmul.f32 %v1238, %v1256
        %v1261 = vmul.f32 %v1240, %v1257
        %v1262 = vmul.f32 %v1242, %v1258
        %v1263 = vpack.c.bf16 %v1260, %v1259
        %v1264 = vpack.c.bf16 %v1262, %v1261
        %1266 = vrot.lane.b32.xlu0 %v877, 96
        %v1267 = vpop.permute.xlu0 %1266
        %v1270 = vsel %vm974, %v1263, 0
        %1272 = vmatprep.subr.bf16.mxu0 0
        %1273 = vmatpush1.bf16.msra.mxu0 %v1267
        %1274 = vmatprep.subr.bf16.mxu0 0
        %1275 = vmatpush1.bf16.msra.mxu0 0
        %1276 = vmatprep.subr.bf16.mxu0 0
        %1277 = vmatpush1.bf16.msra.mxu0 0
        %1278 = vmatprep.subr.bf16.mxu0 0
        %1279 = vmatpush1.bf16.msra.mxu0 0
        %1280 = vmatprep.subr.bf16.mxu0 0
        %1281 = vmatpush1.bf16.msra.mxu0 0
        %1282 = vmatprep.subr.bf16.mxu0 0
        %1283 = vmatpush1.bf16.msra.mxu0 0
        %1284 = vmatprep.subr.bf16.mxu0 0
        %1285 = vmatpush1.bf16.msra.mxu0 0
        %1286 = vmatprep.subr.bf16.mxu0 0
        %1287 = vmatpush1.bf16.msra.mxu0 0
        %1288 = vmatprep.subr.bf16.mxu0 0
        %1289 = vmatpush1.bf16.msra.mxu0 0
        %1290 = vmatprep.subr.bf16.mxu0 0
        %1291 = vmatpush1.bf16.msra.mxu0 0
        %1292 = vmatprep.subr.bf16.mxu0 0
        %1293 = vmatpush1.bf16.msra.mxu0 0
        %1294 = vmatprep.subr.bf16.mxu0 0
        %1295 = vmatpush1.bf16.msra.mxu0 0
        %1296 = vmatprep.subr.bf16.mxu0 0
        %1297 = vmatpush1.bf16.msra.mxu0 0
        %1298 = vmatprep.subr.bf16.mxu0 0
        %1299 = vmatpush1.bf16.msra.mxu0 0
        %1300 = vmatprep.subr.bf16.mxu0 0
        %1301 = vmatpush1.bf16.msra.mxu0 0
        %1302 = vmatprep.subr.bf16.mxu0 0
        %1303 = vmatpush1.bf16.msra.mxu0 0
        %1304 = vmatprep.mubr.bf16.mxu0 0
        %1305 = vmatmul.mubr.bf16.gmra.mrb[0].mxu0 %v1270
        %v1306 = vpop.f32.mrb[0].mxu0
        %v1307 = vadd.f32 0.0, %v1306
        %v1308 = vpop.f32.mrb[0].mxu0
        %v1309 = vpop.f32.mrb[0].mxu0
        %v1310 = vadd.f32 0.0, %v1309
        %v1311 = vpop.f32.mrb[0].mxu0
        %1312 = vdwg.mxu0
        %1314 = vrot.lane.b32.xlu0 %v878, 96
        %v1315 = vpop.permute.xlu0 %1314
        %v1318 = vsel %vm974, %v1264, 0
        %1320 = vmatprep.subr.bf16.mxu0 0
        %1321 = vmatpush1.bf16.msra.mxu0 %v1315
        %1322 = vmatprep.subr.bf16.mxu0 0
        %1323 = vmatpush1.bf16.msra.mxu0 0
        %1324 = vmatprep.subr.bf16.mxu0 0
        %1325 = vmatpush1.bf16.msra.mxu0 0
        %1326 = vmatprep.subr.bf16.mxu0 0
        %1327 = vmatpush1.bf16.msra.mxu0 0
        %1328 = vmatprep.subr.bf16.mxu0 0
        %1329 = vmatpush1.bf16.msra.mxu0 0
        %1330 = vmatprep.subr.bf16.mxu0 0
        %1331 = vmatpush1.bf16.msra.mxu0 0
        %1332 = vmatprep.subr.bf16.mxu0 0
        %1333 = vmatpush1.bf16.msra.mxu0 0
        %1334 = vmatprep.subr.bf16.mxu0 0
        %1335 = vmatpush1.bf16.msra.mxu0 0
        %1336 = vmatprep.subr.bf16.mxu0 0
        %1337 = vmatpush1.bf16.msra.mxu0 0
        %1338 = vmatprep.subr.bf16.mxu0 0
        %1339 = vmatpush1.bf16.msra.mxu0 0
        %1340 = vmatprep.subr.bf16.mxu0 0
        %1341 = vmatpush1.bf16.msra.mxu0 0
        %1342 = vmatprep.subr.bf16.mxu0 0
        %1343 = vmatpush1.bf16.msra.mxu0 0
        %1344 = vmatprep.subr.bf16.mxu0 0
        %1345 = vmatpush1.bf16.msra.mxu0 0
        %1346 = vmatprep.subr.bf16.mxu0 0
        %1347 = vmatpush1.bf16.msra.mxu0 0
        %1348 = vmatprep.subr.bf16.mxu0 0
        %1349 = vmatpush1.bf16.msra.mxu0 0
        %1350 = vmatprep.subr.bf16.mxu0 0
        %1351 = vmatpush1.bf16.msra.mxu0 0
        %1352 = vmatprep.mubr.bf16.mxu0 0
        %1353 = vmatmul.mubr.bf16.gmra.mrb[0].mxu0 %v1318
        %v1354 = vpop.f32.mrb[0].mxu0
        %v1355 = vadd.f32 0.0, %v1354
        %v1356 = vpop.f32.mrb[0].mxu0
        %v1357 = vpop.f32.mrb[0].mxu0
        %v1358 = vadd.f32 0.0, %v1357
        %v1359 = vpop.f32.mrb[0].mxu0
        %1360 = vdwg.mxu0
        %v1361 = vpack.c.bf16 %v1310, %v1307
        %v1362 = vpack.c.bf16 %v1358, %v1355
        %1365 = vrot.lane.b32.xlu0 %v1361, 32
        %v1366 = vpop.permute.xlu0 %1365
        %1367 = vrot.lane.b32.xlu0 %v1362, 32
        %v1368 = vpop.permute.xlu0 %1367
        %vm1371 = vcmask 523520
        %1372 = vst.msk [vmem:[#allocation2] sm:$0xff] %vm1371, %v1366
        %1373 = vst.msk [vmem:[#allocation2 + $0x8] sm:$0xff] %vm1371, %v1368
        %1374 = vrot.lane.b32.xlu0 %v873, 64
        %v1375 = vpop.permute.xlu0 %1374
        %1376 = vrot.lane.b32.xlu0 %v875, 64
        %v1377 = vpop.permute.xlu0 %1376
        %v1379 = vsel %vm879, %v1375, 0
        %v1382 = vsel %vm879, %v1377, 0
        %1384 = vmatprep.subr.bf16.mxu0 0
        %1385 = vmatpush1.bf16.xpose.msra.mxu0 %v1382
        %1386 = vmatprep.subr.bf16.mxu0 0
        %1387 = vmatpush1.bf16.xpose.msra.mxu0 0
        %1388 = vmatprep.subr.bf16.mxu0 0
        %1389 = vmatpush1.bf16.xpose.msra.mxu0 0
        %1390 = vmatprep.subr.bf16.mxu0 0
        %1391 = vmatpush1.bf16.xpose.msra.mxu0 0
        %1392 = vmatprep.subr.bf16.mxu0 0
        %1393 = vmatpush1.bf16.xpose.msra.mxu0 0
        %1394 = vmatprep.subr.bf16.mxu0 0
        %1395 = vmatpush1.bf16.xpose.msra.mxu0 0
        %1396 = vmatprep.subr.bf16.mxu0 0
        %1397 = vmatpush1.bf16.xpose.msra.mxu0 0
        %1398 = vmatprep.subr.bf16.mxu0 0
        %1399 = vmatpush1.bf16.xpose.msra.mxu0 0
        %1400 = vmatprep.subr.bf16.mxu0 0
        %1401 = vmatpush1.bf16.xpose.msra.mxu0 0
        %1402 = vmatprep.subr.bf16.mxu0 0
        %1403 = vmatpush1.bf16.xpose.msra.mxu0 0
        %1404 = vmatprep.subr.bf16.mxu0 0
        %1405 = vmatpush1.bf16.xpose.msra.mxu0 0
        %1406 = vmatprep.subr.bf16.mxu0 0
        %1407 = vmatpush1.bf16.xpose.msra.mxu0 0
        %1408 = vmatprep.subr.bf16.mxu0 0
        %1409 = vmatpush1.bf16.xpose.msra.mxu0 0
        %1410 = vmatprep.subr.bf16.mxu0 0
        %1411 = vmatpush1.bf16.xpose.msra.mxu0 0
        %1412 = vmatprep.subr.bf16.mxu0 0
        %1413 = vmatpush1.bf16.xpose.msra.mxu0 0
        %1414 = vmatprep.subr.bf16.mxu0 0
        %1415 = vmatpush1.bf16.xpose.msra.mxu0 0
        %1416 = vmatprep.mubr.bf16.mxu0 0
        %1417 = vmatmul.mubr.bf16.gmra.mrb[0].mxu0 %v1379
        %v1418 = vpop.f32.mrb[0].mxu0
        %v1419 = vadd.f32 0.0, %v1418
        %v1420 = vpop.f32.mrb[0].mxu0
        %v1421 = vpop.f32.mrb[0].mxu0
        %v1422 = vadd.f32 0.0, %v1421
        %v1423 = vpop.f32.mrb[0].mxu0
        %1424 = vdwg.mxu0
        %1425 = vrot.lane.b32.xlu0 %v874, 64
        %v1426 = vpop.permute.xlu0 %1425
        %1427 = vrot.lane.b32.xlu0 %v876, 64
        %v1428 = vpop.permute.xlu0 %1427
        %v1430 = vsel %vm879, %v1426, 0
        %v1433 = vsel %vm879, %v1428, 0
        %1435 = vmatprep.subr.bf16.mxu0 0
        %1436 = vmatpush1.bf16.xpose.msra.mxu0 %v1433
        %1437 = vmatprep.subr.bf16.mxu0 0
        %1438 = vmatpush1.bf16.xpose.msra.mxu0 0
        %1439 = vmatprep.subr.bf16.mxu0 0
        %1440 = vmatpush1.bf16.xpose.msra.mxu0 0
        %1441 = vmatprep.subr.bf16.mxu0 0
        %1442 = vmatpush1.bf16.xpose.msra.mxu0 0
        %1443 = vmatprep.subr.bf16.mxu0 0
        %1444 = vmatpush1.bf16.xpose.msra.mxu0 0
        %1445 = vmatprep.subr.bf16.mxu0 0
        %1446 = vmatpush1.bf16.xpose.msra.mxu0 0
        %1447 = vmatprep.subr.bf16.mxu0 0
        %1448 = vmatpush1.bf16.xpose.msra.mxu0 0
        %1449 = vmatprep.subr.bf16.mxu0 0
        %1450 = vmatpush1.bf16.xpose.msra.mxu0 0
        %1451 = vmatprep.subr.bf16.mxu0 0
        %1452 = vmatpush1.bf16.xpose.msra.mxu0 0
        %1453 = vmatprep.subr.bf16.mxu0 0
        %1454 = vmatpush1.bf16.xpose.msra.mxu0 0
        %1455 = vmatprep.subr.bf16.mxu0 0
        %1456 = vmatpush1.bf16.xpose.msra.mxu0 0
        %1457 = vmatprep.subr.bf16.mxu0 0
        %1458 = vmatpush1.bf16.xpose.msra.mxu0 0
        %1459 = vmatprep.subr.bf16.mxu0 0
        %1460 = vmatpush1.bf16.xpose.msra.mxu0 0
        %1461 = vmatprep.subr.bf16.mxu0 0
        %1462 = vmatpush1.bf16.xpose.msra.mxu0 0
        %1463 = vmatprep.subr.bf16.mxu0 0
        %1464 = vmatpush1.bf16.xpose.msra.mxu0 0
        %1465 = vmatprep.subr.bf16.mxu0 0
        %1466 = vmatpush1.bf16.xpose.msra.mxu0 0
        %1467 = vmatprep.mubr.bf16.mxu0 0
        %1468 = vmatmul.mubr.bf16.gmra.mrb[0].mxu0 %v1430
        %v1469 = vpop.f32.mrb[0].mxu0
        %v1470 = vadd.f32 0.0, %v1469
        %v1471 = vpop.f32.mrb[0].mxu0
        %v1472 = vpop.f32.mrb[0].mxu0
        %v1473 = vadd.f32 0.0, %v1472
        %v1474 = vpop.f32.mrb[0].mxu0
        %1475 = vdwg.mxu0
        %v1476 = vsel %vm974, %v1419, -inf
        %1477 = vmax.xlane.f32.xlu0 %v1476
        %v1478 = vpop.xlane.xlu0 %1477
        %v1479 = vsel %vm974, %v1422, -inf
        %1480 = vmax.xlane.f32.xlu0 %v1479
        %v1481 = vpop.xlane.xlu0 %1480
        %v1482 = vsel %vm974, %v1470, -inf
        %1483 = vmax.xlane.f32.xlu0 %v1482
        %v1484 = vpop.xlane.xlu0 %1483
        %v1485 = vsel %vm974, %v1473, -inf
        %1486 = vmax.xlane.f32.xlu0 %v1485
        %v1487 = vpop.xlane.xlu0 %1486
        %v1488 = vsub.f32 %v1419, %v1478
        %v1489 = vsub.f32 %v1422, %v1481
        %v1490 = vsub.f32 %v1470, %v1484
        %v1491 = vsub.f32 %v1473, %v1487
        %v1492 = vmul.f32 %v1488, 1.442695
        %v1493 = vpow.pop %v1492
        %v1494 = vmul.f32 %v1489, 1.442695
        %v1495 = vpow.pop %v1494
        %v1496 = vmul.f32 %v1490, 1.442695
        %v1497 = vpow.pop %v1496
        %v1498 = vmul.f32 %v1491, 1.442695
        %v1499 = vpow.pop %v1498
        %v1500 = vsel %vm974, %v1493, 0.0
        %1501 = vadd.xlane.f32.xlu0 %v1500
        %v1502 = vpop.xlane.xlu0 %1501
        %v1503 = vsel %vm974, %v1495, 0.0
        %1504 = vadd.xlane.f32.xlu0 %v1503
        %v1505 = vpop.xlane.xlu0 %1504
        %v1506 = vsel %vm974, %v1497, 0.0
        %1507 = vadd.xlane.f32.xlu0 %v1506
        %v1508 = vpop.xlane.xlu0 %1507
        %v1509 = vsel %vm974, %v1499, 0.0
        %1510 = vadd.xlane.f32.xlu0 %v1509
        %v1511 = vpop.xlane.xlu0 %1510
        %v1512 = vrcp.pop %v1502
        %v1513 = vrcp.pop %v1505
        %v1514 = vrcp.pop %v1508
        %v1515 = vrcp.pop %v1511
        %v1516 = vmul.f32 %v1493, %v1512
        %v1517 = vmul.f32 %v1495, %v1513
        %v1518 = vmul.f32 %v1497, %v1514
        %v1519 = vmul.f32 %v1499, %v1515
        %v1520 = vpack.c.bf16 %v1517, %v1516
        %v1521 = vpack.c.bf16 %v1519, %v1518
        %1522 = vrot.lane.b32.xlu0 %v877, 64
        %v1523 = vpop.permute.xlu0 %1522
        %v1526 = vsel %vm974, %v1520, 0
        %1528 = vmatprep.subr.bf16.mxu0 0
        %1529 = vmatpush1.bf16.msra.mxu0 %v1523
        %1530 = vmatprep.subr.bf16.mxu0 0
        %1531 = vmatpush1.bf16.msra.mxu0 0
        %1532 = vmatprep.subr.bf16.mxu0 0
        %1533 = vmatpush1.bf16.msra.mxu0 0
        %1534 = vmatprep.subr.bf16.mxu0 0
        %1535 = vmatpush1.bf16.msra.mxu0 0
        %1536 = vmatprep.subr.bf16.mxu0 0
        %1537 = vmatpush1.bf16.msra.mxu0 0
        %1538 = vmatprep.subr.bf16.mxu0 0
        %1539 = vmatpush1.bf16.msra.mxu0 0
        %1540 = vmatprep.subr.bf16.mxu0 0
        %1541 = vmatpush1.bf16.msra.mxu0 0
        %1542 = vmatprep.subr.bf16.mxu0 0
        %1543 = vmatpush1.bf16.msra.mxu0 0
        %1544 = vmatprep.subr.bf16.mxu0 0
        %1545 = vmatpush1.bf16.msra.mxu0 0
        %1546 = vmatprep.subr.bf16.mxu0 0
        %1547 = vmatpush1.bf16.msra.mxu0 0
        %1548 = vmatprep.subr.bf16.mxu0 0
        %1549 = vmatpush1.bf16.msra.mxu0 0
        %1550 = vmatprep.subr.bf16.mxu0 0
        %1551 = vmatpush1.bf16.msra.mxu0 0
        %1552 = vmatprep.subr.bf16.mxu0 0
        %1553 = vmatpush1.bf16.msra.mxu0 0
        %1554 = vmatprep.subr.bf16.mxu0 0
        %1555 = vmatpush1.bf16.msra.mxu0 0
        %1556 = vmatprep.subr.bf16.mxu0 0
        %1557 = vmatpush1.bf16.msra.mxu0 0
        %1558 = vmatprep.subr.bf16.mxu0 0
        %1559 = vmatpush1.bf16.msra.mxu0 0
        %1560 = vmatprep.mubr.bf16.mxu0 0
        %1561 = vmatmul.mubr.bf16.gmra.mrb[0].mxu0 %v1526
        %v1562 = vpop.f32.mrb[0].mxu0
        %v1563 = vadd.f32 0.0, %v1562
        %v1564 = vpop.f32.mrb[0].mxu0
        %v1565 = vpop.f32.mrb[0].mxu0
        %v1566 = vadd.f32 0.0, %v1565
        %v1567 = vpop.f32.mrb[0].mxu0
        %1568 = vdwg.mxu0
        %1569 = vrot.lane.b32.xlu0 %v878, 64
        %v1570 = vpop.permute.xlu0 %1569
        %v1573 = vsel %vm974, %v1521, 0
        %1575 = vmatprep.subr.bf16.mxu0 0
        %1576 = vmatpush1.bf16.msra.mxu0 %v1570
        %1577 = vmatprep.subr.bf16.mxu0 0
        %1578 = vmatpush1.bf16.msra.mxu0 0
        %1579 = vmatprep.subr.bf16.mxu0 0
        %1580 = vmatpush1.bf16.msra.mxu0 0
        %1581 = vmatprep.subr.bf16.mxu0 0
        %1582 = vmatpush1.bf16.msra.mxu0 0
        %1583 = vmatprep.subr.bf16.mxu0 0
        %1584 = vmatpush1.bf16.msra.mxu0 0
        %1585 = vmatprep.subr.bf16.mxu0 0
        %1586 = vmatpush1.bf16.msra.mxu0 0
        %1587 = vmatprep.subr.bf16.mxu0 0
        %1588 = vmatpush1.bf16.msra.mxu0 0
        %1589 = vmatprep.subr.bf16.mxu0 0
        %1590 = vmatpush1.bf16.msra.mxu0 0
        %1591 = vmatprep.subr.bf16.mxu0 0
        %1592 = vmatpush1.bf16.msra.mxu0 0
        %1593 = vmatprep.subr.bf16.mxu0 0
        %1594 = vmatpush1.bf16.msra.mxu0 0
        %1595 = vmatprep.subr.bf16.mxu0 0
        %1596 = vmatpush1.bf16.msra.mxu0 0
        %1597 = vmatprep.subr.bf16.mxu0 0
        %1598 = vmatpush1.bf16.msra.mxu0 0
        %1599 = vmatprep.subr.bf16.mxu0 0
        %1600 = vmatpush1.bf16.msra.mxu0 0
        %1601 = vmatprep.subr.bf16.mxu0 0
        %1602 = vmatpush1.bf16.msra.mxu0 0
        %1603 = vmatprep.subr.bf16.mxu0 0
        %1604 = vmatpush1.bf16.msra.mxu0 0
        %1605 = vmatprep.subr.bf16.mxu0 0
        %1606 = vmatpush1.bf16.msra.mxu0 0
        %1607 = vmatprep.mubr.bf16.mxu0 0
        %1608 = vmatmul.mubr.bf16.gmra.mrb[0].mxu0 %v1573
        %v1609 = vpop.f32.mrb[0].mxu0
        %v1610 = vadd.f32 0.0, %v1609
        %v1611 = vpop.f32.mrb[0].mxu0
        %v1612 = vpop.f32.mrb[0].mxu0
        %v1613 = vadd.f32 0.0, %v1612
        %v1614 = vpop.f32.mrb[0].mxu0
        %1615 = vdwg.mxu0
        %v1616 = vpack.c.bf16 %v1566, %v1563
        %v1617 = vpack.c.bf16 %v1613, %v1610
        %1620 = vrot.lane.b32.xlu0 %v1616, 64
        %v1621 = vpop.permute.xlu0 %1620
        %1622 = vrot.lane.b32.xlu0 %v1617, 64
        %v1623 = vpop.permute.xlu0 %1622
        %vm1626 = vcmask 785920
        %1627 = vst.msk [vmem:[#allocation2] sm:$0xff] %vm1626, %v1621
        %1628 = vst.msk [vmem:[#allocation2 + $0x8] sm:$0xff] %vm1626, %v1623
        %1629 = vrot.lane.b32.xlu0 %v873, 32
        %v1630 = vpop.permute.xlu0 %1629
        %1631 = vrot.lane.b32.xlu0 %v875, 32
        %v1632 = vpop.permute.xlu0 %1631
        %v1634 = vsel %vm879, %v1630, 0
        %v1637 = vsel %vm879, %v1632, 0
        %1639 = vmatprep.subr.bf16.mxu0 0
        %1640 = vmatpush1.bf16.xpose.msra.mxu0 %v1637
        %1641 = vmatprep.subr.bf16.mxu0 0
        %1642 = vmatpush1.bf16.xpose.msra.mxu0 0
        %1643 = vmatprep.subr.bf16.mxu0 0
        %1644 = vmatpush1.bf16.xpose.msra.mxu0 0
        %1645 = vmatprep.subr.bf16.mxu0 0
        %1646 = vmatpush1.bf16.xpose.msra.mxu0 0
        %1647 = vmatprep.subr.bf16.mxu0 0
        %1648 = vmatpush1.bf16.xpose.msra.mxu0 0
        %1649 = vmatprep.subr.bf16.mxu0 0
        %1650 = vmatpush1.bf16.xpose.msra.mxu0 0
        %1651 = vmatprep.subr.bf16.mxu0 0
        %1652 = vmatpush1.bf16.xpose.msra.mxu0 0
        %1653 = vmatprep.subr.bf16.mxu0 0
        %1654 = vmatpush1.bf16.xpose.msra.mxu0 0
        %1655 = vmatprep.subr.bf16.mxu0 0
        %1656 = vmatpush1.bf16.xpose.msra.mxu0 0
        %1657 = vmatprep.subr.bf16.mxu0 0
        %1658 = vmatpush1.bf16.xpose.msra.mxu0 0
        %1659 = vmatprep.subr.bf16.mxu0 0
        %1660 = vmatpush1.bf16.xpose.msra.mxu0 0
        %1661 = vmatprep.subr.bf16.mxu0 0
        %1662 = vmatpush1.bf16.xpose.msra.mxu0 0
        %1663 = vmatprep.subr.bf16.mxu0 0
        %1664 = vmatpush1.bf16.xpose.msra.mxu0 0
        %1665 = vmatprep.subr.bf16.mxu0 0
        %1666 = vmatpush1.bf16.xpose.msra.mxu0 0
        %1667 = vmatprep.subr.bf16.mxu0 0
        %1668 = vmatpush1.bf16.xpose.msra.mxu0 0
        %1669 = vmatprep.subr.bf16.mxu0 0
        %1670 = vmatpush1.bf16.xpose.msra.mxu0 0
        %1671 = vmatprep.mubr.bf16.mxu0 0
        %1672 = vmatmul.mubr.bf16.gmra.mrb[0].mxu0 %v1634
        %v1673 = vpop.f32.mrb[0].mxu0
        %v1674 = vadd.f32 0.0, %v1673
        %v1675 = vpop.f32.mrb[0].mxu0
        %v1676 = vpop.f32.mrb[0].mxu0
        %v1677 = vadd.f32 0.0, %v1676
        %v1678 = vpop.f32.mrb[0].mxu0
        %1679 = vdwg.mxu0
        %1680 = vrot.lane.b32.xlu0 %v874, 32
        %v1681 = vpop.permute.xlu0 %1680
        %1682 = vrot.lane.b32.xlu0 %v876, 32
        %v1683 = vpop.permute.xlu0 %1682
        %v1685 = vsel %vm879, %v1681, 0
        %v1688 = vsel %vm879, %v1683, 0
        %1690 = vmatprep.subr.bf16.mxu0 0
        %1691 = vmatpush1.bf16.xpose.msra.mxu0 %v1688
        %1692 = vmatprep.subr.bf16.mxu0 0
        %1693 = vmatpush1.bf16.xpose.msra.mxu0 0
        %1694 = vmatprep.subr.bf16.mxu0 0
        %1695 = vmatpush1.bf16.xpose.msra.mxu0 0
        %1696 = vmatprep.subr.bf16.mxu0 0
        %1697 = vmatpush1.bf16.xpose.msra.mxu0 0
        %1698 = vmatprep.subr.bf16.mxu0 0
        %1699 = vmatpush1.bf16.xpose.msra.mxu0 0
        %1700 = vmatprep.subr.bf16.mxu0 0
        %1701 = vmatpush1.bf16.xpose.msra.mxu0 0
        %1702 = vmatprep.subr.bf16.mxu0 0
        %1703 = vmatpush1.bf16.xpose.msra.mxu0 0
        %1704 = vmatprep.subr.bf16.mxu0 0
        %1705 = vmatpush1.bf16.xpose.msra.mxu0 0
        %1706 = vmatprep.subr.bf16.mxu0 0
        %1707 = vmatpush1.bf16.xpose.msra.mxu0 0
        %1708 = vmatprep.subr.bf16.mxu0 0
        %1709 = vmatpush1.bf16.xpose.msra.mxu0 0
        %1710 = vmatprep.subr.bf16.mxu0 0
        %1711 = vmatpush1.bf16.xpose.msra.mxu0 0
        %1712 = vmatprep.subr.bf16.mxu0 0
        %1713 = vmatpush1.bf16.xpose.msra.mxu0 0
        %1714 = vmatprep.subr.bf16.mxu0 0
        %1715 = vmatpush1.bf16.xpose.msra.mxu0 0
        %1716 = vmatprep.subr.bf16.mxu0 0
        %1717 = vmatpush1.bf16.xpose.msra.mxu0 0
        %1718 = vmatprep.subr.bf16.mxu0 0
        %1719 = vmatpush1.bf16.xpose.msra.mxu0 0
        %1720 = vmatprep.subr.bf16.mxu0 0
        %1721 = vmatpush1.bf16.xpose.msra.mxu0 0
        %1722 = vmatprep.mubr.bf16.mxu0 0
        %1723 = vmatmul.mubr.bf16.gmra.mrb[0].mxu0 %v1685
        %v1724 = vpop.f32.mrb[0].mxu0
        %v1725 = vadd.f32 0.0, %v1724
        %v1726 = vpop.f32.mrb[0].mxu0
        %v1727 = vpop.f32.mrb[0].mxu0
        %v1728 = vadd.f32 0.0, %v1727
        %v1729 = vpop.f32.mrb[0].mxu0
        %1730 = vdwg.mxu0
        %v1731 = vsel %vm974, %v1674, -inf
        %1732 = vmax.xlane.f32.xlu0 %v1731
        %v1733 = vpop.xlane.xlu0 %1732
        %v1734 = vsel %vm974, %v1677, -inf
        %1735 = vmax.xlane.f32.xlu0 %v1734
        %v1736 = vpop.xlane.xlu0 %1735
        %v1737 = vsel %vm974, %v1725, -inf
        %1738 = vmax.xlane.f32.xlu0 %v1737
        %v1739 = vpop.xlane.xlu0 %1738
        %v1740 = vsel %vm974, %v1728, -inf
        %1741 = vmax.xlane.f32.xlu0 %v1740
        %v1742 = vpop.xlane.xlu0 %1741
        %v1743 = vsub.f32 %v1674, %v1733
        %v1744 = vsub.f32 %v1677, %v1736
        %v1745 = vsub.f32 %v1725, %v1739
        %v1746 = vsub.f32 %v1728, %v1742
        %v1747 = vmul.f32 %v1743, 1.442695
        %v1748 = vpow.pop %v1747
        %v1749 = vmul.f32 %v1744, 1.442695
        %v1750 = vpow.pop %v1749
        %v1751 = vmul.f32 %v1745, 1.442695
        %v1752 = vpow.pop %v1751
        %v1753 = vmul.f32 %v1746, 1.442695
        %v1754 = vpow.pop %v1753
        %v1755 = vsel %vm974, %v1748, 0.0
        %1756 = vadd.xlane.f32.xlu0 %v1755
        %v1757 = vpop.xlane.xlu0 %1756
        %v1758 = vsel %vm974, %v1750, 0.0
        %1759 = vadd.xlane.f32.xlu0 %v1758
        %v1760 = vpop.xlane.xlu0 %1759
        %v1761 = vsel %vm974, %v1752, 0.0
        %1762 = vadd.xlane.f32.xlu0 %v1761
        %v1763 = vpop.xlane.xlu0 %1762
        %v1764 = vsel %vm974, %v1754, 0.0
        %1765 = vadd.xlane.f32.xlu0 %v1764
        %v1766 = vpop.xlane.xlu0 %1765
        %v1767 = vrcp.pop %v1757
        %v1768 = vrcp.pop %v1760
        %v1769 = vrcp.pop %v1763
        %v1770 = vrcp.pop %v1766
        %v1771 = vmul.f32 %v1748, %v1767
        %v1772 = vmul.f32 %v1750, %v1768
        %v1773 = vmul.f32 %v1752, %v1769
        %v1774 = vmul.f32 %v1754, %v1770
        %v1775 = vpack.c.bf16 %v1772, %v1771
        %v1776 = vpack.c.bf16 %v1774, %v1773
        %1777 = vrot.lane.b32.xlu0 %v877, 32
        %v1778 = vpop.permute.xlu0 %1777
        %v1781 = vsel %vm974, %v1775, 0
        %1783 = vmatprep.subr.bf16.mxu0 0
        %1784 = vmatpush1.bf16.msra.mxu0 %v1778
        %1785 = vmatprep.subr.bf16.mxu0 0
        %1786 = vmatpush1.bf16.msra.mxu0 0
        %1787 = vmatprep.subr.bf16.mxu0 0
        %1788 = vmatpush1.bf16.msra.mxu0 0
        %1789 = vmatprep.subr.bf16.mxu0 0
        %1790 = vmatpush1.bf16.msra.mxu0 0
        %1791 = vmatprep.subr.bf16.mxu0 0
        %1792 = vmatpush1.bf16.msra.mxu0 0
        %1793 = vmatprep.subr.bf16.mxu0 0
        %1794 = vmatpush1.bf16.msra.mxu0 0
        %1795 = vmatprep.subr.bf16.mxu0 0
        %1796 = vmatpush1.bf16.msra.mxu0 0
        %1797 = vmatprep.subr.bf16.mxu0 0
        %1798 = vmatpush1.bf16.msra.mxu0 0
        %1799 = vmatprep.subr.bf16.mxu0 0
        %1800 = vmatpush1.bf16.msra.mxu0 0
        %1801 = vmatprep.subr.bf16.mxu0 0
        %1802 = vmatpush1.bf16.msra.mxu0 0
        %1803 = vmatprep.subr.bf16.mxu0 0
        %1804 = vmatpush1.bf16.msra.mxu0 0
        %1805 = vmatprep.subr.bf16.mxu0 0
        %1806 = vmatpush1.bf16.msra.mxu0 0
        %1807 = vmatprep.subr.bf16.mxu0 0
        %1808 = vmatpush1.bf16.msra.mxu0 0
        %1809 = vmatprep.subr.bf16.mxu0 0
        %1810 = vmatpush1.bf16.msra.mxu0 0
        %1811 = vmatprep.subr.bf16.mxu0 0
        %1812 = vmatpush1.bf16.msra.mxu0 0
        %1813 = vmatprep.subr.bf16.mxu0 0
        %1814 = vmatpush1.bf16.msra.mxu0 0
        %1815 = vmatprep.mubr.bf16.mxu0 0
        %1816 = vmatmul.mubr.bf16.gmra.mrb[0].mxu0 %v1781
        %v1817 = vpop.f32.mrb[0].mxu0
        %v1818 = vadd.f32 0.0, %v1817
        %v1819 = vpop.f32.mrb[0].mxu0
        %v1820 = vpop.f32.mrb[0].mxu0
        %v1821 = vadd.f32 0.0, %v1820
        %v1822 = vpop.f32.mrb[0].mxu0
        %1823 = vdwg.mxu0
        %1824 = vrot.lane.b32.xlu0 %v878, 32
        %v1825 = vpop.permute.xlu0 %1824
        %v1828 = vsel %vm974, %v1776, 0
        %1830 = vmatprep.subr.bf16.mxu0 0
        %1831 = vmatpush1.bf16.msra.mxu0 %v1825
        %1832 = vmatprep.subr.bf16.mxu0 0
        %1833 = vmatpush1.bf16.msra.mxu0 0
        %1834 = vmatprep.subr.bf16.mxu0 0
        %1835 = vmatpush1.bf16.msra.mxu0 0
        %1836 = vmatprep.subr.bf16.mxu0 0
        %1837 = vmatpush1.bf16.msra.mxu0 0
        %1838 = vmatprep.subr.bf16.mxu0 0
        %1839 = vmatpush1.bf16.msra.mxu0 0
        %1840 = vmatprep.subr.bf16.mxu0 0
        %1841 = vmatpush1.bf16.msra.mxu0 0
        %1842 = vmatprep.subr.bf16.mxu0 0
        %1843 = vmatpush1.bf16.msra.mxu0 0
        %1844 = vmatprep.subr.bf16.mxu0 0
        %1845 = vmatpush1.bf16.msra.mxu0 0
        %1846 = vmatprep.subr.bf16.mxu0 0
        %1847 = vmatpush1.bf16.msra.mxu0 0
        %1848 = vmatprep.subr.bf16.mxu0 0
        %1849 = vmatpush1.bf16.msra.mxu0 0
        %1850 = vmatprep.subr.bf16.mxu0 0
        %1851 = vmatpush1.bf16.msra.mxu0 0
        %1852 = vmatprep.subr.bf16.mxu0 0
        %1853 = vmatpush1.bf16.msra.mxu0 0
        %1854 = vmatprep.subr.bf16.mxu0 0
        %1855 = vmatpush1.bf16.msra.mxu0 0
        %1856 = vmatprep.subr.bf16.mxu0 0
        %1857 = vmatpush1.bf16.msra.mxu0 0
        %1858 = vmatprep.subr.bf16.mxu0 0
        %1859 = vmatpush1.bf16.msra.mxu0 0
        %1860 = vmatprep.subr.bf16.mxu0 0
        %1861 = vmatpush1.bf16.msra.mxu0 0
        %1862 = vmatprep.mubr.bf16.mxu0 0
        %1863 = vmatmul.mubr.bf16.gmra.mrb[0].mxu0 %v1828
        %v1864 = vpop.f32.mrb[0].mxu0
        %v1865 = vadd.f32 0.0, %v1864
        %v1866 = vpop.f32.mrb[0].mxu0
        %v1867 = vpop.f32.mrb[0].mxu0
        %v1868 = vadd.f32 0.0, %v1867
        %v1869 = vpop.f32.mrb[0].mxu0
        %1870 = vdwg.mxu0
        %v1871 = vpack.c.bf16 %v1821, %v1818
        %v1872 = vpack.c.bf16 %v1868, %v1865
        %1875 = vrot.lane.b32.xlu0 %v1871, 96
        %v1876 = vpop.permute.xlu0 %1875
        %1877 = vrot.lane.b32.xlu0 %v1872, 96
        %v1878 = vpop.permute.xlu0 %1877
        %vm1881 = vcmask 1048320
        %1882 = vst.msk [vmem:[#allocation2] sm:$0xff] %vm1881, %v1876
        %1883 = vst.msk [vmem:[#allocation2 + $0x8] sm:$0xff] %vm1881, %v1878
        %v1884 = vld [vmem:[#allocation2] sm:$0xff]
        %v1885 = vld [vmem:[#allocation2 + $0x8] sm:$0xff]
        %v1886 = vld [vmem:[#allocation8] sm:$0xf]
        %v1887 = vld [vmem:[#allocation8 + $0x4] sm:$0xf]
        %v1888 = vld [vmem:[#allocation8 + $0x8] sm:$0xf]
        %v1889 = vld [vmem:[#allocation8 + $0xc] sm:$0xf]
        %v1890 = vld [vmem:[#allocation8 + $0x10] sm:$0xf]
        %v1891 = vld [vmem:[#allocation8 + $0x14] sm:$0xf]
        %v1892 = vld [vmem:[#allocation8 + $0x18] sm:$0xf]
        %v1893 = vld [vmem:[#allocation8 + $0x1c] sm:$0xf]
        %v1894 = vld [vmem:[#allocation8 + $0x20] sm:$0xf]
        %v1895 = vld [vmem:[#allocation8 + $0x24] sm:$0xf]
        %v1896 = vld [vmem:[#allocation8 + $0x28] sm:$0xf]
        %v1897 = vld [vmem:[#allocation8 + $0x2c] sm:$0xf]
        %v1898 = vld [vmem:[#allocation8 + $0x30] sm:$0xf]
        %v1899 = vld [vmem:[#allocation8 + $0x34] sm:$0xf]
        %v1900 = vld [vmem:[#allocation8 + $0x38] sm:$0xf]
        %v1901 = vld [vmem:[#allocation8 + $0x3c] sm:$0xf]
        %v1918 = vunpack.c.l.b16 %v1886
        %v1919 = vunpack.c.l.b16 %v1887
        %v1920 = vunpack.c.l.b16 %v1888
        %v1921 = vunpack.c.l.b16 %v1889
        %v1922 = vunpack.c.l.b16 %v1890
        %v1923 = vunpack.c.l.b16 %v1891
        %v1924 = vunpack.c.l.b16 %v1892
        %v1925 = vunpack.c.l.b16 %v1893
        %v1926 = vunpack.c.l.b16 %v1894
        %v1927 = vunpack.c.l.b16 %v1895
        %v1928 = vunpack.c.l.b16 %v1896
        %v1929 = vunpack.c.l.b16 %v1897
        %v1930 = vunpack.c.l.b16 %v1898
        %v1931 = vunpack.c.l.b16 %v1899
        %v1932 = vunpack.c.l.b16 %v1900
        %v1933 = vunpack.c.l.b16 %v1901
        %v1934 = vpack.c.b16 %v1919, %v1918
        %v1935 = vpack.c.b16 %v1921, %v1920
        %v1936 = vpack.c.b16 %v1923, %v1922
        %v1937 = vpack.c.b16 %v1925, %v1924
        %v1938 = vpack.c.b16 %v1927, %v1926
        %v1939 = vpack.c.b16 %v1929, %v1928
        %v1940 = vpack.c.b16 %v1931, %v1930
        %v1941 = vpack.c.b16 %v1933, %v1932
        %1950 = vmatprep.subr.bf16.mxu0 0
        %1951 = vmatpush1.bf16.msra.mxu0 %v1934
        %1952 = vmatprep.subr.bf16.mxu0 0
        %1953 = vmatpush1.bf16.msra.mxu0 %v1935
        %1954 = vmatprep.subr.bf16.mxu0 0
        %1955 = vmatpush1.bf16.msra.mxu0 %v1936
        %1956 = vmatprep.subr.bf16.mxu0 0
        %1957 = vmatpush1.bf16.msra.mxu0 %v1937
        %1958 = vmatprep.subr.bf16.mxu0 0
        %1959 = vmatpush1.bf16.msra.mxu0 %v1938
        %1960 = vmatprep.subr.bf16.mxu0 0
        %1961 = vmatpush1.bf16.msra.mxu0 %v1939
        %1962 = vmatprep.subr.bf16.mxu0 0
        %1963 = vmatpush1.bf16.msra.mxu0 %v1940
        %1964 = vmatprep.subr.bf16.mxu0 0
        %1965 = vmatpush1.bf16.msra.mxu0 %v1941
        %1966 = vmatprep.subr.bf16.mxu0 0
        %1967 = vmatpush1.bf16.msra.mxu0 0
        %1968 = vmatprep.subr.bf16.mxu0 0
        %1969 = vmatpush1.bf16.msra.mxu0 0
        %1970 = vmatprep.subr.bf16.mxu0 0
        %1971 = vmatpush1.bf16.msra.mxu0 0
        %1972 = vmatprep.subr.bf16.mxu0 0
        %1973 = vmatpush1.bf16.msra.mxu0 0
        %1974 = vmatprep.subr.bf16.mxu0 0
        %1975 = vmatpush1.bf16.msra.mxu0 0
        %1976 = vmatprep.subr.bf16.mxu0 0
        %1977 = vmatpush1.bf16.msra.mxu0 0
        %1978 = vmatprep.subr.bf16.mxu0 0
        %1979 = vmatpush1.bf16.msra.mxu0 0
        %1980 = vmatprep.subr.bf16.mxu0 0
        %1981 = vmatpush1.bf16.msra.mxu0 0
        %1982 = vmatprep.mubr.bf16.mxu0 0
        %1983 = vmatmul.mubr.bf16.gmra.mrb[0].mxu0 %v1884
        %v1984 = vpop.f32.mrb[0].mxu0
        %v1985 = vadd.f32 0.0, %v1984
        %v1986 = vpop.f32.mrb[0].mxu0
        %v1987 = vpop.f32.mrb[0].mxu0
        %v1988 = vadd.f32 0.0, %v1987
        %v1989 = vpop.f32.mrb[0].mxu0
        %1990 = vmatprep.mubr.bf16.mxu0 0
        %1991 = vmatmul.mubr.bf16.gmra.mrb[0].mxu0 %v1885
        %v1992 = vpop.f32.mrb[0].mxu0
        %v1993 = vadd.f32 0.0, %v1992
        %v1994 = vpop.f32.mrb[0].mxu0
        %v1995 = vpop.f32.mrb[0].mxu0
        %v1996 = vadd.f32 0.0, %v1995
        %v1997 = vpop.f32.mrb[0].mxu0
        %1998 = vdwg.mxu0
        %v1999 = vadd.f32 %v521, %v1985
        %v2000 = vadd.f32 %v522, %v1988
        %v2001 = vadd.f32 %v523, %v1993
        %v2002 = vadd.f32 %v524, %v1996
        %v2003 = vld [vmem:[%s6] sm:$0x1]
        %v2005 = vlaneseq
        %v2006 = vshrl.u32 %v2005, 7
        %v2007 = vsub.s32 0, %v2006
        %v2008 = vrot.slane %v2003, %v2007
        %v2010 = vadd.f32 %v1999, %v2008
        %v2011 = vadd.f32 %v2000, %v2008
        %v2012 = vadd.f32 %v2001, %v2008
        %v2013 = vadd.f32 %v2002, %v2008
        %v2014 = vld [vmem:[%s7] sm:$0x1]
        %v2015 = vld [vmem:[%s8] sm:$0x1]
        %2016 = vadd.xlane.f32.xlu0 %v2010
        %v2017 = vpop.xlane.xlu0 %2016
        %2018 = vadd.xlane.f32.xlu0 %v2011
        %v2019 = vpop.xlane.xlu0 %2018
        %2020 = vadd.xlane.f32.xlu0 %v2012
        %v2021 = vpop.xlane.xlu0 %2020
        %2022 = vadd.xlane.f32.xlu0 %v2013
        %v2023 = vpop.xlane.xlu0 %2022
        %v2024 = vmul.f32 %v2017, %v535
        %v2025 = vmul.f32 %v2019, %v535
        %v2026 = vmul.f32 %v2021, %v535
        %v2027 = vmul.f32 %v2023, %v535
        %v2028 = vsub.f32 %v2010, %v2024
        %v2029 = vsub.f32 %v2011, %v2025
        %v2030 = vsub.f32 %v2012, %v2026
        %v2031 = vsub.f32 %v2013, %v2027
        %v2032 = vmul.f32 %v2028, %v2028
        %v2033 = vmul.f32 %v2029, %v2029
        %v2034 = vmul.f32 %v2030, %v2030
        %v2035 = vmul.f32 %v2031, %v2031
        %2036 = vadd.xlane.f32.xlu0 %v2032
        %v2037 = vpop.xlane.xlu0 %2036
        %2038 = vadd.xlane.f32.xlu0 %v2033
        %v2039 = vpop.xlane.xlu0 %2038
        %2040 = vadd.xlane.f32.xlu0 %v2034
        %v2041 = vpop.xlane.xlu0 %2040
        %2042 = vadd.xlane.f32.xlu0 %v2035
        %v2043 = vpop.xlane.xlu0 %2042
        %v2044 = vmul.f32 %v2037, %v535
        %v2045 = vmul.f32 %v2039, %v535
        %v2046 = vmul.f32 %v2041, %v535
        %v2047 = vmul.f32 %v2043, %v535
        %v2048 = vadd.f32 %v2044, 1e-05
        %v2049 = vadd.f32 %v2045, 1e-05
        %v2050 = vadd.f32 %v2046, 1e-05
        %v2051 = vadd.f32 %v2047, 1e-05
        %v2052 = vrsqrt.pop %v2048
        %v2053 = vrsqrt.pop %v2049
        %v2054 = vrsqrt.pop %v2050
        %v2055 = vrsqrt.pop %v2051
        %v2056 = vmul.f32 %v2028, %v2052
        %v2057 = vmul.f32 %v2029, %v2053
        %v2058 = vmul.f32 %v2030, %v2054
        %v2059 = vmul.f32 %v2031, %v2055
        %v2061 = vlaneseq
        %v2062 = vshrl.u32 %v2061, 7
        %v2063 = vsub.s32 0, %v2062
        %v2064 = vrot.slane %v2014, %v2063
        %v2066 = vmul.f32 %v2056, %v2064
        %v2067 = vmul.f32 %v2057, %v2064
        %v2068 = vmul.f32 %v2058, %v2064
        %v2069 = vmul.f32 %v2059, %v2064
        %v2071 = vlaneseq
        %v2072 = vshrl.u32 %v2071, 7
        %v2073 = vsub.s32 0, %v2072
        %v2074 = vrot.slane %v2015, %v2073
        %v2076 = vadd.f32 %v2066, %v2074
        %v2077 = vadd.f32 %v2067, %v2074
        %v2078 = vadd.f32 %v2068, %v2074
        %v2079 = vadd.f32 %v2069, %v2074
        %v2080 = vpack.c.bf16 %v2077, %v2076
        %v2081 = vpack.c.bf16 %v2079, %v2078
        %v2082 = vld [vmem:[#allocation9] sm:$0xff]
        %v2083 = vld [vmem:[#allocation9 + $0x8] sm:$0xff]
        %v2084 = vld [vmem:[#allocation9 + $0x10] sm:$0xff]
        %v2085 = vld [vmem:[#allocation9 + $0x18] sm:$0xff]
        %v2086 = vld [vmem:[#allocation9 + $0x20] sm:$0xff]
        %v2087 = vld [vmem:[#allocation9 + $0x28] sm:$0xff]
        %v2088 = vld [vmem:[#allocation9 + $0x30] sm:$0xff]
        %v2089 = vld [vmem:[#allocation9 + $0x38] sm:$0xff]
        %v2090 = vld [vmem:[#allocation9 + $0x40] sm:$0xff]
        %v2091 = vld [vmem:[#allocation9 + $0x48] sm:$0xff]
        %v2092 = vld [vmem:[#allocation9 + $0x50] sm:$0xff]
        %v2093 = vld [vmem:[#allocation9 + $0x58] sm:$0xff]
        %v2094 = vld [vmem:[#allocation9 + $0x60] sm:$0xff]
        %v2095 = vld [vmem:[#allocation9 + $0x68] sm:$0xff]
        %v2096 = vld [vmem:[#allocation9 + $0x70] sm:$0xff]
        %v2097 = vld [vmem:[#allocation9 + $0x78] sm:$0xff]
        %v2098 = vld [vmem:[%s10] sm:$0x3]
        %v2100 = vlaneseq
        %v2101 = vshrl.u32 %v2100, 7
        %v2102 = vsub.s32 0, %v2101
        %v2103 = vrot.slane %v2098, %v2102
        %v2104 = vlaneseq
        %v2105 = vshrl.u32 %v2104, 7
        %v2106 = vsub.s32 1, %v2105
        %v2107 = vrot.slane %v2098, %v2106
        %v2126 = vunpack.c.l.b16 %v2082
        %v2127 = vunpack.c.h.b16 %v2082
        %v2128 = vunpack.c.l.b16 %v2083
        %v2129 = vunpack.c.h.b16 %v2083
        %v2130 = vunpack.c.l.b16 %v2084
        %v2131 = vunpack.c.h.b16 %v2084
        %v2132 = vunpack.c.l.b16 %v2085
        %v2133 = vunpack.c.h.b16 %v2085
        %v2134 = vunpack.c.l.b16 %v2086
        %v2135 = vunpack.c.h.b16 %v2086
        %v2136 = vunpack.c.l.b16 %v2087
        %v2137 = vunpack.c.h.b16 %v2087
        %v2138 = vunpack.c.l.b16 %v2088
        %v2139 = vunpack.c.h.b16 %v2088
        %v2140 = vunpack.c.l.b16 %v2089
        %v2141 = vunpack.c.h.b16 %v2089
        %v2142 = vunpack.c.l.b16 %v2090
        %v2143 = vunpack.c.h.b16 %v2090
        %v2144 = vunpack.c.l.b16 %v2091
        %v2145 = vunpack.c.h.b16 %v2091
        %v2146 = vunpack.c.l.b16 %v2092
        %v2147 = vunpack.c.h.b16 %v2092
        %v2148 = vunpack.c.l.b16 %v2093
        %v2149 = vunpack.c.h.b16 %v2093
        %v2150 = vunpack.c.l.b16 %v2094
        %v2151 = vunpack.c.h.b16 %v2094
        %v2152 = vunpack.c.l.b16 %v2095
        %v2153 = vunpack.c.h.b16 %v2095
        %v2154 = vunpack.c.l.b16 %v2096
        %v2155 = vunpack.c.h.b16 %v2096
        %v2156 = vunpack.c.l.b16 %v2097
        %v2157 = vunpack.c.h.b16 %v2097
        %v2158 = vpack.c.b16 %v2128, %v2126
        %v2159 = vpack.c.b16 %v2129, %v2127
        %v2160 = vpack.c.b16 %v2132, %v2130
        %v2161 = vpack.c.b16 %v2133, %v2131
        %v2162 = vpack.c.b16 %v2136, %v2134
        %v2163 = vpack.c.b16 %v2137, %v2135
        %v2164 = vpack.c.b16 %v2140, %v2138
        %v2165 = vpack.c.b16 %v2141, %v2139
        %v2166 = vpack.c.b16 %v2144, %v2142
        %v2167 = vpack.c.b16 %v2145, %v2143
        %v2168 = vpack.c.b16 %v2148, %v2146
        %v2169 = vpack.c.b16 %v2149, %v2147
        %v2170 = vpack.c.b16 %v2152, %v2150
        %v2171 = vpack.c.b16 %v2153, %v2151
        %v2172 = vpack.c.b16 %v2156, %v2154
        %v2173 = vpack.c.b16 %v2157, %v2155
        %2190 = vmatprep.subr.bf16.mxu0 %v2159
        %2191 = vmatpush1.bf16.msra.mxu0 %v2158
        %2192 = vmatprep.subr.bf16.mxu0 %v2161
        %2193 = vmatpush1.bf16.msra.mxu0 %v2160
        %2194 = vmatprep.subr.bf16.mxu0 %v2163
        %2195 = vmatpush1.bf16.msra.mxu0 %v2162
        %2196 = vmatprep.subr.bf16.mxu0 %v2165
        %2197 = vmatpush1.bf16.msra.mxu0 %v2164
        %2198 = vmatprep.subr.bf16.mxu0 %v2167
        %2199 = vmatpush1.bf16.msra.mxu0 %v2166
        %2200 = vmatprep.subr.bf16.mxu0 %v2169
        %2201 = vmatpush1.bf16.msra.mxu0 %v2168
        %2202 = vmatprep.subr.bf16.mxu0 %v2171
        %2203 = vmatpush1.bf16.msra.mxu0 %v2170
        %2204 = vmatprep.subr.bf16.mxu0 %v2173
        %2205 = vmatpush1.bf16.msra.mxu0 %v2172
        %2206 = vmatprep.subr.bf16.mxu0 0
        %2207 = vmatpush1.bf16.msra.mxu0 0
        %2208 = vmatprep.subr.bf16.mxu0 0
        %2209 = vmatpush1.bf16.msra.mxu0 0
        %2210 = vmatprep.subr.bf16.mxu0 0
        %2211 = vmatpush1.bf16.msra.mxu0 0
        %2212 = vmatprep.subr.bf16.mxu0 0
        %2213 = vmatpush1.bf16.msra.mxu0 0
        %2214 = vmatprep.subr.bf16.mxu0 0
        %2215 = vmatpush1.bf16.msra.mxu0 0
        %2216 = vmatprep.subr.bf16.mxu0 0
        %2217 = vmatpush1.bf16.msra.mxu0 0
        %2218 = vmatprep.subr.bf16.mxu0 0
        %2219 = vmatpush1.bf16.msra.mxu0 0
        %2220 = vmatprep.subr.bf16.mxu0 0
        %2221 = vmatpush1.bf16.msra.mxu0 0
        %2222 = vmatprep.mubr.bf16.mxu0 0
        %2223 = vmatmul.mubr.bf16.gmra.mrb[0].mxu0 %v2080
        %v2224 = vpop.f32.mrb[0].mxu0
        %v2225 = vadd.f32 %v2103, %v2224
        %v2226 = vpop.f32.mrb[0].mxu0
        %v2227 = vadd.f32 %v2107, %v2226
        %v2228 = vpop.f32.mrb[0].mxu0
        %v2229 = vadd.f32 %v2103, %v2228
        %v2230 = vpop.f32.mrb[0].mxu0
        %v2231 = vadd.f32 %v2107, %v2230
        %2232 = vmatprep.mubr.bf16.mxu0 0
        %2233 = vmatmul.mubr.bf16.gmra.mrb[0].mxu0 %v2081
        %v2234 = vpop.f32.mrb[0].mxu0
        %v2235 = vadd.f32 %v2103, %v2234
        %v2236 = vpop.f32.mrb[0].mxu0
        %v2237 = vadd.f32 %v2107, %v2236
        %v2238 = vpop.f32.mrb[0].mxu0
        %v2239 = vadd.f32 %v2103, %v2238
        %v2240 = vpop.f32.mrb[0].mxu0
        %v2241 = vadd.f32 %v2107, %v2240
        %2242 = vdwg.mxu0
        %v2243 = vmul.f32 %v2225, %v2225
        %v2244 = vmul.f32 %v2227, %v2227
        %v2245 = vmul.f32 %v2229, %v2229
        %v2246 = vmul.f32 %v2231, %v2231
        %v2247 = vmul.f32 %v2235, %v2235
        %v2248 = vmul.f32 %v2237, %v2237
        %v2249 = vmul.f32 %v2239, %v2239
        %v2250 = vmul.f32 %v2241, %v2241
        %v2251 = vmul.f32 %v2225, %v2243
        %v2252 = vmul.f32 %v2227, %v2244
        %v2253 = vmul.f32 %v2229, %v2245
        %v2254 = vmul.f32 %v2231, %v2246
        %v2255 = vmul.f32 %v2235, %v2247
        %v2256 = vmul.f32 %v2237, %v2248
        %v2257 = vmul.f32 %v2239, %v2249
        %v2258 = vmul.f32 %v2241, %v2250
        %v2259 = vmul.f32 %v2251, 0.044715
        %v2260 = vmul.f32 %v2252, 0.044715
        %v2261 = vmul.f32 %v2253, 0.044715
        %v2262 = vmul.f32 %v2254, 0.044715
        %v2263 = vmul.f32 %v2255, 0.044715
        %v2264 = vmul.f32 %v2256, 0.044715
        %v2265 = vmul.f32 %v2257, 0.044715
        %v2266 = vmul.f32 %v2258, 0.044715
        %v2267 = vadd.f32 %v2225, %v2259
        %v2268 = vadd.f32 %v2227, %v2260
        %v2269 = vadd.f32 %v2229, %v2261
        %v2270 = vadd.f32 %v2231, %v2262
        %v2271 = vadd.f32 %v2235, %v2263
        %v2272 = vadd.f32 %v2237, %v2264
        %v2273 = vadd.f32 %v2239, %v2265
        %v2274 = vadd.f32 %v2241, %v2266
        %v2275 = vmul.f32 %v2267, 0.7978846
        %v2276 = vmul.f32 %v2268, 0.7978846
        %v2277 = vmul.f32 %v2269, 0.7978846
        %v2278 = vmul.f32 %v2270, 0.7978846
        %v2279 = vmul.f32 %v2271, 0.7978846
        %v2280 = vmul.f32 %v2272, 0.7978846
        %v2281 = vmul.f32 %v2273, 0.7978846
        %v2282 = vmul.f32 %v2274, 0.7978846
        %v2283 = vtanh.pop %v2275
        %v2284 = vtanh.pop %v2276
        %v2285 = vtanh.pop %v2277
        %v2286 = vtanh.pop %v2278
        %v2287 = vtanh.pop %v2279
        %v2288 = vtanh.pop %v2280
        %v2289 = vtanh.pop %v2281
        %v2290 = vtanh.pop %v2282
        %v2291 = vadd.f32 %v2283, 1.0
        %v2292 = vadd.f32 %v2284, 1.0
        %v2293 = vadd.f32 %v2285, 1.0
        %v2294 = vadd.f32 %v2286, 1.0
        %v2295 = vadd.f32 %v2287, 1.0
        %v2296 = vadd.f32 %v2288, 1.0
        %v2297 = vadd.f32 %v2289, 1.0
        %v2298 = vadd.f32 %v2290, 1.0
        %v2299 = vmul.f32 %v2291, 0.5
        %v2300 = vmul.f32 %v2292, 0.5
        %v2301 = vmul.f32 %v2293, 0.5
        %v2302 = vmul.f32 %v2294, 0.5
        %v2303 = vmul.f32 %v2295, 0.5
        %v2304 = vmul.f32 %v2296, 0.5
        %v2305 = vmul.f32 %v2297, 0.5
        %v2306 = vmul.f32 %v2298, 0.5
        %v2307 = vmul.f32 %v2225, %v2299
        %v2308 = vmul.f32 %v2227, %v2300
        %v2309 = vmul.f32 %v2229, %v2301
        %v2310 = vmul.f32 %v2231, %v2302
        %v2311 = vmul.f32 %v2235, %v2303
        %v2312 = vmul.f32 %v2237, %v2304
        %v2313 = vmul.f32 %v2239, %v2305
        %v2314 = vmul.f32 %v2241, %v2306
        %v2315 = vpack.c.bf16 %v2309, %v2307
        %v2316 = vpack.c.bf16 %v2310, %v2308
        %v2317 = vpack.c.bf16 %v2313, %v2311
        %v2318 = vpack.c.bf16 %v2314, %v2312
        %v2319 = vld [vmem:[#allocation11] sm:$0xf]
        %v2320 = vld [vmem:[#allocation11 + $0x4] sm:$0xf]
        %v2321 = vld [vmem:[#allocation11 + $0x8] sm:$0xf]
        %v2322 = vld [vmem:[#allocation11 + $0xc] sm:$0xf]
        %v2323 = vld [vmem:[#allocation11 + $0x10] sm:$0xf]
        %v2324 = vld [vmem:[#allocation11 + $0x14] sm:$0xf]
        %v2325 = vld [vmem:[#allocation11 + $0x18] sm:$0xf]
        %v2326 = vld [vmem:[#allocation11 + $0x1c] sm:$0xf]
        %v2327 = vld [vmem:[#allocation11 + $0x20] sm:$0xf]
        %v2328 = vld [vmem:[#allocation11 + $0x24] sm:$0xf]
        %v2329 = vld [vmem:[#allocation11 + $0x28] sm:$0xf]
        %v2330 = vld [vmem:[#allocation11 + $0x2c] sm:$0xf]
        %v2331 = vld [vmem:[#allocation11 + $0x30] sm:$0xf]
        %v2332 = vld [vmem:[#allocation11 + $0x34] sm:$0xf]
        %v2333 = vld [vmem:[#allocation11 + $0x38] sm:$0xf]
        %v2334 = vld [vmem:[#allocation11 + $0x3c] sm:$0xf]
        %v2335 = vld [vmem:[#allocation11 + $0x40] sm:$0xf]
        %v2336 = vld [vmem:[#allocation11 + $0x44] sm:$0xf]
        %v2337 = vld [vmem:[#allocation11 + $0x48] sm:$0xf]
        %v2338 = vld [vmem:[#allocation11 + $0x4c] sm:$0xf]
        %v2339 = vld [vmem:[#allocation11 + $0x50] sm:$0xf]
        %v2340 = vld [vmem:[#allocation11 + $0x54] sm:$0xf]
        %v2341 = vld [vmem:[#allocation11 + $0x58] sm:$0xf]
        %v2342 = vld [vmem:[#allocation11 + $0x5c] sm:$0xf]
        %v2343 = vld [vmem:[#allocation11 + $0x60] sm:$0xf]
        %v2344 = vld [vmem:[#allocation11 + $0x64] sm:$0xf]
        %v2345 = vld [vmem:[#allocation11 + $0x68] sm:$0xf]
        %v2346 = vld [vmem:[#allocation11 + $0x6c] sm:$0xf]
        %v2347 = vld [vmem:[#allocation11 + $0x70] sm:$0xf]
        %v2348 = vld [vmem:[#allocation11 + $0x74] sm:$0xf]
        %v2349 = vld [vmem:[#allocation11 + $0x78] sm:$0xf]
        %v2350 = vld [vmem:[#allocation11 + $0x7c] sm:$0xf]
        %v2383 = vunpack.c.l.b16 %v2319
        %v2384 = vunpack.c.l.b16 %v2320
        %v2385 = vunpack.c.l.b16 %v2321
        %v2386 = vunpack.c.l.b16 %v2322
        %v2387 = vunpack.c.l.b16 %v2323
        %v2388 = vunpack.c.l.b16 %v2324
        %v2389 = vunpack.c.l.b16 %v2325
        %v2390 = vunpack.c.l.b16 %v2326
        %v2391 = vunpack.c.l.b16 %v2327
        %v2392 = vunpack.c.l.b16 %v2328
        %v2393 = vunpack.c.l.b16 %v2329
        %v2394 = vunpack.c.l.b16 %v2330
        %v2395 = vunpack.c.l.b16 %v2331
        %v2396 = vunpack.c.l.b16 %v2332
        %v2397 = vunpack.c.l.b16 %v2333
        %v2398 = vunpack.c.l.b16 %v2334
        %v2399 = vunpack.c.l.b16 %v2335
        %v2400 = vunpack.c.l.b16 %v2336
        %v2401 = vunpack.c.l.b16 %v2337
        %v2402 = vunpack.c.l.b16 %v2338
        %v2403 = vunpack.c.l.b16 %v2339
        %v2404 = vunpack.c.l.b16 %v2340
        %v2405 = vunpack.c.l.b16 %v2341
        %v2406 = vunpack.c.l.b16 %v2342
        %v2407 = vunpack.c.l.b16 %v2343
        %v2408 = vunpack.c.l.b16 %v2344
        %v2409 = vunpack.c.l.b16 %v2345
        %v2410 = vunpack.c.l.b16 %v2346
        %v2411 = vunpack.c.l.b16 %v2347
        %v2412 = vunpack.c.l.b16 %v2348
        %v2413 = vunpack.c.l.b16 %v2349
        %v2414 = vunpack.c.l.b16 %v2350
        %v2415 = vpack.c.b16 %v2384, %v2383
        %v2416 = vpack.c.b16 %v2386, %v2385
        %v2417 = vpack.c.b16 %v2388, %v2387
        %v2418 = vpack.c.b16 %v2390, %v2389
        %v2419 = vpack.c.b16 %v2392, %v2391
        %v2420 = vpack.c.b16 %v2394, %v2393
        %v2421 = vpack.c.b16 %v2396, %v2395
        %v2422 = vpack.c.b16 %v2398, %v2397
        %v2423 = vpack.c.b16 %v2400, %v2399
        %v2424 = vpack.c.b16 %v2402, %v2401
        %v2425 = vpack.c.b16 %v2404, %v2403
        %v2426 = vpack.c.b16 %v2406, %v2405
        %v2427 = vpack.c.b16 %v2408, %v2407
        %v2428 = vpack.c.b16 %v2410, %v2409
        %v2429 = vpack.c.b16 %v2412, %v2411
        %v2430 = vpack.c.b16 %v2414, %v2413
        %2447 = vmatprep.subr.bf16.mxu0 0
        %2448 = vmatpush1.bf16.msra.mxu0 %v2415
        %2449 = vmatprep.subr.bf16.mxu0 0
        %2450 = vmatpush1.bf16.msra.mxu0 %v2416
        %2451 = vmatprep.subr.bf16.mxu0 0
        %2452 = vmatpush1.bf16.msra.mxu0 %v2417
        %2453 = vmatprep.subr.bf16.mxu0 0
        %2454 = vmatpush1.bf16.msra.mxu0 %v2418
        %2455 = vmatprep.subr.bf16.mxu0 0
        %2456 = vmatpush1.bf16.msra.mxu0 %v2419
        %2457 = vmatprep.subr.bf16.mxu0 0
        %2458 = vmatpush1.bf16.msra.mxu0 %v2420
        %2459 = vmatprep.subr.bf16.mxu0 0
        %2460 = vmatpush1.bf16.msra.mxu0 %v2421
        %2461 = vmatprep.subr.bf16.mxu0 0
        %2462 = vmatpush1.bf16.msra.mxu0 %v2422
        %2463 = vmatprep.subr.bf16.mxu0 0
        %2464 = vmatpush1.bf16.msra.mxu0 %v2423
        %2465 = vmatprep.subr.bf16.mxu0 0
        %2466 = vmatpush1.bf16.msra.mxu0 %v2424
        %2467 = vmatprep.subr.bf16.mxu0 0
        %2468 = vmatpush1.bf16.msra.mxu0 %v2425
        %2469 = vmatprep.subr.bf16.mxu0 0
        %2470 = vmatpush1.bf16.msra.mxu0 %v2426
        %2471 = vmatprep.subr.bf16.mxu0 0
        %2472 = vmatpush1.bf16.msra.mxu0 %v2427
        %2473 = vmatprep.subr.bf16.mxu0 0
        %2474 = vmatpush1.bf16.msra.mxu0 %v2428
        %2475 = vmatprep.subr.bf16.mxu0 0
        %2476 = vmatpush1.bf16.msra.mxu0 %v2429
        %2477 = vmatprep.subr.bf16.mxu0 0
        %2478 = vmatpush1.bf16.msra.mxu0 %v2430
        %2479 = vmatprep.mubr.bf16.mxu0 %v2316
        %2480 = vmatmul.mubr.bf16.gmra.mrb[0].mxu0 %v2315
        %v2481 = vpop.f32.mrb[0].mxu0
        %v2482 = vadd.f32 0.0, %v2481
        %v2483 = vpop.f32.mrb[0].mxu0
        %v2484 = vpop.f32.mrb[0].mxu0
        %v2485 = vadd.f32 0.0, %v2484
        %v2486 = vpop.f32.mrb[0].mxu0
        %2487 = vmatprep.mubr.bf16.mxu0 %v2318
        %2488 = vmatmul.mubr.bf16.gmra.mrb[0].mxu0 %v2317
        %v2489 = vpop.f32.mrb[0].mxu0
        %v2490 = vadd.f32 0.0, %v2489
        %v2491 = vpop.f32.mrb[0].mxu0
        %v2492 = vpop.f32.mrb[0].mxu0
        %v2493 = vadd.f32 0.0, %v2492
        %v2494 = vpop.f32.mrb[0].mxu0
        %2495 = vdwg.mxu0
        %v2496 = vadd.f32 %v2010, %v2482
        %v2497 = vadd.f32 %v2011, %v2485
        %v2498 = vadd.f32 %v2012, %v2490
        %v2499 = vadd.f32 %v2013, %v2493
        %v2500 = vld [vmem:[%s12] sm:$0x1]
        %v2502 = vlaneseq
        %v2503 = vshrl.u32 %v2502, 7
        %v2504 = vsub.s32 0, %v2503
        %v2505 = vrot.slane %v2500, %v2504
        %v2507 = vadd.f32 %v2496, %v2505
        %v2508 = vadd.f32 %v2497, %v2505
        %v2509 = vadd.f32 %v2498, %v2505
        %v2510 = vadd.f32 %v2499, %v2505
        %2511 = vst [vmem:[%s517] sm:$0xff] %v2507
        %2512 = vst [vmem:[%s517 + $0x8] sm:$0xff] %v2508
        %2513 = vst [vmem:[%s517 + $0x10] sm:$0xff] %v2509
        %2514 = vst [vmem:[%s517 + $0x18] sm:$0xff] %v2510
        %s2515 = sand.u32 %s318, 1
        %s2516 = scalar_lea.sflag [#allocation5], %s2515
        %s2517 = sand.u32 %s318, 1
        %s2518 = smul.addr %s2517, 32
        %s2519 = scalar_lea.vmem [#allocation12], %s2518
        // Predicated region
        $region93: #{tpu_custom_call.1} parent=71 // pred_check
          %p2520 = pneg %p328
        $region94: #{tpu_custom_call.1} parent=71 // pred_check_branch
          %2522 = sbr.rel (%p2520) target = $region96
        $region95: #{tpu_custom_call.1} parent=71 // pred_region
          %s2523 = smul.u32 2, %s32
          %s2525 = ssub.s32 512, 512
          %2526 = vsyncadd %s2516, %s2525
          %s2527 = smul.addr %s2523, 2
          %s2528 = smul.addr %s2527, 128
          %s2529 = scalar_lea.hbm %s13, %s2528
          %s2530 = sshll.u32 %s2519, 4
          %s2531 = int_to_ptr.vmem [resolvable:$true] %s2530
          %2536 = dma.vmem_to_hbm [thread:$0]  %s2531, 512, %s2529, %s2516, 128, 128, 8
        $region96: #{tpu_custom_call.1} parent=71 // pred_fallthru
          _
      $region72: #{tpu_custom_call.1} parent=5 // pred_fallthru
        _
      %p2537 = scmp.le.s32.totalorder 2, %s27
      // Predicated region
      $region97: #{tpu_custom_call.1} parent=5 // pred_check
        %p2538 = pneg %p2537
      $region98: #{tpu_custom_call.1} parent=5 // pred_check_branch
        %2540 = sbr.rel (%p2538) target = $region100
      $region99: #{tpu_custom_call.1} parent=5 // pred_region
        %s2541 = ssub.s32 %s27, 2
        // Predicated region
        $region101: #{tpu_custom_call.1} parent=99 // pred_check
          %p2542 = pneg %p334
        $region102: #{tpu_custom_call.1} parent=99 // pred_check_branch
          %2544 = sbr.rel (%p2542) target = $region104
        $region103: #{tpu_custom_call.1} parent=99 // pred_region
          %s2545 = sand.u32 %s319, 1
          %s2546 = scalar_lea.sflag [#allocation5], %s2545
          %s2547 = sand.u32 %s319, 1
          %s2548 = smul.addr %s2547, 32
          %s2549 = scalar_lea.vmem [#allocation12], %s2548
          %2550 = dma.done %s2546, 512
        $region104: #{tpu_custom_call.1} parent=99 // pred_fallthru
          _
      $region100: #{tpu_custom_call.1} parent=5 // pred_fallthru
        _
    $region6: #{tpu_custom_call.1} parent=1 // loop_footer
      %s31 = sadd.s32 1, %s27
    $region7: #{tpu_custom_call.1} parent=1 // loop_footer_branch
      %26 = sbr.rel target = $region3
    $region8: #{tpu_custom_call.1} parent=1 // loop_exit
      _
    %2551 = vsyncpa [#allocation4], 1
    %s2552 = scalar_lea.sflag [#allocation4], 1
    %2553 = vsyncpa %s2552, 1
    %2554 = vsyncpa [#allocation7], 1
    %2555 = vsyncpa [#allocation10], 1
    %2556 = vsyncpa [#allocation5], 1
    %s2557 = scalar_lea.sflag [#allocation5], 1
    %2558 = vsyncpa %s2557, 1

// kernel: tpu_custom_call.1
$region0: #{tpu_custom_call.1}
  #allocation0 [shape = 'u32[]', space=smem, size = 0x4, offset = 0x4, fixed_abs, tag = 'smem constant byte address 0x4 - core index']
  #allocation1 [shape = 'u32[144,128]{1,0:T(1,128)}', space=vmem, size = 0x12000, scoped, tag = 'internal scratch']
  #allocation2 [shape = 'bf16[32,128]{1,0:T(16,128)(2,1)}', space=vmem, size = 0x2000, scoped, tag = 'scratch operand']
  %s0 = inlined_call_operand.hbm [shape: f32[4,16,128], index: 0, kind: input, shape index: {}]
  %s1 = inlined_call_operand.vmem [shape: f32[1,128], index: 1, kind: input, shape index: {}]
  %s2 = inlined_call_operand.vmem [shape: f32[1,128], index: 2, kind: input, shape index: {}]
  %s3 = inlined_call_operand.hbm [shape: bf16[128,384], index: 3, kind: input, shape index: {}]
  %s4 = inlined_call_operand.vmem [shape: f32[1,384], index: 4, kind: input, shape index: {}]
  %s5 = inlined_call_operand.hbm [shape: bf16[128,128], index: 5, kind: input, shape index: {}]
  %s6 = inlined_call_operand.vmem [shape: f32[1,128], index: 6, kind: input, shape index: {}]
  %s7 = inlined_call_operand.vmem [shape: f32[1,128], index: 7, kind: input, shape index: {}]
  %s8 = inlined_call_operand.vmem [shape: f32[1,128], index: 8, kind: input, shape index: {}]
  %s9 = inlined_call_operand.hbm [shape: bf16[128,256], index: 9, kind: input, shape index: {}]
  %s10 = inlined_call_operand.vmem [shape: f32[1,256], index: 10, kind: input, shape index: {}]
  %s11 = inlined_call_operand.hbm [shape: bf16[256,128], index: 11, kind: input, shape index: {}]
  %s12 = inlined_call_operand.vmem [shape: f32[1,128], index: 12, kind: input, shape index: {}]
  %s13 = inlined_call_operand.hbm [shape: f32[4,16,128], index: 13, kind: output, shape index: {}]
  %s14 = sld [smem:[#allocation0]]
  $region105: #{tpu_custom_call.1} parent=0
    _
  %s16 = ssub.s32 1, %s14
  %s17 = scalar_select 0, %s16, %s14
  $region1: #{tpu_custom_call.1} parent=0
    #allocation3 [shape = 'u8[32768]{0}', space=vmem, size = 0x8000, scoped, tag = 'input window, operand 0']
    #allocation4 [shape = 's32[2]{0}', space=sflag, size = 0x8, scoped, tag = 'scoped memory for tpu_custom_call.1']
    #allocation5 [shape = 's32[2]{0}', space=sflag, size = 0x8, scoped, tag = 'scoped memory for tpu_custom_call.1']
    #allocation6 [shape = 'u8[98304]{0}', space=vmem, size = 0x18000, scoped, tag = 'input window, operand 3, single buffered']
    #allocation7 [shape = 's32[1]{0}', space=sflag, size = 0x4, scoped, tag = 'scoped memory for tpu_custom_call.1']
    #allocation8 [shape = 'u8[32768]{0}', space=vmem, size = 0x8000, scoped, tag = 'input window, operand 5, single buffered']
    #allocation9 [shape = 'u8[65536]{0}', space=vmem, size = 0x10000, scoped, tag = 'input window, operand 9, single buffered']
    #allocation10 [shape = 's32[1]{0}', space=sflag, size = 0x4, scoped, tag = 'scoped memory for tpu_custom_call.1']
    #allocation11 [shape = 'u8[65536]{0}', space=vmem, size = 0x10000, scoped, tag = 'input window, operand 11, single buffered']
    #allocation12 [shape = 'u8[32768]{0}', space=vmem, size = 0x8000, scoped, tag = 'output window, operand 0']
    %18 = vsyncpa [#allocation4], 0
    %s19 = scalar_lea.sflag [#allocation4], 1
    %20 = vsyncpa %s19, 0
    %21 = vsyncpa [#allocation7], 0
    %22 = vsyncpa [#allocation10], 0
    %23 = vsyncpa [#allocation5], 0
    %s24 = scalar_lea.sflag [#allocation5], 1
    %25 = vsyncpa %s24, 0
    loop: start=0, step=1, limit=4
    $region2: #{tpu_custom_call.1} parent=1 // loop_pre_header
      _
    $region3: #{tpu_custom_call.1} parent=1 // loop_header
      %s27 = sphi 0, %s31
      %p28 = scmp.ge.s32.totalorder %s27, 4
      %s37 = sphi 0, %s39
      %s40 = sphi 0, %s37
      %s41 = sphi 0, %s40
      %s57 = sphi 0, %s41
      %s61 = sphi 0, %s61
      %s63 = sphi 0, %s61
      %s64 = sphi 0, %s63
      %s78 = sphi 0, %s64
      %s82 = sphi 0, %s82
      %s84 = sphi 0, %s82
      %s85 = sphi 0, %s84
      %s99 = sphi 0, %s85
      %s103 = sphi 0, %s103
      %s105 = sphi 0, %s103
      %s106 = sphi 0, %s105
      %s120 = sphi 0, %s106
      %s124 = sphi 0, %s124
      %s126 = sphi 0, %s124
      %s127 = sphi 0, %s126
      %s141 = sphi 0, %s127
      %s145 = sphi 0, %s145
      %s147 = sphi 0, %s145
      %s148 = sphi 0, %s147
      %s162 = sphi 0, %s148
      %s166 = sphi 0, %s166
      %s168 = sphi 0, %s166
      %s169 = sphi 0, %s168
      %s183 = sphi 0, %s169
      %s187 = sphi 0, %s187
      %s189 = sphi 0, %s187
      %s190 = sphi 0, %s189
      %s204 = sphi 0, %s190
      %s208 = sphi 0, %s208
      %s210 = sphi 0, %s208
      %s211 = sphi 0, %s210
      %s225 = sphi 0, %s211
      %s229 = sphi 0, %s229
      %s231 = sphi 0, %s229
      %s232 = sphi 0, %s231
      %s246 = sphi 0, %s232
      %s250 = sphi 0, %s250
      %s252 = sphi 0, %s250
      %s253 = sphi 0, %s252
      %s267 = sphi 0, %s253
      %s271 = sphi 0, %s271
      %s273 = sphi 0, %s271
      %s274 = sphi 0, %s273
      %s288 = sphi 0, %s274
      %s292 = sphi 0, %s292
      %s294 = sphi 0, %s292
      %s295 = sphi 0, %s294
      %s309 = sphi 0, %s295
      %s315 = sphi 0, %s317
      %s318 = sphi 0, %s315
      %s319 = sphi 0, %s318
      %s335 = sphi 0, %s319
    $region4: #{tpu_custom_call.1} parent=1 // loop_header_branch
      %30 = sbr.rel (%p28) target = $region8
    $region5: #{tpu_custom_call.1} parent=1 // loop_body
      %s32 = ssub.s32 %s27, 1
      %s33 = ssub.s32 %s27, 2
      %s34 = sadd.s32 %s27, 1
      %s35 = ssub.s32 %s27, %s34
      %p36 = scmp.eq.s32.totalorder %s35, 0
      %s38 = sadd.s32 %s37, 1
      %s39 = scalar_select %p36, %s37, %s38
      %p42 = pneg %p36
      %p43 = scmp.eq.s32.totalorder %s27, 1
      %p44 = por %p42, %p43
      %p45 = scmp.ne.s32.totalorder %s37, %s40
      %p46 = scmp.eq.s32.totalorder %s27, 0
      %p47 = por %p45, %p46
      %p48 = scmp.ne.s32.totalorder %s37, %s40
      %p49 = scmp.eq.s32.totalorder %s32, 1
      %p50 = por %p48, %p49
      %p51 = scmp.ne.s32.totalorder %s40, %s41
      %p52 = scmp.eq.s32.totalorder %s32, 0
      %p53 = por %p51, %p52
      %p54 = scmp.ne.s32.totalorder %s40, %s41
      %p55 = scmp.eq.s32.totalorder %s33, 1
      %p56 = por %p54, %p55
      %p58 = scmp.ne.s32.totalorder %s41, %s57
      %p59 = scmp.eq.s32.totalorder %s33, 0
      %p60 = por %p58, %p59
      %s62 = sadd.s32 %s61, 1
      %p65 = scmp.eq.s32.totalorder %s27, 1
      %p66 = scmp.ne.s32.totalorder %s61, %s63
      %p67 = scmp.eq.s32.totalorder %s27, 0
      %p68 = por %p66, %p67
      %p69 = scmp.ne.s32.totalorder %s61, %s63
      %p70 = scmp.eq.s32.totalorder %s32, 1
      %p71 = por %p69, %p70
      %p72 = scmp.ne.s32.totalorder %s63, %s64
      %p73 = scmp.eq.s32.totalorder %s32, 0
      %p74 = por %p72, %p73
      %p75 = scmp.ne.s32.totalorder %s63, %s64
      %p76 = scmp.eq.s32.totalorder %s33, 1
      %p77 = por %p75, %p76
      %p79 = scmp.ne.s32.totalorder %s64, %s78
      %p80 = scmp.eq.s32.totalorder %s33, 0
      %p81 = por %p79, %p80
      %s83 = sadd.s32 %s82, 1
      %p86 = scmp.eq.s32.totalorder %s27, 1
      %p87 = scmp.ne.s32.totalorder %s82, %s84
      %p88 = scmp.eq.s32.totalorder %s27, 0
      %p89 = por %p87, %p88
      %p90 = scmp.ne.s32.totalorder %s82, %s84
      %p91 = scmp.eq.s32.totalorder %s32, 1
      %p92 = por %p90, %p91
      %p93 = scmp.ne.s32.totalorder %s84, %s85
      %p94 = scmp.eq.s32.totalorder %s32, 0
      %p95 = por %p93, %p94
      %p96 = scmp.ne.s32.totalorder %s84, %s85
      %p97 = scmp.eq.s32.totalorder %s33, 1
      %p98 = por %p96, %p97
      %p100 = scmp.ne.s32.totalorder %s85, %s99
      %p101 = scmp.eq.s32.totalorder %s33, 0
      %p102 = por %p100, %p101
      %s104 = sadd.s32 %s103, 1
      %p107 = scmp.eq.s32.totalorder %s27, 1
      %p108 = scmp.ne.s32.totalorder %s103, %s105
      %p109 = scmp.eq.s32.totalorder %s27, 0
      %p110 = por %p108, %p109
      %p111 = scmp.ne.s32.totalorder %s103, %s105
      %p112 = scmp.eq.s32.totalorder %s32, 1
      %p113 = por %p111, %p112
      %p114 = scmp.ne.s32.totalorder %s105, %s106
      %p115 = scmp.eq.s32.totalorder %s32, 0
      %p116 = por %p114, %p115
      %p117 = scmp.ne.s32.totalorder %s105, %s106
      %p118 = scmp.eq.s32.totalorder %s33, 1
      %p119 = por %p117, %p118
      %p121 = scmp.ne.s32.totalorder %s106, %s120
      %p122 = scmp.eq.s32.totalorder %s33, 0
      %p123 = por %p121, %p122
      %s125 = sadd.s32 %s124, 1
      %p128 = scmp.eq.s32.totalorder %s27, 1
      %p129 = scmp.ne.s32.totalorder %s124, %s126
      %p130 = scmp.eq.s32.totalorder %s27, 0
      %p131 = por %p129, %p130
      %p132 = scmp.ne.s32.totalorder %s124, %s126
      %p133 = scmp.eq.s32.totalorder %s32, 1
      %p134 = por %p132, %p133
      %p135 = scmp.ne.s32.totalorder %s126, %s127
      %p136 = scmp.eq.s32.totalorder %s32, 0
      %p137 = por %p135, %p136
      %p138 = scmp.ne.s32.totalorder %s126, %s127
      %p139 = scmp.eq.s32.totalorder %s33, 1
      %p140 = por %p138, %p139
      %p142 = scmp.ne.s32.totalorder %s127, %s141
      %p143 = scmp.eq.s32.totalorder %s33, 0
      %p144 = por %p142, %p143
      %s146 = sadd.s32 %s145, 1
      %p149 = scmp.eq.s32.totalorder %s27, 1
      %p150 = scmp.ne.s32.totalorder %s145, %s147
      %p151 = scmp.eq.s32.totalorder %s27, 0
      %p152 = por %p150, %p151
      %p153 = scmp.ne.s32.totalorder %s145, %s147
      %p154 = scmp.eq.s32.totalorder %s32, 1
      %p155 = por %p153, %p154
      %p156 = scmp.ne.s32.totalorder %s147, %s148
      %p157 = scmp.eq.s32.totalorder %s32, 0
      %p158 = por %p156, %p157
      %p159 = scmp.ne.s32.totalorder %s147, %s148
      %p160 = scmp.eq.s32.totalorder %s33, 1
      %p161 = por %p159, %p160
      %p163 = scmp.ne.s32.totalorder %s148, %s162
      %p164 = scmp.eq.s32.totalorder %s33, 0
      %p165 = por %p163, %p164
      %s167 = sadd.s32 %s166, 1
      %p170 = scmp.eq.s32.totalorder %s27, 1
      %p171 = scmp.ne.s32.totalorder %s166, %s168
      %p172 = scmp.eq.s32.totalorder %s27, 0
      %p173 = por %p171, %p172
      %p174 = scmp.ne.s32.totalorder %s166, %s168
      %p175 = scmp.eq.s32.totalorder %s32, 1
      %p176 = por %p174, %p175
      %p177 = scmp.ne.s32.totalorder %s168, %s169
      %p178 = scmp.eq.s32.totalorder %s32, 0
      %p179 = por %p177, %p178
      %p180 = scmp.ne.s32.totalorder %s168, %s169
      %p181 = scmp.eq.s32.totalorder %s33, 1
      %p182 = por %p180, %p181
      %p184 = scmp.ne.s32.totalorder %s169, %s183
      %p185 = scmp.eq.s32.totalorder %s33, 0
      %p186 = por %p184, %p185
      %s188 = sadd.s32 %s187, 1
      %p191 = scmp.eq.s32.totalorder %s27, 1
      %p192 = scmp.ne.s32.totalorder %s187, %s189
      %p193 = scmp.eq.s32.totalorder %s27, 0
      %p194 = por %p192, %p193
      %p195 = scmp.ne.s32.totalorder %s187, %s189
      %p196 = scmp.eq.s32.totalorder %s32, 1
      %p197 = por %p195, %p196
      %p198 = scmp.ne.s32.totalorder %s189, %s190
      %p199 = scmp.eq.s32.totalorder %s32, 0
      %p200 = por %p198, %p199
      %p201 = scmp.ne.s32.totalorder %s189, %s190
      %p202 = scmp.eq.s32.totalorder %s33, 1
      %p203 = por %p201, %p202
      %p205 = scmp.ne.s32.totalorder %s190, %s204
      %p206 = scmp.eq.s32.totalorder %s33, 0
      %p207 = por %p205, %p206
      %s209 = sadd.s32 %s208, 1
      %p212 = scmp.eq.s32.totalorder %s27, 1
      %p213 = scmp.ne.s32.totalorder %s208, %s210
      %p214 = scmp.eq.s32.totalorder %s27, 0
      %p215 = por %p213, %p214
      %p216 = scmp.ne.s32.totalorder %s208, %s210
      %p217 = scmp.eq.s32.totalorder %s32, 1
      %p218 = por %p216, %p217
      %p219 = scmp.ne.s32.totalorder %s210, %s211
      %p220 = scmp.eq.s32.totalorder %s32, 0
      %p221 = por %p219, %p220
      %p222 = scmp.ne.s32.totalorder %s210, %s211
      %p223 = scmp.eq.s32.totalorder %s33, 1
      %p224 = por %p222, %p223
      %p226 = scmp.ne.s32.totalorder %s211, %s225
      %p227 = scmp.eq.s32.totalorder %s33, 0
      %p228 = por %p226, %p227
      %s230 = sadd.s32 %s229, 1
      %p233 = scmp.eq.s32.totalorder %s27, 1
      %p234 = scmp.ne.s32.totalorder %s229, %s231
      %p235 = scmp.eq.s32.totalorder %s27, 0
      %p236 = por %p234, %p235
      %p237 = scmp.ne.s32.totalorder %s229, %s231
      %p238 = scmp.eq.s32.totalorder %s32, 1
      %p239 = por %p237, %p238
      %p240 = scmp.ne.s32.totalorder %s231, %s232
      %p241 = scmp.eq.s32.totalorder %s32, 0
      %p242 = por %p240, %p241
      %p243 = scmp.ne.s32.totalorder %s231, %s232
      %p244 = scmp.eq.s32.totalorder %s33, 1
      %p245 = por %p243, %p244
      %p247 = scmp.ne.s32.totalorder %s232, %s246
      %p248 = scmp.eq.s32.totalorder %s33, 0
      %p249 = por %p247, %p248
      %s251 = sadd.s32 %s250, 1
      %p254 = scmp.eq.s32.totalorder %s27, 1
      %p255 = scmp.ne.s32.totalorder %s250, %s252
      %p256 = scmp.eq.s32.totalorder %s27, 0
      %p257 = por %p255, %p256
      %p258 = scmp.ne.s32.totalorder %s250, %s252
      %p259 = scmp.eq.s32.totalorder %s32, 1
      %p260 = por %p258, %p259
      %p261 = scmp.ne.s32.totalorder %s252, %s253
      %p262 = scmp.eq.s32.totalorder %s32, 0
      %p263 = por %p261, %p262
      %p264 = scmp.ne.s32.totalorder %s252, %s253
      %p265 = scmp.eq.s32.totalorder %s33, 1
      %p266 = por %p264, %p265
      %p268 = scmp.ne.s32.totalorder %s253, %s267
      %p269 = scmp.eq.s32.totalorder %s33, 0
      %p270 = por %p268, %p269
      %s272 = sadd.s32 %s271, 1
      %p275 = scmp.eq.s32.totalorder %s27, 1
      %p276 = scmp.ne.s32.totalorder %s271, %s273
      %p277 = scmp.eq.s32.totalorder %s27, 0
      %p278 = por %p276, %p277
      %p279 = scmp.ne.s32.totalorder %s271, %s273
      %p280 = scmp.eq.s32.totalorder %s32, 1
      %p281 = por %p279, %p280
      %p282 = scmp.ne.s32.totalorder %s273, %s274
      %p283 = scmp.eq.s32.totalorder %s32, 0
      %p284 = por %p282, %p283
      %p285 = scmp.ne.s32.totalorder %s273, %s274
      %p286 = scmp.eq.s32.totalorder %s33, 1
      %p287 = por %p285, %p286
      %p289 = scmp.ne.s32.totalorder %s274, %s288
      %p290 = scmp.eq.s32.totalorder %s33, 0
      %p291 = por %p289, %p290
      %s293 = sadd.s32 %s292, 1
      %p296 = scmp.eq.s32.totalorder %s27, 1
      %p297 = scmp.ne.s32.totalorder %s292, %s294
      %p298 = scmp.eq.s32.totalorder %s27, 0
      %p299 = por %p297, %p298
      %p300 = scmp.ne.s32.totalorder %s292, %s294
      %p301 = scmp.eq.s32.totalorder %s32, 1
      %p302 = por %p300, %p301
      %p303 = scmp.ne.s32.totalorder %s294, %s295
      %p304 = scmp.eq.s32.totalorder %s32, 0
      %p305 = por %p303, %p304
      %p306 = scmp.ne.s32.totalorder %s294, %s295
      %p307 = scmp.eq.s32.totalorder %s33, 1
      %p308 = por %p306, %p307
      %p310 = scmp.ne.s32.totalorder %s295, %s309
      %p311 = scmp.eq.s32.totalorder %s33, 0
      %p312 = por %p310, %p311
      %s313 = ssub.s32 %s27, %s34
      %p314 = scmp.eq.s32.totalorder %s313, 0
      %s316 = sadd.s32 %s315, 1
      %s317 = scalar_select %p314, %s315, %s316
      %p320 = pneg %p314
      %p321 = scmp.eq.s32.totalorder %s27, 1
      %p322 = por %p320, %p321
      %p323 = scmp.ne.s32.totalorder %s315, %s318
      %p324 = scmp.eq.s32.totalorder %s27, 0
      %p325 = por %p323, %p324
      %p326 = scmp.ne.s32.totalorder %s315, %s318
      %p327 = scmp.eq.s32.totalorder %s32, 1
      %p328 = por %p326, %p327
      %p329 = scmp.ne.s32.totalorder %s318, %s319
      %p330 = scmp.eq.s32.totalorder %s32, 0
      %p331 = por %p329, %p330
      %p332 = scmp.ne.s32.totalorder %s318, %s319
      %p333 = scmp.eq.s32.totalorder %s33, 1
      %p334 = por %p332, %p333
      %p336 = scmp.ne.s32.totalorder %s319, %s335
      %p337 = scmp.eq.s32.totalorder %s33, 0
      %p338 = por %p336, %p337
      %p339 = scmp.le.s32.totalorder 1, %s27
      %p340 = scmp.lt.s32.totalorder %s27, 3
      %p341 = pnand %p339, %p340
      %p342 = pneg %p341
      // Predicated region
      $region9: #{tpu_custom_call.1} parent=5 // pred_check
        _
      $region10: #{tpu_custom_call.1} parent=5 // pred_check_branch
        %344 = sbr.rel (%p341) target = $region12
      $region11: #{tpu_custom_call.1} parent=5 // pred_region
        %s345 = ssub.s32 %s27, 1
        // Predicated region
        $region13: #{tpu_custom_call.1} parent=11 // pred_check
          %p346 = pneg %p74
        $region14: #{tpu_custom_call.1} parent=11 // pred_check_branch
          %348 = sbr.rel (%p346) target = $region16
        $region15: #{tpu_custom_call.1} parent=11 // pred_region
          _
        $region16: #{tpu_custom_call.1} parent=11 // pred_fallthru
          _
        // Predicated region
        $region17: #{tpu_custom_call.1} parent=11 // pred_check
          %p349 = pneg %p95
        $region18: #{tpu_custom_call.1} parent=11 // pred_check_branch
          %351 = sbr.rel (%p349) target = $region20
        $region19: #{tpu_custom_call.1} parent=11 // pred_region
          _
        $region20: #{tpu_custom_call.1} parent=11 // pred_fallthru
          _
        // Predicated region
        $region21: #{tpu_custom_call.1} parent=11 // pred_check
          %p352 = pneg %p116
        $region22: #{tpu_custom_call.1} parent=11 // pred_check_branch
          %354 = sbr.rel (%p352) target = $region24
        $region23: #{tpu_custom_call.1} parent=11 // pred_region
          %s356 = ssub.s32 3072, 3072
          %357 = vsyncadd [#allocation7], %s356
          %s358 = sshll.u32 [#allocation6], 4
          %s359 = int_to_ptr.vmem [resolvable:$true] %s358
          %364 = dma.hbm_to_vmem [thread:$0]  %s3, 3072, %s359, [#allocation7], 192, 192, 12
        $region24: #{tpu_custom_call.1} parent=11 // pred_fallthru
          _
        // Predicated region
        $region25: #{tpu_custom_call.1} parent=11 // pred_check
          %p365 = pneg %p137
        $region26: #{tpu_custom_call.1} parent=11 // pred_check_branch
          %367 = sbr.rel (%p365) target = $region28
        $region27: #{tpu_custom_call.1} parent=11 // pred_region
          _
        $region28: #{tpu_custom_call.1} parent=11 // pred_fallthru
          _
        // Predicated region
        $region29: #{tpu_custom_call.1} parent=11 // pred_check
          %p368 = pneg %p158
        $region30: #{tpu_custom_call.1} parent=11 // pred_check_branch
          %370 = sbr.rel (%p368) target = $region32
        $region31: #{tpu_custom_call.1} parent=11 // pred_region
          %s372 = ssub.s32 1024, 1024
          %373 = vsyncadd [#allocation7], %s372
          %s374 = sshll.u32 [#allocation8], 4
          %s375 = int_to_ptr.vmem [resolvable:$true] %s374
          %380 = dma.hbm_to_vmem [thread:$0]  %s5, 1024, %s375, [#allocation7], 64, 64, 4
        $region32: #{tpu_custom_call.1} parent=11 // pred_fallthru
          _
        // Predicated region
        $region33: #{tpu_custom_call.1} parent=11 // pred_check
          %p381 = pneg %p179
        $region34: #{tpu_custom_call.1} parent=11 // pred_check_branch
          %383 = sbr.rel (%p381) target = $region36
        $region35: #{tpu_custom_call.1} parent=11 // pred_region
          _
        $region36: #{tpu_custom_call.1} parent=11 // pred_fallthru
          _
        // Predicated region
        $region37: #{tpu_custom_call.1} parent=11 // pred_check
          %p384 = pneg %p200
        $region38: #{tpu_custom_call.1} parent=11 // pred_check_branch
          %386 = sbr.rel (%p384) target = $region40
        $region39: #{tpu_custom_call.1} parent=11 // pred_region
          _
        $region40: #{tpu_custom_call.1} parent=11 // pred_fallthru
          _
        // Predicated region
        $region41: #{tpu_custom_call.1} parent=11 // pred_check
          %p387 = pneg %p221
        $region42: #{tpu_custom_call.1} parent=11 // pred_check_branch
          %389 = sbr.rel (%p387) target = $region44
        $region43: #{tpu_custom_call.1} parent=11 // pred_region
          _
        $region44: #{tpu_custom_call.1} parent=11 // pred_fallthru
          _
        // Predicated region
        $region45: #{tpu_custom_call.1} parent=11 // pred_check
          %p390 = pneg %p242
        $region46: #{tpu_custom_call.1} parent=11 // pred_check_branch
          %392 = sbr.rel (%p390) target = $region48
        $region47: #{tpu_custom_call.1} parent=11 // pred_region
          %s394 = ssub.s32 2048, 2048
          %395 = vsyncadd [#allocation10], %s394
          %s396 = sshll.u32 [#allocation9], 4
          %s397 = int_to_ptr.vmem [resolvable:$true] %s396
          %402 = dma.hbm_to_vmem [thread:$0]  %s9, 2048, %s397, [#allocation10], 128, 128, 8
        $region48: #{tpu_custom_call.1} parent=11 // pred_fallthru
          _
        // Predicated region
        $region49: #{tpu_custom_call.1} parent=11 // pred_check
          %p403 = pneg %p263
        $region50: #{tpu_custom_call.1} parent=11 // pred_check_branch
          %405 = sbr.rel (%p403) target = $region52
        $region51: #{tpu_custom_call.1} parent=11 // pred_region
          _
        $region52: #{tpu_custom_call.1} parent=11 // pred_fallthru
          _
        // Predicated region
        $region53: #{tpu_custom_call.1} parent=11 // pred_check
          %p406 = pneg %p284
        $region54: #{tpu_custom_call.1} parent=11 // pred_check_branch
          %408 = sbr.rel (%p406) target = $region56
        $region55: #{tpu_custom_call.1} parent=11 // pred_region
          %s410 = ssub.s32 2048, 2048
          %411 = vsyncadd [#allocation10], %s410
          %s412 = sshll.u32 [#allocation11], 4
          %s413 = int_to_ptr.vmem [resolvable:$true] %s412
          %418 = dma.hbm_to_vmem [thread:$0]  %s11, 2048, %s413, [#allocation10], 64, 64, 4
        $region56: #{tpu_custom_call.1} parent=11 // pred_fallthru
          _
        // Predicated region
        $region57: #{tpu_custom_call.1} parent=11 // pred_check
          %p419 = pneg %p305
        $region58: #{tpu_custom_call.1} parent=11 // pred_check_branch
          %421 = sbr.rel (%p419) target = $region60
        $region59: #{tpu_custom_call.1} parent=11 // pred_region
          _
        $region60: #{tpu_custom_call.1} parent=11 // pred_fallthru
          _
      $region12: #{tpu_custom_call.1} parent=5 // pred_fallthru
        _
      %p422 = scmp.lt.s32.totalorder %s27, 2
      // Predicated region
      $region61: #{tpu_custom_call.1} parent=5 // pred_check
        %p423 = pneg %p422
      $region62: #{tpu_custom_call.1} parent=5 // pred_check_branch
        %425 = sbr.rel (%p423) target = $region64
      $region63: #{tpu_custom_call.1} parent=5 // pred_region
        // Predicated region
        $region65: #{tpu_custom_call.1} parent=63 // pred_check
          %p426 = pneg %p47
        $region66: #{tpu_custom_call.1} parent=63 // pred_check_branch
          %428 = sbr.rel (%p426) target = $region68
        $region67: #{tpu_custom_call.1} parent=63 // pred_region
          %s429 = sand.u32 %s37, 1
          %s430 = scalar_lea.sflag [#allocation4], %s429
          %s431 = sand.u32 %s37, 1
          %s432 = smul.addr %s431, 32
          %s433 = scalar_lea.vmem [#allocation3], %s432
          %s434 = smul.u32 2, %s27
          %s436 = ssub.s32 512, 512
          %437 = vsyncadd %s430, %s436
          %s438 = smul.addr %s434, 2
          %s439 = smul.addr %s438, 128
          %s440 = scalar_lea.hbm %s0, %s439
          %s441 = sshll.u32 %s433, 4
          %s442 = int_to_ptr.vmem [resolvable:$true] %s441
          %447 = dma.hbm_to_vmem [thread:$0]  %s440, 512, %s442, %s430, 128, 128, 8
        $region68: #{tpu_custom_call.1} parent=63 // pred_fallthru
          _
      $region64: #{tpu_custom_call.1} parent=5 // pred_fallthru
        _
      %p448 = scmp.le.s32.totalorder 1, %s27
      %p449 = scmp.lt.s32.totalorder %s27, 3
      %p450 = pnand %p448, %p449
      %p451 = pneg %p450
      // Predicated region
      $region69: #{tpu_custom_call.1} parent=5 // pred_check
        _
      $region70: #{tpu_custom_call.1} parent=5 // pred_check_branch
        %453 = sbr.rel (%p450) target = $region72
      $region71: #{tpu_custom_call.1} parent=5 // pred_region
        %s454 = ssub.s32 %s27, 1
        %s455 = sand.u32 %s40, 1
        %s456 = scalar_lea.sflag [#allocation4], %s455
        %s457 = sand.u32 %s40, 1
        %s458 = smul.addr %s457, 32
        %s459 = scalar_lea.vmem [#allocation3], %s458
        // Predicated region
        $region73: #{tpu_custom_call.1} parent=71 // pred_check
          %p460 = pneg %p53
        $region74: #{tpu_custom_call.1} parent=71 // pred_check_branch
          %462 = sbr.rel (%p460) target = $region76
        $region75: #{tpu_custom_call.1} parent=71 // pred_region
          %463 = dma.done %s456, 512
        $region76: #{tpu_custom_call.1} parent=71 // pred_fallthru
          _
        // Predicated region
        $region77: #{tpu_custom_call.1} parent=71 // pred_check
          %p464 = pneg %p116
        $region78: #{tpu_custom_call.1} parent=71 // pred_check_branch
          %466 = sbr.rel (%p464) target = $region80
        $region79: #{tpu_custom_call.1} parent=71 // pred_region
          %467 = dma.done [#allocation7], 3072
        $region80: #{tpu_custom_call.1} parent=71 // pred_fallthru
          _
        // Predicated region
        $region81: #{tpu_custom_call.1} parent=71 // pred_check
          %p468 = pneg %p158
        $region82: #{tpu_custom_call.1} parent=71 // pred_check_branch
          %470 = sbr.rel (%p468) target = $region84
        $region83: #{tpu_custom_call.1} parent=71 // pred_region
          %471 = dma.done [#allocation7], 1024
        $region84: #{tpu_custom_call.1} parent=71 // pred_fallthru
          _
        // Predicated region
        $region85: #{tpu_custom_call.1} parent=71 // pred_check
          %p472 = pneg %p242
        $region86: #{tpu_custom_call.1} parent=71 // pred_check_branch
          %474 = sbr.rel (%p472) target = $region88
        $region87: #{tpu_custom_call.1} parent=71 // pred_region
          %475 = dma.done [#allocation10], 2048
        $region88: #{tpu_custom_call.1} parent=71 // pred_fallthru
          _
        // Predicated region
        $region89: #{tpu_custom_call.1} parent=71 // pred_check
          %p476 = pneg %p284
        $region90: #{tpu_custom_call.1} parent=71 // pred_check_branch
          %478 = sbr.rel (%p476) target = $region92
        $region91: #{tpu_custom_call.1} parent=71 // pred_region
          %479 = dma.done [#allocation10], 2048
        $region92: #{tpu_custom_call.1} parent=71 // pred_fallthru
          _
        %s480 = sand.u32 %s40, 1
        %s481 = scalar_lea.sflag [#allocation4], %s480
        %s482 = sand.u32 %s40, 1
        %s483 = smul.addr %s482, 32
        %s484 = scalar_lea.vmem [#allocation3], %s483
        %p485 = pneg %p53
        %p486 = pneg %p50
        %p487 = pneg %p74
        %p488 = pneg %p71
        %p489 = pneg %p95
        %p490 = pneg %p92
        %p491 = pneg %p116
        %p492 = pneg %p113
        %p493 = pneg %p137
        %p494 = pneg %p134
        %p495 = pneg %p158
        %p496 = pneg %p155
        %p497 = pneg %p179
        %p498 = pneg %p176
        %p499 = pneg %p200
        %p500 = pneg %p197
        %p501 = pneg %p221
        %p502 = pneg %p218
        %p503 = pneg %p242
        %p504 = pneg %p239
        %p505 = pneg %p263
        %p506 = pneg %p260
        %p507 = pneg %p284
        %p508 = pneg %p281
        %p509 = pneg %p305
        %p510 = pneg %p302
        %p511 = pneg %p331
        %p512 = pneg %p328
        %s513 = sand.u32 %s318, 1
        %s514 = scalar_lea.sflag [#allocation5], %s513
        %s515 = sand.u32 %s318, 1
        %s516 = smul.addr %s515, 32
        %s517 = scalar_lea.vmem [#allocation12], %s516
        %s518 = smul.u32 2, %s32
        %s519 = smul.u32 2, %s32
        %v521 = vld [vmem:[%s459] sm:$0xff]
        %v522 = vld [vmem:[%s459 + $0x8] sm:$0xff]
        %v523 = vld [vmem:[%s459 + $0x10] sm:$0xff]
        %v524 = vld [vmem:[%s459 + $0x18] sm:$0xff]
        %v525 = vld [vmem:[%s1] sm:$0x1]
        %v526 = vld [vmem:[%s2] sm:$0x1]
        %527 = vadd.xlane.f32.xlu0 %v521
        %v528 = vpop.xlane.xlu0 %527
        %529 = vadd.xlane.f32.xlu0 %v522
        %v530 = vpop.xlane.xlu0 %529
        %531 = vadd.xlane.f32.xlu0 %v523
        %v532 = vpop.xlane.xlu0 %531
        %533 = vadd.xlane.f32.xlu0 %v524
        %v534 = vpop.xlane.xlu0 %533
        %v535 = vrcp.pop 128.0
        %v536 = vmul.f32 %v528, %v535
        %v537 = vmul.f32 %v530, %v535
        %v538 = vmul.f32 %v532, %v535
        %v539 = vmul.f32 %v534, %v535
        %v540 = vsub.f32 %v521, %v536
        %v541 = vsub.f32 %v522, %v537
        %v542 = vsub.f32 %v523, %v538
        %v543 = vsub.f32 %v524, %v539
        %v544 = vmul.f32 %v540, %v540
        %v545 = vmul.f32 %v541, %v541
        %v546 = vmul.f32 %v542, %v542
        %v547 = vmul.f32 %v543, %v543
        %548 = vadd.xlane.f32.xlu0 %v544
        %v549 = vpop.xlane.xlu0 %548
        %550 = vadd.xlane.f32.xlu0 %v545
        %v551 = vpop.xlane.xlu0 %550
        %552 = vadd.xlane.f32.xlu0 %v546
        %v553 = vpop.xlane.xlu0 %552
        %554 = vadd.xlane.f32.xlu0 %v547
        %v555 = vpop.xlane.xlu0 %554
        %v556 = vmul.f32 %v549, %v535
        %v557 = vmul.f32 %v551, %v535
        %v558 = vmul.f32 %v553, %v535
        %v559 = vmul.f32 %v555, %v535
        %v560 = vadd.f32 %v556, 1e-05
        %v561 = vadd.f32 %v557, 1e-05
        %v562 = vadd.f32 %v558, 1e-05
        %v563 = vadd.f32 %v559, 1e-05
        %v564 = vrsqrt.pop %v560
        %v565 = vrsqrt.pop %v561
        %v566 = vrsqrt.pop %v562
        %v567 = vrsqrt.pop %v563
        %v568 = vmul.f32 %v540, %v564
        %v569 = vmul.f32 %v541, %v565
        %v570 = vmul.f32 %v542, %v566
        %v571 = vmul.f32 %v543, %v567
        %v573 = vlaneseq
        %v574 = vshrl.u32 %v573, 7
        %v575 = vsub.s32 0, %v574
        %v576 = vrot.slane %v525, %v575
        %v578 = vmul.f32 %v568, %v576
        %v579 = vmul.f32 %v569, %v576
        %v580 = vmul.f32 %v570, %v576
        %v581 = vmul.f32 %v571, %v576
        %v583 = vlaneseq
        %v584 = vshrl.u32 %v583, 7
        %v585 = vsub.s32 0, %v584
        %v586 = vrot.slane %v526, %v585
        %v588 = vadd.f32 %v578, %v586
        %v589 = vadd.f32 %v579, %v586
        %v590 = vadd.f32 %v580, %v586
        %v591 = vadd.f32 %v581, %v586
        %v592 = vpack.c.bf16 %v589, %v588
        %v593 = vpack.c.bf16 %v591, %v590
        %v594 = vld [vmem:[#allocation6] sm:$0xff]
        %v595 = vld [vmem:[#allocation6 + $0x8] sm:$0xf]
        %v596 = vld [vmem:[#allocation6 + $0xc] sm:$0xff]
        %v597 = vld [vmem:[#allocation6 + $0x14] sm:$0xf]
        %v598 = vld [vmem:[#allocation6 + $0x18] sm:$0xff]
        %v599 = vld [vmem:[#allocation6 + $0x20] sm:$0xf]
        %v600 = vld [vmem:[#allocation6 + $0x24] sm:$0xff]
        %v601 = vld [vmem:[#allocation6 + $0x2c] sm:$0xf]
        %v602 = vld [vmem:[#allocation6 + $0x30] sm:$0xff]
        %v603 = vld [vmem:[#allocation6 + $0x38] sm:$0xf]
        %v604 = vld [vmem:[#allocation6 + $0x3c] sm:$0xff]
        %v605 = vld [vmem:[#allocation6 + $0x44] sm:$0xf]
        %v606 = vld [vmem:[#allocation6 + $0x48] sm:$0xff]
        %v607 = vld [vmem:[#allocation6 + $0x50] sm:$0xf]
        %v608 = vld [vmem:[#allocation6 + $0x54] sm:$0xff]
        %v609 = vld [vmem:[#allocation6 + $0x5c] sm:$0xf]
        %v610 = vld [vmem:[#allocation6 + $0x60] sm:$0xff]
        %v611 = vld [vmem:[#allocation6 + $0x68] sm:$0xf]
        %v612 = vld [vmem:[#allocation6 + $0x6c] sm:$0xff]
        %v613 = vld [vmem:[#allocation6 + $0x74] sm:$0xf]
        %v614 = vld [vmem:[#allocation6 + $0x78] sm:$0xff]
        %v615 = vld [vmem:[#allocation6 + $0x80] sm:$0xf]
        %v616 = vld [vmem:[#allocation6 + $0x84] sm:$0xff]
        %v617 = vld [vmem:[#allocation6 + $0x8c] sm:$0xf]
        %v618 = vld [vmem:[#allocation6 + $0x90] sm:$0xff]
        %v619 = vld [vmem:[#allocation6 + $0x98] sm:$0xf]
        %v620 = vld [vmem:[#allocation6 + $0x9c] sm:$0xff]
        %v621 = vld [vmem:[#allocation6 + $0xa4] sm:$0xf]
        %v622 = vld [vmem:[#allocation6 + $0xa8] sm:$0xff]
        %v623 = vld [vmem:[#allocation6 + $0xb0] sm:$0xf]
        %v624 = vld [vmem:[#allocation6 + $0xb4] sm:$0xff]
        %v625 = vld [vmem:[#allocation6 + $0xbc] sm:$0xf]
        %v626 = vld [vmem:[%s4] sm:$0x7]
        %v628 = vlaneseq
        %v629 = vshrl.u32 %v628, 7
        %v630 = vsub.s32 0, %v629
        %v631 = vrot.slane %v626, %v630
        %v632 = vlaneseq
        %v633 = vshrl.u32 %v632, 7
        %v634 = vsub.s32 1, %v633
        %v635 = vrot.slane %v626, %v634
        %v636 = vlaneseq
        %v637 = vshrl.u32 %v636, 7
        %v638 = vsub.s32 2, %v637
        %v639 = vrot.slane %v626, %v638
        %v675 = vunpack.c.l.b16 %v594
        %v676 = vunpack.c.h.b16 %v594
        %v677 = vunpack.c.l.b16 %v595
        %v678 = vunpack.c.l.b16 %v596
        %v679 = vunpack.c.h.b16 %v596
        %v680 = vunpack.c.l.b16 %v597
        %v681 = vunpack.c.l.b16 %v598
        %v682 = vunpack.c.h.b16 %v598
        %v683 = vunpack.c.l.b16 %v599
        %v684 = vunpack.c.l.b16 %v600
        %v685 = vunpack.c.h.b16 %v600
        %v686 = vunpack.c.l.b16 %v601
        %v687 = vunpack.c.l.b16 %v602
        %v688 = vunpack.c.h.b16 %v602
        %v689 = vunpack.c.l.b16 %v603
        %v690 = vunpack.c.l.b16 %v604
        %v691 = vunpack.c.h.b16 %v604
        %v692 = vunpack.c.l.b16 %v605
        %v693 = vunpack.c.l.b16 %v606
        %v694 = vunpack.c.h.b16 %v606
        %v695 = vunpack.c.l.b16 %v607
        %v696 = vunpack.c.l.b16 %v608
        %v697 = vunpack.c.h.b16 %v608
        %v698 = vunpack.c.l.b16 %v609
        %v699 = vunpack.c.l.b16 %v610
        %v700 = vunpack.c.h.b16 %v610
        %v701 = vunpack.c.l.b16 %v611
        %v702 = vunpack.c.l.b16 %v612
        %v703 = vunpack.c.h.b16 %v612
        %v704 = vunpack.c.l.b16 %v613
        %v705 = vunpack.c.l.b16 %v614
        %v706 = vunpack.c.h.b16 %v614
        %v707 = vunpack.c.l.b16 %v615
        %v708 = vunpack.c.l.b16 %v616
        %v709 = vunpack.c.h.b16 %v616
        %v710 = vunpack.c.l.b16 %v617
        %v711 = vunpack.c.l.b16 %v618
        %v712 = vunpack.c.h.b16 %v618
        %v713 = vunpack.c.l.b16 %v619
        %v714 = vunpack.c.l.b16 %v620
        %v715 = vunpack.c.h.b16 %v620
        %v716 = vunpack.c.l.b16 %v621
        %v717 = vunpack.c.l.b16 %v622
        %v718 = vunpack.c.h.b16 %v622
        %v719 = vunpack.c.l.b16 %v623
        %v720 = vunpack.c.l.b16 %v624
        %v721 = vunpack.c.h.b16 %v624
        %v722 = vunpack.c.l.b16 %v625
        %v723 = vpack.c.b16 %v678, %v675
        %v724 = vpack.c.b16 %v679, %v676
        %v725 = vpack.c.b16 %v680, %v677
        %v726 = vpack.c.b16 %v684, %v681
        %v727 = vpack.c.b16 %v685, %v682
        %v728 = vpack.c.b16 %v686, %v683
        %v729 = vpack.c.b16 %v690, %v687
        %v730 = vpack.c.b16 %v691, %v688
        %v731 = vpack.c.b16 %v692, %v689
        %v732 = vpack.c.b16 %v696, %v693
        %v733 = vpack.c.b16 %v697, %v694
        %v734 = vpack.c.b16 %v698, %v695
        %v735 = vpack.c.b16 %v702, %v699
        %v736 = vpack.c.b16 %v703, %v700
        %v737 = vpack.c.b16 %v704, %v701
        %v738 = vpack.c.b16 %v708, %v705
        %v739 = vpack.c.b16 %v709, %v706
        %v740 = vpack.c.b16 %v710, %v707
        %v741 = vpack.c.b16 %v714, %v711
        %v742 = vpack.c.b16 %v715, %v712
        %v743 = vpack.c.b16 %v716, %v713
        %v744 = vpack.c.b16 %v720, %v717
        %v745 = vpack.c.b16 %v721, %v718
        %v746 = vpack.c.b16 %v722, %v719
        %771 = vmatprep.subr.bf16.mxu0 %v724
        %772 = vmatpush1.bf16.msra.mxu0 %v723
        %773 = vmatprep.subr.bf16.mxu0 %v727
        %774 = vmatpush1.bf16.msra.mxu0 %v726
        %775 = vmatprep.subr.bf16.mxu0 %v730
        %776 = vmatpush1.bf16.msra.mxu0 %v729
        %777 = vmatprep.subr.bf16.mxu0 %v733
        %778 = vmatpush1.bf16.msra.mxu0 %v732
        %779 = vmatprep.subr.bf16.mxu0 %v736
        %780 = vmatpush1.bf16.msra.mxu0 %v735
        %781 = vmatprep.subr.bf16.mxu0 %v739
        %782 = vmatpush1.bf16.msra.mxu0 %v738
        %783 = vmatprep.subr.bf16.mxu0 %v742
        %784 = vmatpush1.bf16.msra.mxu0 %v741
        %785 = vmatprep.subr.bf16.mxu0 %v745
        %786 = vmatpush1.bf16.msra.mxu0 %v744
        %787 = vmatprep.subr.bf16.mxu0 0
        %788 = vmatpush1.bf16.msra.mxu0 0
        %789 = vmatprep.subr.bf16.mxu0 0
        %790 = vmatpush1.bf16.msra.mxu0 0
        %791 = vmatprep.subr.bf16.mxu0 0
        %792 = vmatpush1.bf16.msra.mxu0 0
        %793 = vmatprep.subr.bf16.mxu0 0
        %794 = vmatpush1.bf16.msra.mxu0 0
        %795 = vmatprep.subr.bf16.mxu0 0
        %796 = vmatpush1.bf16.msra.mxu0 0
        %797 = vmatprep.subr.bf16.mxu0 0
        %798 = vmatpush1.bf16.msra.mxu0 0
        %799 = vmatprep.subr.bf16.mxu0 0
        %800 = vmatpush1.bf16.msra.mxu0 0
        %801 = vmatprep.subr.bf16.mxu0 0
        %802 = vmatpush1.bf16.msra.mxu0 0
        %803 = vmatprep.mubr.bf16.mxu0 0
        %804 = vmatmul.mubr.bf16.gmra.mrb[0].mxu0 %v592
        %v805 = vpop.f32.mrb[0].mxu0
        %v806 = vadd.f32 %v631, %v805
        %v807 = vpop.f32.mrb[0].mxu0
        %v808 = vadd.f32 %v635, %v807
        %v809 = vpop.f32.mrb[0].mxu0
        %v810 = vadd.f32 %v631, %v809
        %v811 = vpop.f32.mrb[0].mxu0
        %v812 = vadd.f32 %v635, %v811
        %813 = vmatprep.mubr.bf16.mxu0 0
        %814 = vmatmul.mubr.bf16.gmra.mrb[0].mxu0 %v593
        %v815 = vpop.f32.mrb[0].mxu0
        %v816 = vadd.f32 %v631, %v815
        %v817 = vpop.f32.mrb[0].mxu0
        %v818 = vadd.f32 %v635, %v817
        %v819 = vpop.f32.mrb[0].mxu0
        %v820 = vadd.f32 %v631, %v819
        %v821 = vpop.f32.mrb[0].mxu0
        %v822 = vadd.f32 %v635, %v821
        %823 = vdwg.mxu0
        %824 = vmatprep.subr.bf16.mxu0 0
        %825 = vmatpush1.bf16.msra.mxu0 %v725
        %826 = vmatprep.subr.bf16.mxu0 0
        %827 = vmatpush1.bf16.msra.mxu0 %v728
        %828 = vmatprep.subr.bf16.mxu0 0
        %829 = vmatpush1.bf16.msra.mxu0 %v731
        %830 = vmatprep.subr.bf16.mxu0 0
        %831 = vmatpush1.bf16.msra.mxu0 %v734
        %832 = vmatprep.subr.bf16.mxu0 0
        %833 = vmatpush1.bf16.msra.mxu0 %v737
        %834 = vmatprep.subr.bf16.mxu0 0
        %835 = vmatpush1.bf16.msra.mxu0 %v740
        %836 = vmatprep.subr.bf16.mxu0 0
        %837 = vmatpush1.bf16.msra.mxu0 %v743
        %838 = vmatprep.subr.bf16.mxu0 0
        %839 = vmatpush1.bf16.msra.mxu0 %v746
        %840 = vmatprep.subr.bf16.mxu0 0
        %841 = vmatpush1.bf16.msra.mxu0 0
        %842 = vmatprep.subr.bf16.mxu0 0
        %843 = vmatpush1.bf16.msra.mxu0 0
        %844 = vmatprep.subr.bf16.mxu0 0
        %845 = vmatpush1.bf16.msra.mxu0 0
        %846 = vmatprep.subr.bf16.mxu0 0
        %847 = vmatpush1.bf16.msra.mxu0 0
        %848 = vmatprep.subr.bf16.mxu0 0
        %849 = vmatpush1.bf16.msra.mxu0 0
        %850 = vmatprep.subr.bf16.mxu0 0
        %851 = vmatpush1.bf16.msra.mxu0 0
        %852 = vmatprep.subr.bf16.mxu0 0
        %853 = vmatpush1.bf16.msra.mxu0 0
        %854 = vmatprep.subr.bf16.mxu0 0
        %855 = vmatpush1.bf16.msra.mxu0 0
        %856 = vmatprep.mubr.bf16.mxu0 0
        %857 = vmatmul.mubr.bf16.gmra.mrb[0].mxu0 %v592
        %v858 = vpop.f32.mrb[0].mxu0
        %v859 = vadd.f32 %v639, %v858
        %v860 = vpop.f32.mrb[0].mxu0
        %v861 = vpop.f32.mrb[0].mxu0
        %v862 = vadd.f32 %v639, %v861
        %v863 = vpop.f32.mrb[0].mxu0
        %864 = vmatprep.mubr.bf16.mxu0 0
        %865 = vmatmul.mubr.bf16.gmra.mrb[0].mxu0 %v593
        %v866 = vpop.f32.mrb[0].mxu0
        %v867 = vadd.f32 %v639, %v866
        %v868 = vpop.f32.mrb[0].mxu0
        %v869 = vpop.f32.mrb[0].mxu0
        %v870 = vadd.f32 %v639, %v869
        %v871 = vpop.f32.mrb[0].mxu0
        %872 = vdwg.mxu0
        %v873 = vpack.c.bf16 %v810, %v806
        %v874 = vpack.c.bf16 %v820, %v816
        %v875 = vpack.c.bf16 %v812, %v808
        %v876 = vpack.c.bf16 %v822, %v818
        %v877 = vpack.c.bf16 %v862, %v859
        %v878 = vpack.c.bf16 %v870, %v867
        %vm879 = vcmask 261120
        %v881 = vsel %vm879, %v873, 0
        %v884 = vsel %vm879, %v875, 0
        %886 = vmatprep.subr.bf16.mxu0 0
        %887 = vmatpush1.bf16.xpose.msra.mxu0 %v884
        %888 = vmatprep.subr.bf16.mxu0 0
        %889 = vmatpush1.bf16.xpose.msra.mxu0 0
        %890 = vmatprep.subr.bf16.mxu0 0
        %891 = vmatpush1.bf16.xpose.msra.mxu0 0
        %892 = vmatprep.subr.bf16.mxu0 0
        %893 = vmatpush1.bf16.xpose.msra.mxu0 0
        %894 = vmatprep.subr.bf16.mxu0 0
        %895 = vmatpush1.bf16.xpose.msra.mxu0 0
        %896 = vmatprep.subr.bf16.mxu0 0
        %897 = vmatpush1.bf16.xpose.msra.mxu0 0
        %898 = vmatprep.subr.bf16.mxu0 0
        %899 = vmatpush1.bf16.xpose.msra.mxu0 0
        %900 = vmatprep.subr.bf16.mxu0 0
        %901 = vmatpush1.bf16.xpose.msra.mxu0 0
        %902 = vmatprep.subr.bf16.mxu0 0
        %903 = vmatpush1.bf16.xpose.msra.mxu0 0
        %904 = vmatprep.subr.bf16.mxu0 0
        %905 = vmatpush1.bf16.xpose.msra.mxu0 0
        %906 = vmatprep.subr.bf16.mxu0 0
        %907 = vmatpush1.bf16.xpose.msra.mxu0 0
        %908 = vmatprep.subr.bf16.mxu0 0
        %909 = vmatpush1.bf16.xpose.msra.mxu0 0
        %910 = vmatprep.subr.bf16.mxu0 0
        %911 = vmatpush1.bf16.xpose.msra.mxu0 0
        %912 = vmatprep.subr.bf16.mxu0 0
        %913 = vmatpush1.bf16.xpose.msra.mxu0 0
        %914 = vmatprep.subr.bf16.mxu0 0
        %915 = vmatpush1.bf16.xpose.msra.mxu0 0
        %916 = vmatprep.subr.bf16.mxu0 0
        %917 = vmatpush1.bf16.xpose.msra.mxu0 0
        %918 = vmatprep.mubr.bf16.mxu0 0
        %919 = vmatmul.mubr.bf16.gmra.mrb[0].mxu0 %v881
        %v920 = vpop.f32.mrb[0].mxu0
        %v921 = vadd.f32 0.0, %v920
        %v922 = vpop.f32.mrb[0].mxu0
        %v923 = vpop.f32.mrb[0].mxu0
        %v924 = vadd.f32 0.0, %v923
        %v925 = vpop.f32.mrb[0].mxu0
        %926 = vdwg.mxu0
        %v928 = vsel %vm879, %v874, 0
        %v931 = vsel %vm879, %v876, 0
        %933 = vmatprep.subr.bf16.mxu0 0
        %934 = vmatpush1.bf16.xpose.msra.mxu0 %v931
        %935 = vmatprep.subr.bf16.mxu0 0
        %936 = vmatpush1.bf16.xpose.msra.mxu0 0
        %937 = vmatprep.subr.bf16.mxu0 0
        %938 = vmatpush1.bf16.xpose.msra.mxu0 0
        %939 = vmatprep.subr.bf16.mxu0 0
        %940 = vmatpush1.bf16.xpose.msra.mxu0 0
        %941 = vmatprep.subr.bf16.mxu0 0
        %942 = vmatpush1.bf16.xpose.msra.mxu0 0
        %943 = vmatprep.subr.bf16.mxu0 0
        %944 = vmatpush1.bf16.xpose.msra.mxu0 0
        %945 = vmatprep.subr.bf16.mxu0 0
        %946 = vmatpush1.bf16.xpose.msra.mxu0 0
        %947 = vmatprep.subr.bf16.mxu0 0
        %948 = vmatpush1.bf16.xpose.msra.mxu0 0
        %949 = vmatprep.subr.bf16.mxu0 0
        %950 = vmatpush1.bf16.xpose.msra.mxu0 0
        %951 = vmatprep.subr.bf16.mxu0 0
        %952 = vmatpush1.bf16.xpose.msra.mxu0 0
        %953 = vmatprep.subr.bf16.mxu0 0
        %954 = vmatpush1.bf16.xpose.msra.mxu0 0
        %955 = vmatprep.subr.bf16.mxu0 0
        %956 = vmatpush1.bf16.xpose.msra.mxu0 0
        %957 = vmatprep.subr.bf16.mxu0 0
        %958 = vmatpush1.bf16.xpose.msra.mxu0 0
        %959 = vmatprep.subr.bf16.mxu0 0
        %960 = vmatpush1.bf16.xpose.msra.mxu0 0
        %961 = vmatprep.subr.bf16.mxu0 0
        %962 = vmatpush1.bf16.xpose.msra.mxu0 0
        %963 = vmatprep.subr.bf16.mxu0 0
        %964 = vmatpush1.bf16.xpose.msra.mxu0 0
        %965 = vmatprep.mubr.bf16.mxu0 0
        %966 = vmatmul.mubr.bf16.gmra.mrb[0].mxu0 %v928
        %v967 = vpop.f32.mrb[0].mxu0
        %v968 = vadd.f32 0.0, %v967
        %v969 = vpop.f32.mrb[0].mxu0
        %v970 = vpop.f32.mrb[0].mxu0
        %v971 = vadd.f32 0.0, %v970
        %v972 = vpop.f32.mrb[0].mxu0
        %973 = vdwg.mxu0
        %vm974 = vcmask 130048
        %v975 = vsel %vm974, %v921, -inf
        %976 = vmax.xlane.f32.xlu0 %v975
        %v977 = vpop.xlane.xlu0 %976
        %v978 = vsel %vm974, %v924, -inf
        %979 = vmax.xlane.f32.xlu0 %v978
        %v980 = vpop.xlane.xlu0 %979
        %v981 = vsel %vm974, %v968, -inf
        %982 = vmax.xlane.f32.xlu0 %v981
        %v983 = vpop.xlane.xlu0 %982
        %v984 = vsel %vm974, %v971, -inf
        %985 = vmax.xlane.f32.xlu0 %v984
        %v986 = vpop.xlane.xlu0 %985
        %v987 = vsub.f32 %v921, %v977
        %v988 = vsub.f32 %v924, %v980
        %v989 = vsub.f32 %v968, %v983
        %v990 = vsub.f32 %v971, %v986
        %v991 = vmul.f32 %v987, 1.442695
        %v992 = vpow.pop %v991
        %v993 = vmul.f32 %v988, 1.442695
        %v994 = vpow.pop %v993
        %v995 = vmul.f32 %v989, 1.442695
        %v996 = vpow.pop %v995
        %v997 = vmul.f32 %v990, 1.442695
        %v998 = vpow.pop %v997
        %v999 = vsel %vm974, %v992, 0.0
        %1000 = vadd.xlane.f32.xlu0 %v999
        %v1001 = vpop.xlane.xlu0 %1000
        %v1002 = vsel %vm974, %v994, 0.0
        %1003 = vadd.xlane.f32.xlu0 %v1002
        %v1004 = vpop.xlane.xlu0 %1003
        %v1005 = vsel %vm974, %v996, 0.0
        %1006 = vadd.xlane.f32.xlu0 %v1005
        %v1007 = vpop.xlane.xlu0 %1006
        %v1008 = vsel %vm974, %v998, 0.0
        %1009 = vadd.xlane.f32.xlu0 %v1008
        %v1010 = vpop.xlane.xlu0 %1009
        %v1011 = vrcp.pop %v1001
        %v1012 = vrcp.pop %v1004
        %v1013 = vrcp.pop %v1007
        %v1014 = vrcp.pop %v1010
        %v1015 = vmul.f32 %v992, %v1011
        %v1016 = vmul.f32 %v994, %v1012
        %v1017 = vmul.f32 %v996, %v1013
        %v1018 = vmul.f32 %v998, %v1014
        %v1019 = vpack.c.bf16 %v1016, %v1015
        %v1020 = vpack.c.bf16 %v1018, %v1017
        %v1022 = vsel %vm974, %v1019, 0
        %1024 = vmatprep.subr.bf16.mxu0 0
        %1025 = vmatpush1.bf16.msra.mxu0 %v877
        %1026 = vmatprep.subr.bf16.mxu0 0
        %1027 = vmatpush1.bf16.msra.mxu0 0
        %1028 = vmatprep.subr.bf16.mxu0 0
        %1029 = vmatpush1.bf16.msra.mxu0 0
        %1030 = vmatprep.subr.bf16.mxu0 0
        %1031 = vmatpush1.bf16.msra.mxu0 0
        %1032 = vmatprep.subr.bf16.mxu0 0
        %1033 = vmatpush1.bf16.msra.mxu0 0
        %1034 = vmatprep.subr.bf16.mxu0 0
        %1035 = vmatpush1.bf16.msra.mxu0 0
        %1036 = vmatprep.subr.bf16.mxu0 0
        %1037 = vmatpush1.bf16.msra.mxu0 0
        %1038 = vmatprep.subr.bf16.mxu0 0
        %1039 = vmatpush1.bf16.msra.mxu0 0
        %1040 = vmatprep.subr.bf16.mxu0 0
        %1041 = vmatpush1.bf16.msra.mxu0 0
        %1042 = vmatprep.subr.bf16.mxu0 0
        %1043 = vmatpush1.bf16.msra.mxu0 0
        %1044 = vmatprep.subr.bf16.mxu0 0
        %1045 = vmatpush1.bf16.msra.mxu0 0
        %1046 = vmatprep.subr.bf16.mxu0 0
        %1047 = vmatpush1.bf16.msra.mxu0 0
        %1048 = vmatprep.subr.bf16.mxu0 0
        %1049 = vmatpush1.bf16.msra.mxu0 0
        %1050 = vmatprep.subr.bf16.mxu0 0
        %1051 = vmatpush1.bf16.msra.mxu0 0
        %1052 = vmatprep.subr.bf16.mxu0 0
        %1053 = vmatpush1.bf16.msra.mxu0 0
        %1054 = vmatprep.subr.bf16.mxu0 0
        %1055 = vmatpush1.bf16.msra.mxu0 0
        %1056 = vmatprep.mubr.bf16.mxu0 0
        %1057 = vmatmul.mubr.bf16.gmra.mrb[0].mxu0 %v1022
        %v1058 = vpop.f32.mrb[0].mxu0
        %v1059 = vadd.f32 0.0, %v1058
        %v1060 = vpop.f32.mrb[0].mxu0
        %v1061 = vpop.f32.mrb[0].mxu0
        %v1062 = vadd.f32 0.0, %v1061
        %v1063 = vpop.f32.mrb[0].mxu0
        %1064 = vdwg.mxu0
        %v1066 = vsel %vm974, %v1020, 0
        %1068 = vmatprep.subr.bf16.mxu0 0
        %1069 = vmatpush1.bf16.msra.mxu0 %v878
        %1070 = vmatprep.subr.bf16.mxu0 0
        %1071 = vmatpush1.bf16.msra.mxu0 0
        %1072 = vmatprep.subr.bf16.mxu0 0
        %1073 = vmatpush1.bf16.msra.mxu0 0
        %1074 = vmatprep.subr.bf16.mxu0 0
        %1075 = vmatpush1.bf16.msra.mxu0 0
        %1076 = vmatprep.subr.bf16.mxu0 0
        %1077 = vmatpush1.bf16.msra.mxu0 0
        %1078 = vmatprep.subr.bf16.mxu0 0
        %1079 = vmatpush1.bf16.msra.mxu0 0
        %1080 = vmatprep.subr.bf16.mxu0 0
        %1081 = vmatpush1.bf16.msra.mxu0 0
        %1082 = vmatprep.subr.bf16.mxu0 0
        %1083 = vmatpush1.bf16.msra.mxu0 0
        %1084 = vmatprep.subr.bf16.mxu0 0
        %1085 = vmatpush1.bf16.msra.mxu0 0
        %1086 = vmatprep.subr.bf16.mxu0 0
        %1087 = vmatpush1.bf16.msra.mxu0 0
        %1088 = vmatprep.subr.bf16.mxu0 0
        %1089 = vmatpush1.bf16.msra.mxu0 0
        %1090 = vmatprep.subr.bf16.mxu0 0
        %1091 = vmatpush1.bf16.msra.mxu0 0
        %1092 = vmatprep.subr.bf16.mxu0 0
        %1093 = vmatpush1.bf16.msra.mxu0 0
        %1094 = vmatprep.subr.bf16.mxu0 0
        %1095 = vmatpush1.bf16.msra.mxu0 0
        %1096 = vmatprep.subr.bf16.mxu0 0
        %1097 = vmatpush1.bf16.msra.mxu0 0
        %1098 = vmatprep.subr.bf16.mxu0 0
        %1099 = vmatpush1.bf16.msra.mxu0 0
        %1100 = vmatprep.mubr.bf16.mxu0 0
        %1101 = vmatmul.mubr.bf16.gmra.mrb[0].mxu0 %v1066
        %v1102 = vpop.f32.mrb[0].mxu0
        %v1103 = vadd.f32 0.0, %v1102
        %v1104 = vpop.f32.mrb[0].mxu0
        %v1105 = vpop.f32.mrb[0].mxu0
        %v1106 = vadd.f32 0.0, %v1105
        %v1107 = vpop.f32.mrb[0].mxu0
        %1108 = vdwg.mxu0
        %v1109 = vpack.c.bf16 %v1062, %v1059
        %v1110 = vpack.c.bf16 %v1106, %v1103
        %1111 = vst.msk [vmem:[#allocation2] sm:$0xff] %vm879, %v1109
        %1112 = vst.msk [vmem:[#allocation2 + $0x8] sm:$0xff] %vm879, %v1110
        %1114 = vrot.lane.b32.xlu0 %v873, 96
        %v1115 = vpop.permute.xlu0 %1114
        %1117 = vrot.lane.b32.xlu0 %v875, 96
        %v1118 = vpop.permute.xlu0 %1117
        %v1120 = vsel %vm879, %v1115, 0
        %v1123 = vsel %vm879, %v1118, 0
        %1125 = vmatprep.subr.bf16.mxu0 0
        %1126 = vmatpush1.bf16.xpose.msra.mxu0 %v1123
        %1127 = vmatprep.subr.bf16.mxu0 0
        %1128 = vmatpush1.bf16.xpose.msra.mxu0 0
        %1129 = vmatprep.subr.bf16.mxu0 0
        %1130 = vmatpush1.bf16.xpose.msra.mxu0 0
        %1131 = vmatprep.subr.bf16.mxu0 0
        %1132 = vmatpush1.bf16.xpose.msra.mxu0 0
        %1133 = vmatprep.subr.bf16.mxu0 0
        %1134 = vmatpush1.bf16.xpose.msra.mxu0 0
        %1135 = vmatprep.subr.bf16.mxu0 0
        %1136 = vmatpush1.bf16.xpose.msra.mxu0 0
        %1137 = vmatprep.subr.bf16.mxu0 0
        %1138 = vmatpush1.bf16.xpose.msra.mxu0 0
        %1139 = vmatprep.subr.bf16.mxu0 0
        %1140 = vmatpush1.bf16.xpose.msra.mxu0 0
        %1141 = vmatprep.subr.bf16.mxu0 0
        %1142 = vmatpush1.bf16.xpose.msra.mxu0 0
        %1143 = vmatprep.subr.bf16.mxu0 0
        %1144 = vmatpush1.bf16.xpose.msra.mxu0 0
        %1145 = vmatprep.subr.bf16.mxu0 0
        %1146 = vmatpush1.bf16.xpose.msra.mxu0 0
        %1147 = vmatprep.subr.bf16.mxu0 0
        %1148 = vmatpush1.bf16.xpose.msra.mxu0 0
        %1149 = vmatprep.subr.bf16.mxu0 0
        %1150 = vmatpush1.bf16.xpose.msra.mxu0 0
        %1151 = vmatprep.subr.bf16.mxu0 0
        %1152 = vmatpush1.bf16.xpose.msra.mxu0 0
        %1153 = vmatprep.subr.bf16.mxu0 0
        %1154 = vmatpush1.bf16.xpose.msra.mxu0 0
        %1155 = vmatprep.subr.bf16.mxu0 0
        %1156 = vmatpush1.bf16.xpose.msra.mxu0 0
        %1157 = vmatprep.mubr.bf16.mxu0 0
        %1158 = vmatmul.mubr.bf16.gmra.mrb[0].mxu0 %v1120
        %v1159 = vpop.f32.mrb[0].mxu0
        %v1160 = vadd.f32 0.0, %v1159
        %v1161 = vpop.f32.mrb[0].mxu0
        %v1162 = vpop.f32.mrb[0].mxu0
        %v1163 = vadd.f32 0.0, %v1162
        %v1164 = vpop.f32.mrb[0].mxu0
        %1165 = vdwg.mxu0
        %1167 = vrot.lane.b32.xlu0 %v874, 96
        %v1168 = vpop.permute.xlu0 %1167
        %1170 = vrot.lane.b32.xlu0 %v876, 96
        %v1171 = vpop.permute.xlu0 %1170
        %v1173 = vsel %vm879, %v1168, 0
        %v1176 = vsel %vm879, %v1171, 0
        %1178 = vmatprep.subr.bf16.mxu0 0
        %1179 = vmatpush1.bf16.xpose.msra.mxu0 %v1176
        %1180 = vmatprep.subr.bf16.mxu0 0
        %1181 = vmatpush1.bf16.xpose.msra.mxu0 0
        %1182 = vmatprep.subr.bf16.mxu0 0
        %1183 = vmatpush1.bf16.xpose.msra.mxu0 0
        %1184 = vmatprep.subr.bf16.mxu0 0
        %1185 = vmatpush1.bf16.xpose.msra.mxu0 0
        %1186 = vmatprep.subr.bf16.mxu0 0
        %1187 = vmatpush1.bf16.xpose.msra.mxu0 0
        %1188 = vmatprep.subr.bf16.mxu0 0
        %1189 = vmatpush1.bf16.xpose.msra.mxu0 0
        %1190 = vmatprep.subr.bf16.mxu0 0
        %1191 = vmatpush1.bf16.xpose.msra.mxu0 0
        %1192 = vmatprep.subr.bf16.mxu0 0
        %1193 = vmatpush1.bf16.xpose.msra.mxu0 0
        %1194 = vmatprep.subr.bf16.mxu0 0
        %1195 = vmatpush1.bf16.xpose.msra.mxu0 0
        %1196 = vmatprep.subr.bf16.mxu0 0
        %1197 = vmatpush1.bf16.xpose.msra.mxu0 0
        %1198 = vmatprep.subr.bf16.mxu0 0
        %1199 = vmatpush1.bf16.xpose.msra.mxu0 0
        %1200 = vmatprep.subr.bf16.mxu0 0
        %1201 = vmatpush1.bf16.xpose.msra.mxu0 0
        %1202 = vmatprep.subr.bf16.mxu0 0
        %1203 = vmatpush1.bf16.xpose.msra.mxu0 0
        %1204 = vmatprep.subr.bf16.mxu0 0
        %1205 = vmatpush1.bf16.xpose.msra.mxu0 0
        %1206 = vmatprep.subr.bf16.mxu0 0
        %1207 = vmatpush1.bf16.xpose.msra.mxu0 0
        %1208 = vmatprep.subr.bf16.mxu0 0
        %1209 = vmatpush1.bf16.xpose.msra.mxu0 0
        %1210 = vmatprep.mubr.bf16.mxu0 0
        %1211 = vmatmul.mubr.bf16.gmra.mrb[0].mxu0 %v1173
        %v1212 = vpop.f32.mrb[0].mxu0
        %v1213 = vadd.f32 0.0, %v1212
        %v1214 = vpop.f32.mrb[0].mxu0
        %v1215 = vpop.f32.mrb[0].mxu0
        %v1216 = vadd.f32 0.0, %v1215
        %v1217 = vpop.f32.mrb[0].mxu0
        %1218 = vdwg.mxu0
        %v1219 = vsel %vm974, %v1160, -inf
        %1220 = vmax.xlane.f32.xlu0 %v1219
        %v1221 = vpop.xlane.xlu0 %1220
        %v1222 = vsel %vm974, %v1163, -inf
        %1223 = vmax.xlane.f32.xlu0 %v1222
        %v1224 = vpop.xlane.xlu0 %1223
        %v1225 = vsel %vm974, %v1213, -inf
        %1226 = vmax.xlane.f32.xlu0 %v1225
        %v1227 = vpop.xlane.xlu0 %1226
        %v1228 = vsel %vm974, %v1216, -inf
        %1229 = vmax.xlane.f32.xlu0 %v1228
        %v1230 = vpop.xlane.xlu0 %1229
        %v1231 = vsub.f32 %v1160, %v1221
        %v1232 = vsub.f32 %v1163, %v1224
        %v1233 = vsub.f32 %v1213, %v1227
        %v1234 = vsub.f32 %v1216, %v1230
        %v1235 = vmul.f32 %v1231, 1.442695
        %v1236 = vpow.pop %v1235
        %v1237 = vmul.f32 %v1232, 1.442695
        %v1238 = vpow.pop %v1237
        %v1239 = vmul.f32 %v1233, 1.442695
        %v1240 = vpow.pop %v1239
        %v1241 = vmul.f32 %v1234, 1.442695
        %v1242 = vpow.pop %v1241
        %v1243 = vsel %vm974, %v1236, 0.0
        %1244 = vadd.xlane.f32.xlu0 %v1243
        %v1245 = vpop.xlane.xlu0 %1244
        %v1246 = vsel %vm974, %v1238, 0.0
        %1247 = vadd.xlane.f32.xlu0 %v1246
        %v1248 = vpop.xlane.xlu0 %1247
        %v1249 = vsel %vm974, %v1240, 0.0
        %1250 = vadd.xlane.f32.xlu0 %v1249
        %v1251 = vpop.xlane.xlu0 %1250
        %v1252 = vsel %vm974, %v1242, 0.0
        %1253 = vadd.xlane.f32.xlu0 %v1252
        %v1254 = vpop.xlane.xlu0 %1253
        %v1255 = vrcp.pop %v1245
        %v1256 = vrcp.pop %v1248
        %v1257 = vrcp.pop %v1251
        %v1258 = vrcp.pop %v1254
        %v1259 = vmul.f32 %v1236, %v1255
        %v1260 = vmul.f32 %v1238, %v1256
        %v1261 = vmul.f32 %v1240, %v1257
        %v1262 = vmul.f32 %v1242, %v1258
        %v1263 = vpack.c.bf16 %v1260, %v1259
        %v1264 = vpack.c.bf16 %v1262, %v1261
        %1266 = vrot.lane.b32.xlu0 %v877, 96
        %v1267 = vpop.permute.xlu0 %1266
        %v1270 = vsel %vm974, %v1263, 0
        %1272 = vmatprep.subr.bf16.mxu0 0
        %1273 = vmatpush1.bf16.msra.mxu0 %v1267
        %1274 = vmatprep.subr.bf16.mxu0 0
        %1275 = vmatpush1.bf16.msra.mxu0 0
        %1276 = vmatprep.subr.bf16.mxu0 0
        %1277 = vmatpush1.bf16.msra.mxu0 0
        %1278 = vmatprep.subr.bf16.mxu0 0
        %1279 = vmatpush1.bf16.msra.mxu0 0
        %1280 = vmatprep.subr.bf16.mxu0 0
        %1281 = vmatpush1.bf16.msra.mxu0 0
        %1282 = vmatprep.subr.bf16.mxu0 0
        %1283 = vmatpush1.bf16.msra.mxu0 0
        %1284 = vmatprep.subr.bf16.mxu0 0
        %1285 = vmatpush1.bf16.msra.mxu0 0
        %1286 = vmatprep.subr.bf16.mxu0 0
        %1287 = vmatpush1.bf16.msra.mxu0 0
        %1288 = vmatprep.subr.bf16.mxu0 0
        %1289 = vmatpush1.bf16.msra.mxu0 0
        %1290 = vmatprep.subr.bf16.mxu0 0
        %1291 = vmatpush1.bf16.msra.mxu0 0
        %1292 = vmatprep.subr.bf16.mxu0 0
        %1293 = vmatpush1.bf16.msra.mxu0 0
        %1294 = vmatprep.subr.bf16.mxu0 0
        %1295 = vmatpush1.bf16.msra.mxu0 0
        %1296 = vmatprep.subr.bf16.mxu0 0
        %1297 = vmatpush1.bf16.msra.mxu0 0
        %1298 = vmatprep.subr.bf16.mxu0 0
        %1299 = vmatpush1.bf16.msra.mxu0 0
        %1300 = vmatprep.subr.bf16.mxu0 0
        %1301 = vmatpush1.bf16.msra.mxu0 0
        %1302 = vmatprep.subr.bf16.mxu0 0
        %1303 = vmatpush1.bf16.msra.mxu0 0
        %1304 = vmatprep.mubr.bf16.mxu0 0
        %1305 = vmatmul.mubr.bf16.gmra.mrb[0].mxu0 %v1270
        %v1306 = vpop.f32.mrb[0].mxu0
        %v1307 = vadd.f32 0.0, %v1306
        %v1308 = vpop.f32.mrb[0].mxu0
        %v1309 = vpop.f32.mrb[0].mxu0
        %v1310 = vadd.f32 0.0, %v1309
        %v1311 = vpop.f32.mrb[0].mxu0
        %1312 = vdwg.mxu0
        %1314 = vrot.lane.b32.xlu0 %v878, 96
        %v1315 = vpop.permute.xlu0 %1314
        %v1318 = vsel %vm974, %v1264, 0
        %1320 = vmatprep.subr.bf16.mxu0 0
        %1321 = vmatpush1.bf16.msra.mxu0 %v1315
        %1322 = vmatprep.subr.bf16.mxu0 0
        %1323 = vmatpush1.bf16.msra.mxu0 0
        %1324 = vmatprep.subr.bf16.mxu0 0
        %1325 = vmatpush1.bf16.msra.mxu0 0
        %1326 = vmatprep.subr.bf16.mxu0 0
        %1327 = vmatpush1.bf16.msra.mxu0 0
        %1328 = vmatprep.subr.bf16.mxu0 0
        %1329 = vmatpush1.bf16.msra.mxu0 0
        %1330 = vmatprep.subr.bf16.mxu0 0
        %1331 = vmatpush1.bf16.msra.mxu0 0
        %1332 = vmatprep.subr.bf16.mxu0 0
        %1333 = vmatpush1.bf16.msra.mxu0 0
        %1334 = vmatprep.subr.bf16.mxu0 0
        %1335 = vmatpush1.bf16.msra.mxu0 0
        %1336 = vmatprep.subr.bf16.mxu0 0
        %1337 = vmatpush1.bf16.msra.mxu0 0
        %1338 = vmatprep.subr.bf16.mxu0 0
        %1339 = vmatpush1.bf16.msra.mxu0 0
        %1340 = vmatprep.subr.bf16.mxu0 0
        %1341 = vmatpush1.bf16.msra.mxu0 0
        %1342 = vmatprep.subr.bf16.mxu0 0
        %1343 = vmatpush1.bf16.msra.mxu0 0
        %1344 = vmatprep.subr.bf16.mxu0 0
        %1345 = vmatpush1.bf16.msra.mxu0 0
        %1346 = vmatprep.subr.bf16.mxu0 0
        %1347 = vmatpush1.bf16.msra.mxu0 0
        %1348 = vmatprep.subr.bf16.mxu0 0
        %1349 = vmatpush1.bf16.msra.mxu0 0
        %1350 = vmatprep.subr.bf16.mxu0 0
        %1351 = vmatpush1.bf16.msra.mxu0 0
        %1352 = vmatprep.mubr.bf16.mxu0 0
        %1353 = vmatmul.mubr.bf16.gmra.mrb[0].mxu0 %v1318
        %v1354 = vpop.f32.mrb[0].mxu0
        %v1355 = vadd.f32 0.0, %v1354
        %v1356 = vpop.f32.mrb[0].mxu0
        %v1357 = vpop.f32.mrb[0].mxu0
        %v1358 = vadd.f32 0.0, %v1357
        %v1359 = vpop.f32.mrb[0].mxu0
        %1360 = vdwg.mxu0
        %v1361 = vpack.c.bf16 %v1310, %v1307
        %v1362 = vpack.c.bf16 %v1358, %v1355
        %1365 = vrot.lane.b32.xlu0 %v1361, 32
        %v1366 = vpop.permute.xlu0 %1365
        %1367 = vrot.lane.b32.xlu0 %v1362, 32
        %v1368 = vpop.permute.xlu0 %1367
        %vm1371 = vcmask 523520
        %1372 = vst.msk [vmem:[#allocation2] sm:$0xff] %vm1371, %v1366
        %1373 = vst.msk [vmem:[#allocation2 + $0x8] sm:$0xff] %vm1371, %v1368
        %1374 = vrot.lane.b32.xlu0 %v873, 64
        %v1375 = vpop.permute.xlu0 %1374
        %1376 = vrot.lane.b32.xlu0 %v875, 64
        %v1377 = vpop.permute.xlu0 %1376
        %v1379 = vsel %vm879, %v1375, 0
        %v1382 = vsel %vm879, %v1377, 0
        %1384 = vmatprep.subr.bf16.mxu0 0
        %1385 = vmatpush1.bf16.xpose.msra.mxu0 %v1382
        %1386 = vmatprep.subr.bf16.mxu0 0
        %1387 = vmatpush1.bf16.xpose.msra.mxu0 0
        %1388 = vmatprep.subr.bf16.mxu0 0
        %1389 = vmatpush1.bf16.xpose.msra.mxu0 0
        %1390 = vmatprep.subr.bf16.mxu0 0
        %1391 = vmatpush1.bf16.xpose.msra.mxu0 0
        %1392 = vmatprep.subr.bf16.mxu0 0
        %1393 = vmatpush1.bf16.xpose.msra.mxu0 0
        %1394 = vmatprep.subr.bf16.mxu0 0
        %1395 = vmatpush1.bf16.xpose.msra.mxu0 0
        %1396 = vmatprep.subr.bf16.mxu0 0
        %1397 = vmatpush1.bf16.xpose.msra.mxu0 0
        %1398 = vmatprep.subr.bf16.mxu0 0
        %1399 = vmatpush1.bf16.xpose.msra.mxu0 0
        %1400 = vmatprep.subr.bf16.mxu0 0
        %1401 = vmatpush1.bf16.xpose.msra.mxu0 0
        %1402 = vmatprep.subr.bf16.mxu0 0
        %1403 = vmatpush1.bf16.xpose.msra.mxu0 0
        %1404 = vmatprep.subr.bf16.mxu0 0
        %1405 = vmatpush1.bf16.xpose.msra.mxu0 0
        %1406 = vmatprep.subr.bf16.mxu0 0
        %1407 = vmatpush1.bf16.xpose.msra.mxu0 0
        %1408 = vmatprep.subr.bf16.mxu0 0
        %1409 = vmatpush1.bf16.xpose.msra.mxu0 0
        %1410 = vmatprep.subr.bf16.mxu0 0
        %1411 = vmatpush1.bf16.xpose.msra.mxu0 0
        %1412 = vmatprep.subr.bf16.mxu0 0
        %1413 = vmatpush1.bf16.xpose.msra.mxu0 0
        %1414 = vmatprep.subr.bf16.mxu0 0
        %1415 = vmatpush1.bf16.xpose.msra.mxu0 0
        %1416 = vmatprep.mubr.bf16.mxu0 0
        %1417 = vmatmul.mubr.bf16.gmra.mrb[0].mxu0 %v1379
        %v1418 = vpop.f32.mrb[0].mxu0
        %v1419 = vadd.f32 0.0, %v1418
        %v1420 = vpop.f32.mrb[0].mxu0
        %v1421 = vpop.f32.mrb[0].mxu0
        %v1422 = vadd.f32 0.0, %v1421
        %v1423 = vpop.f32.mrb[0].mxu0
        %1424 = vdwg.mxu0
        %1425 = vrot.lane.b32.xlu0 %v874, 64
        %v1426 = vpop.permute.xlu0 %1425
        %1427 = vrot.lane.b32.xlu0 %v876, 64
        %v1428 = vpop.permute.xlu0 %1427
        %v1430 = vsel %vm879, %v1426, 0
        %v1433 = vsel %vm879, %v1428, 0
        %1435 = vmatprep.subr.bf16.mxu0 0
        %1436 = vmatpush1.bf16.xpose.msra.mxu0 %v1433
        %1437 = vmatprep.subr.bf16.mxu0 0
        %1438 = vmatpush1.bf16.xpose.msra.mxu0 0
        %1439 = vmatprep.subr.bf16.mxu0 0
        %1440 = vmatpush1.bf16.xpose.msra.mxu0 0
        %1441 = vmatprep.subr.bf16.mxu0 0
        %1442 = vmatpush1.bf16.xpose.msra.mxu0 0
        %1443 = vmatprep.subr.bf16.mxu0 0
        %1444 = vmatpush1.bf16.xpose.msra.mxu0 0
        %1445 = vmatprep.subr.bf16.mxu0 0
        %1446 = vmatpush1.bf16.xpose.msra.mxu0 0
        %1447 = vmatprep.subr.bf16.mxu0 0
        %1448 = vmatpush1.bf16.xpose.msra.mxu0 0
        %1449 = vmatprep.subr.bf16.mxu0 0
        %1450 = vmatpush1.bf16.xpose.msra.mxu0 0
        %1451 = vmatprep.subr.bf16.mxu0 0
        %1452 = vmatpush1.bf16.xpose.msra.mxu0 0
        %1453 = vmatprep.subr.bf16.mxu0 0
        %1454 = vmatpush1.bf16.xpose.msra.mxu0 0
        %1455 = vmatprep.subr.bf16.mxu0 0
        %1456 = vmatpush1.bf16.xpose.msra.mxu0 0
        %1457 = vmatprep.subr.bf16.mxu0 0
        %1458 = vmatpush1.bf16.xpose.msra.mxu0 0
        %1459 = vmatprep.subr.bf16.mxu0 0
        %1460 = vmatpush1.bf16.xpose.msra.mxu0 0
        %1461 = vmatprep.subr.bf16.mxu0 0
        %1462 = vmatpush1.bf16.xpose.msra.mxu0 0
        %1463 = vmatprep.subr.bf16.mxu0 0
        %1464 = vmatpush1.bf16.xpose.msra.mxu0 0
        %1465 = vmatprep.subr.bf16.mxu0 0
        %1466 = vmatpush1.bf16.xpose.msra.mxu0 0
        %1467 = vmatprep.mubr.bf16.mxu0 0
        %1468 = vmatmul.mubr.bf16.gmra.mrb[0].mxu0 %v1430
        %v1469 = vpop.f32.mrb[0].mxu0
        %v1470 = vadd.f32 0.0, %v1469
        %v1471 = vpop.f32.mrb[0].mxu0
        %v1472 = vpop.f32.mrb[0].mxu0
        %v1473 = vadd.f32 0.0, %v1472
        %v1474 = vpop.f32.mrb[0].mxu0
        %1475 = vdwg.mxu0
        %v1476 = vsel %vm974, %v1419, -inf
        %1477 = vmax.xlane.f32.xlu0 %v1476
        %v1478 = vpop.xlane.xlu0 %1477
        %v1479 = vsel %vm974, %v1422, -inf
        %1480 = vmax.xlane.f32.xlu0 %v1479
        %v1481 = vpop.xlane.xlu0 %1480
        %v1482 = vsel %vm974, %v1470, -inf
        %1483 = vmax.xlane.f32.xlu0 %v1482
        %v1484 = vpop.xlane.xlu0 %1483
        %v1485 = vsel %vm974, %v1473, -inf
        %1486 = vmax.xlane.f32.xlu0 %v1485
        %v1487 = vpop.xlane.xlu0 %1486
        %v1488 = vsub.f32 %v1419, %v1478
        %v1489 = vsub.f32 %v1422, %v1481
        %v1490 = vsub.f32 %v1470, %v1484
        %v1491 = vsub.f32 %v1473, %v1487
        %v1492 = vmul.f32 %v1488, 1.442695
        %v1493 = vpow.pop %v1492
        %v1494 = vmul.f32 %v1489, 1.442695
        %v1495 = vpow.pop %v1494
        %v1496 = vmul.f32 %v1490, 1.442695
        %v1497 = vpow.pop %v1496
        %v1498 = vmul.f32 %v1491, 1.442695
        %v1499 = vpow.pop %v1498
        %v1500 = vsel %vm974, %v1493, 0.0
        %1501 = vadd.xlane.f32.xlu0 %v1500
        %v1502 = vpop.xlane.xlu0 %1501
        %v1503 = vsel %vm974, %v1495, 0.0
        %1504 = vadd.xlane.f32.xlu0 %v1503
        %v1505 = vpop.xlane.xlu0 %1504
        %v1506 = vsel %vm974, %v1497, 0.0
        %1507 = vadd.xlane.f32.xlu0 %v1506
        %v1508 = vpop.xlane.xlu0 %1507
        %v1509 = vsel %vm974, %v1499, 0.0
        %1510 = vadd.xlane.f32.xlu0 %v1509
        %v1511 = vpop.xlane.xlu0 %1510
        %v1512 = vrcp.pop %v1502
        %v1513 = vrcp.pop %v1505
        %v1514 = vrcp.pop %v1508
        %v1515 = vrcp.pop %v1511
        %v1516 = vmul.f32 %v1493, %v1512
        %v1517 = vmul.f32 %v1495, %v1513
        %v1518 = vmul.f32 %v1497, %v1514
        %v1519 = vmul.f32 %v1499, %v1515
        %v1520 = vpack.c.bf16 %v1517, %v1516
        %v1521 = vpack.c.bf16 %v1519, %v1518
        %1522 = vrot.lane.b32.xlu0 %v877, 64
        %v1523 = vpop.permute.xlu0 %1522
        %v1526 = vsel %vm974, %v1520, 0
        %1528 = vmatprep.subr.bf16.mxu0 0
        %1529 = vmatpush1.bf16.msra.mxu0 %v1523
        %1530 = vmatprep.subr.bf16.mxu0 0
        %1531 = vmatpush1.bf16.msra.mxu0 0
        %1532 = vmatprep.subr.bf16.mxu0 0
        %1533 = vmatpush1.bf16.msra.mxu0 0
        %1534 = vmatprep.subr.bf16.mxu0 0
        %1535 = vmatpush1.bf16.msra.mxu0 0
        %1536 = vmatprep.subr.bf16.mxu0 0
        %1537 = vmatpush1.bf16.msra.mxu0 0
        %1538 = vmatprep.subr.bf16.mxu0 0
        %1539 = vmatpush1.bf16.msra.mxu0 0
        %1540 = vmatprep.subr.bf16.mxu0 0
        %1541 = vmatpush1.bf16.msra.mxu0 0
        %1542 = vmatprep.subr.bf16.mxu0 0
        %1543 = vmatpush1.bf16.msra.mxu0 0
        %1544 = vmatprep.subr.bf16.mxu0 0
        %1545 = vmatpush1.bf16.msra.mxu0 0
        %1546 = vmatprep.subr.bf16.mxu0 0
        %1547 = vmatpush1.bf16.msra.mxu0 0
        %1548 = vmatprep.subr.bf16.mxu0 0
        %1549 = vmatpush1.bf16.msra.mxu0 0
        %1550 = vmatprep.subr.bf16.mxu0 0
        %1551 = vmatpush1.bf16.msra.mxu0 0
        %1552 = vmatprep.subr.bf16.mxu0 0
        %1553 = vmatpush1.bf16.msra.mxu0 0
        %1554 = vmatprep.subr.bf16.mxu0 0
        %1555 = vmatpush1.bf16.msra.mxu0 0
        %1556 = vmatprep.subr.bf16.mxu0 0
        %1557 = vmatpush1.bf16.msra.mxu0 0
        %1558 = vmatprep.subr.bf16.mxu0 0
        %1559 = vmatpush1.bf16.msra.mxu0 0
        %1560 = vmatprep.mubr.bf16.mxu0 0
        %1561 = vmatmul.mubr.bf16.gmra.mrb[0].mxu0 %v1526
        %v1562 = vpop.f32.mrb[0].mxu0
        %v1563 = vadd.f32 0.0, %v1562
        %v1564 = vpop.f32.mrb[0].mxu0
        %v1565 = vpop.f32.mrb[0].mxu0
        %v1566 = vadd.f32 0.0, %v1565
        %v1567 = vpop.f32.mrb[0].mxu0
        %1568 = vdwg.mxu0
        %1569 = vrot.lane.b32.xlu0 %v878, 64
        %v1570 = vpop.permute.xlu0 %1569
        %v1573 = vsel %vm974, %v1521, 0
        %1575 = vmatprep.subr.bf16.mxu0 0
        %1576 = vmatpush1.bf16.msra.mxu0 %v1570
        %1577 = vmatprep.subr.bf16.mxu0 0
        %1578 = vmatpush1.bf16.msra.mxu0 0
        %1579 = vmatprep.subr.bf16.mxu0 0
        %1580 = vmatpush1.bf16.msra.mxu0 0
        %1581 = vmatprep.subr.bf16.mxu0 0
        %1582 = vmatpush1.bf16.msra.mxu0 0
        %1583 = vmatprep.subr.bf16.mxu0 0
        %1584 = vmatpush1.bf16.msra.mxu0 0
        %1585 = vmatprep.subr.bf16.mxu0 0
        %1586 = vmatpush1.bf16.msra.mxu0 0
        %1587 = vmatprep.subr.bf16.mxu0 0
        %1588 = vmatpush1.bf16.msra.mxu0 0
        %1589 = vmatprep.subr.bf16.mxu0 0
        %1590 = vmatpush1.bf16.msra.mxu0 0
        %1591 = vmatprep.subr.bf16.mxu0 0
        %1592 = vmatpush1.bf16.msra.mxu0 0
        %1593 = vmatprep.subr.bf16.mxu0 0
        %1594 = vmatpush1.bf16.msra.mxu0 0
        %1595 = vmatprep.subr.bf16.mxu0 0
        %1596 = vmatpush1.bf16.msra.mxu0 0
        %1597 = vmatprep.subr.bf16.mxu0 0
        %1598 = vmatpush1.bf16.msra.mxu0 0
        %1599 = vmatprep.subr.bf16.mxu0 0
        %1600 = vmatpush1.bf16.msra.mxu0 0
        %1601 = vmatprep.subr.bf16.mxu0 0
        %1602 = vmatpush1.bf16.msra.mxu0 0
        %1603 = vmatprep.subr.bf16.mxu0 0
        %1604 = vmatpush1.bf16.msra.mxu0 0
        %1605 = vmatprep.subr.bf16.mxu0 0
        %1606 = vmatpush1.bf16.msra.mxu0 0
        %1607 = vmatprep.mubr.bf16.mxu0 0
        %1608 = vmatmul.mubr.bf16.gmra.mrb[0].mxu0 %v1573
        %v1609 = vpop.f32.mrb[0].mxu0
        %v1610 = vadd.f32 0.0, %v1609
        %v1611 = vpop.f32.mrb[0].mxu0
        %v1612 = vpop.f32.mrb[0].mxu0
        %v1613 = vadd.f32 0.0, %v1612
        %v1614 = vpop.f32.mrb[0].mxu0
        %1615 = vdwg.mxu0
        %v1616 = vpack.c.bf16 %v1566, %v1563
        %v1617 = vpack.c.bf16 %v1613, %v1610
        %1620 = vrot.lane.b32.xlu0 %v1616, 64
        %v1621 = vpop.permute.xlu0 %1620
        %1622 = vrot.lane.b32.xlu0 %v1617, 64
        %v1623 = vpop.permute.xlu0 %1622
        %vm1626 = vcmask 785920
        %1627 = vst.msk [vmem:[#allocation2] sm:$0xff] %vm1626, %v1621
        %1628 = vst.msk [vmem:[#allocation2 + $0x8] sm:$0xff] %vm1626, %v1623
        %1629 = vrot.lane.b32.xlu0 %v873, 32
        %v1630 = vpop.permute.xlu0 %1629
        %1631 = vrot.lane.b32.xlu0 %v875, 32
        %v1632 = vpop.permute.xlu0 %1631
        %v1634 = vsel %vm879, %v1630, 0
        %v1637 = vsel %vm879, %v1632, 0
        %1639 = vmatprep.subr.bf16.mxu0 0
        %1640 = vmatpush1.bf16.xpose.msra.mxu0 %v1637
        %1641 = vmatprep.subr.bf16.mxu0 0
        %1642 = vmatpush1.bf16.xpose.msra.mxu0 0
        %1643 = vmatprep.subr.bf16.mxu0 0
        %1644 = vmatpush1.bf16.xpose.msra.mxu0 0
        %1645 = vmatprep.subr.bf16.mxu0 0
        %1646 = vmatpush1.bf16.xpose.msra.mxu0 0
        %1647 = vmatprep.subr.bf16.mxu0 0
        %1648 = vmatpush1.bf16.xpose.msra.mxu0 0
        %1649 = vmatprep.subr.bf16.mxu0 0
        %1650 = vmatpush1.bf16.xpose.msra.mxu0 0
        %1651 = vmatprep.subr.bf16.mxu0 0
        %1652 = vmatpush1.bf16.xpose.msra.mxu0 0
        %1653 = vmatprep.subr.bf16.mxu0 0
        %1654 = vmatpush1.bf16.xpose.msra.mxu0 0
        %1655 = vmatprep.subr.bf16.mxu0 0
        %1656 = vmatpush1.bf16.xpose.msra.mxu0 0
        %1657 = vmatprep.subr.bf16.mxu0 0
        %1658 = vmatpush1.bf16.xpose.msra.mxu0 0
        %1659 = vmatprep.subr.bf16.mxu0 0
        %1660 = vmatpush1.bf16.xpose.msra.mxu0 0
        %1661 = vmatprep.subr.bf16.mxu0 0
        %1662 = vmatpush1.bf16.xpose.msra.mxu0 0
        %1663 = vmatprep.subr.bf16.mxu0 0
        %1664 = vmatpush1.bf16.xpose.msra.mxu0 0
        %1665 = vmatprep.subr.bf16.mxu0 0
        %1666 = vmatpush1.bf16.xpose.msra.mxu0 0
        %1667 = vmatprep.subr.bf16.mxu0 0
        %1668 = vmatpush1.bf16.xpose.msra.mxu0 0
        %1669 = vmatprep.subr.bf16.mxu0 0
        %1670 = vmatpush1.bf16.xpose.msra.mxu0 0
        %1671 = vmatprep.mubr.bf16.mxu0 0
        %1672 = vmatmul.mubr.bf16.gmra.mrb[0].mxu0 %v1634
        %v1673 = vpop.f32.mrb[0].mxu0
        %v1674 = vadd.f32 0.0, %v1673
        %v1675 = vpop.f32.mrb[0].mxu0
        %v1676 = vpop.f32.mrb[0].mxu0
        %v1677 = vadd.f32 0.0, %v1676
        %v1678 = vpop.f32.mrb[0].mxu0
        %1679 = vdwg.mxu0
        %1680 = vrot.lane.b32.xlu0 %v874, 32
        %v1681 = vpop.permute.xlu0 %1680
        %1682 = vrot.lane.b32.xlu0 %v876, 32
        %v1683 = vpop.permute.xlu0 %1682
        %v1685 = vsel %vm879, %v1681, 0
        %v1688 = vsel %vm879, %v1683, 0
        %1690 = vmatprep.subr.bf16.mxu0 0
        %1691 = vmatpush1.bf16.xpose.msra.mxu0 %v1688
        %1692 = vmatprep.subr.bf16.mxu0 0
        %1693 = vmatpush1.bf16.xpose.msra.mxu0 0
        %1694 = vmatprep.subr.bf16.mxu0 0
        %1695 = vmatpush1.bf16.xpose.msra.mxu0 0
        %1696 = vmatprep.subr.bf16.mxu0 0
        %1697 = vmatpush1.bf16.xpose.msra.mxu0 0
        %1698 = vmatprep.subr.bf16.mxu0 0
        %1699 = vmatpush1.bf16.xpose.msra.mxu0 0
        %1700 = vmatprep.subr.bf16.mxu0 0
        %1701 = vmatpush1.bf16.xpose.msra.mxu0 0
        %1702 = vmatprep.subr.bf16.mxu0 0
        %1703 = vmatpush1.bf16.xpose.msra.mxu0 0
        %1704 = vmatprep.subr.bf16.mxu0 0
        %1705 = vmatpush1.bf16.xpose.msra.mxu0 0
        %1706 = vmatprep.subr.bf16.mxu0 0
        %1707 = vmatpush1.bf16.xpose.msra.mxu0 0
        %1708 = vmatprep.subr.bf16.mxu0 0
        %1709 = vmatpush1.bf16.xpose.msra.mxu0 0
        %1710 = vmatprep.subr.bf16.mxu0 0
        %1711 = vmatpush1.bf16.xpose.msra.mxu0 0
        %1712 = vmatprep.subr.bf16.mxu0 0
        %1713 = vmatpush1.bf16.xpose.msra.mxu0 0
        %1714 = vmatprep.subr.bf16.mxu0 0
        %1715 = vmatpush1.bf16.xpose.msra.mxu0 0
        %1716 = vmatprep.subr.bf16.mxu0 0
        %1717 = vmatpush1.bf16.xpose.msra.mxu0 0
        %1718 = vmatprep.subr.bf16.mxu0 0
        %1719 = vmatpush1.bf16.xpose.msra.mxu0 0
        %1720 = vmatprep.subr.bf16.mxu0 0
        %1721 = vmatpush1.bf16.xpose.msra.mxu0 0
        %1722 = vmatprep.mubr.bf16.mxu0 0
        %1723 = vmatmul.mubr.bf16.gmra.mrb[0].mxu0 %v1685
        %v1724 = vpop.f32.mrb[0].mxu0
        %v1725 = vadd.f32 0.0, %v1724
        %v1726 = vpop.f32.mrb[0].mxu0
        %v1727 = vpop.f32.mrb[0].mxu0
        %v1728 = vadd.f32 0.0, %v1727
        %v1729 = vpop.f32.mrb[0].mxu0
        %1730 = vdwg.mxu0
        %v1731 = vsel %vm974, %v1674, -inf
        %1732 = vmax.xlane.f32.xlu0 %v1731
        %v1733 = vpop.xlane.xlu0 %1732
        %v1734 = vsel %vm974, %v1677, -inf
        %1735 = vmax.xlane.f32.xlu0 %v1734
        %v1736 = vpop.xlane.xlu0 %1735
        %v1737 = vsel %vm974, %v1725, -inf
        %1738 = vmax.xlane.f32.xlu0 %v1737
        %v1739 = vpop.xlane.xlu0 %1738
        %v1740 = vsel %vm974, %v1728, -inf
        %1741 = vmax.xlane.f32.xlu0 %v1740
        %v1742 = vpop.xlane.xlu0 %1741
        %v1743 = vsub.f32 %v1674, %v1733
        %v1744 = vsub.f32 %v1677, %v1736
        %v1745 = vsub.f32 %v1725, %v1739
        %v1746 = vsub.f32 %v1728, %v1742
        %v1747 = vmul.f32 %v1743, 1.442695
        %v1748 = vpow.pop %v1747
        %v1749 = vmul.f32 %v1744, 1.442695
        %v1750 = vpow.pop %v1749
        %v1751 = vmul.f32 %v1745, 1.442695
        %v1752 = vpow.pop %v1751
        %v1753 = vmul.f32 %v1746, 1.442695
        %v1754 = vpow.pop %v1753
        %v1755 = vsel %vm974, %v1748, 0.0
        %1756 = vadd.xlane.f32.xlu0 %v1755
        %v1757 = vpop.xlane.xlu0 %1756
        %v1758 = vsel %vm974, %v1750, 0.0
        %1759 = vadd.xlane.f32.xlu0 %v1758
        %v1760 = vpop.xlane.xlu0 %1759
        %v1761 = vsel %vm974, %v1752, 0.0
        %1762 = vadd.xlane.f32.xlu0 %v1761
        %v1763 = vpop.xlane.xlu0 %1762
        %v1764 = vsel %vm974, %v1754, 0.0
        %1765 = vadd.xlane.f32.xlu0 %v1764
        %v1766 = vpop.xlane.xlu0 %1765
        %v1767 = vrcp.pop %v1757
        %v1768 = vrcp.pop %v1760
        %v1769 = vrcp.pop %v1763
        %v1770 = vrcp.pop %v1766
        %v1771 = vmul.f32 %v1748, %v1767
        %v1772 = vmul.f32 %v1750, %v1768
        %v1773 = vmul.f32 %v1752, %v1769
        %v1774 = vmul.f32 %v1754, %v1770
        %v1775 = vpack.c.bf16 %v1772, %v1771
        %v1776 = vpack.c.bf16 %v1774, %v1773
        %1777 = vrot.lane.b32.xlu0 %v877, 32
        %v1778 = vpop.permute.xlu0 %1777
        %v1781 = vsel %vm974, %v1775, 0
        %1783 = vmatprep.subr.bf16.mxu0 0
        %1784 = vmatpush1.bf16.msra.mxu0 %v1778
        %1785 = vmatprep.subr.bf16.mxu0 0
        %1786 = vmatpush1.bf16.msra.mxu0 0
        %1787 = vmatprep.subr.bf16.mxu0 0
        %1788 = vmatpush1.bf16.msra.mxu0 0
        %1789 = vmatprep.subr.bf16.mxu0 0
        %1790 = vmatpush1.bf16.msra.mxu0 0
        %1791 = vmatprep.subr.bf16.mxu0 0
        %1792 = vmatpush1.bf16.msra.mxu0 0
        %1793 = vmatprep.subr.bf16.mxu0 0
        %1794 = vmatpush1.bf16.msra.mxu0 0
        %1795 = vmatprep.subr.bf16.mxu0 0
        %1796 = vmatpush1.bf16.msra.mxu0 0
        %1797 = vmatprep.subr.bf16.mxu0 0
        %1798 = vmatpush1.bf16.msra.mxu0 0
        %1799 = vmatprep.subr.bf16.mxu0 0
        %1800 = vmatpush1.bf16.msra.mxu0 0
        %1801 = vmatprep.subr.bf16.mxu0 0
        %1802 = vmatpush1.bf16.msra.mxu0 0
        %1803 = vmatprep.subr.bf16.mxu0 0
        %1804 = vmatpush1.bf16.msra.mxu0 0
        %1805 = vmatprep.subr.bf16.mxu0 0
        %1806 = vmatpush1.bf16.msra.mxu0 0
        %1807 = vmatprep.subr.bf16.mxu0 0
        %1808 = vmatpush1.bf16.msra.mxu0 0
        %1809 = vmatprep.subr.bf16.mxu0 0
        %1810 = vmatpush1.bf16.msra.mxu0 0
        %1811 = vmatprep.subr.bf16.mxu0 0
        %1812 = vmatpush1.bf16.msra.mxu0 0
        %1813 = vmatprep.subr.bf16.mxu0 0
        %1814 = vmatpush1.bf16.msra.mxu0 0
        %1815 = vmatprep.mubr.bf16.mxu0 0
        %1816 = vmatmul.mubr.bf16.gmra.mrb[0].mxu0 %v1781
        %v1817 = vpop.f32.mrb[0].mxu0
        %v1818 = vadd.f32 0.0, %v1817
        %v1819 = vpop.f32.mrb[0].mxu0
        %v1820 = vpop.f32.mrb[0].mxu0
        %v1821 = vadd.f32 0.0, %v1820
        %v1822 = vpop.f32.mrb[0].mxu0
        %1823 = vdwg.mxu0
        %1824 = vrot.lane.b32.xlu0 %v878, 32
        %v1825 = vpop.permute.xlu0 %1824
        %v1828 = vsel %vm974, %v1776, 0
        %1830 = vmatprep.subr.bf16.mxu0 0
        %1831 = vmatpush1.bf16.msra.mxu0 %v1825
        %1832 = vmatprep.subr.bf16.mxu0 0
        %1833 = vmatpush1.bf16.msra.mxu0 0
        %1834 = vmatprep.subr.bf16.mxu0 0
        %1835 = vmatpush1.bf16.msra.mxu0 0
        %1836 = vmatprep.subr.bf16.mxu0 0
        %1837 = vmatpush1.bf16.msra.mxu0 0
        %1838 = vmatprep.subr.bf16.mxu0 0
        %1839 = vmatpush1.bf16.msra.mxu0 0
        %1840 = vmatprep.subr.bf16.mxu0 0
        %1841 = vmatpush1.bf16.msra.mxu0 0
        %1842 = vmatprep.subr.bf16.mxu0 0
        %1843 = vmatpush1.bf16.msra.mxu0 0
        %1844 = vmatprep.subr.bf16.mxu0 0
        %1845 = vmatpush1.bf16.msra.mxu0 0
        %1846 = vmatprep.subr.bf16.mxu0 0
        %1847 = vmatpush1.bf16.msra.mxu0 0
        %1848 = vmatprep.subr.bf16.mxu0 0
        %1849 = vmatpush1.bf16.msra.mxu0 0
        %1850 = vmatprep.subr.bf16.mxu0 0
        %1851 = vmatpush1.bf16.msra.mxu0 0
        %1852 = vmatprep.subr.bf16.mxu0 0
        %1853 = vmatpush1.bf16.msra.mxu0 0
        %1854 = vmatprep.subr.bf16.mxu0 0
        %1855 = vmatpush1.bf16.msra.mxu0 0
        %1856 = vmatprep.subr.bf16.mxu0 0
        %1857 = vmatpush1.bf16.msra.mxu0 0
        %1858 = vmatprep.subr.bf16.mxu0 0
        %1859 = vmatpush1.bf16.msra.mxu0 0
        %1860 = vmatprep.subr.bf16.mxu0 0
        %1861 = vmatpush1.bf16.msra.mxu0 0
        %1862 = vmatprep.mubr.bf16.mxu0 0
        %1863 = vmatmul.mubr.bf16.gmra.mrb[0].mxu0 %v1828
        %v1864 = vpop.f32.mrb[0].mxu0
        %v1865 = vadd.f32 0.0, %v1864
        %v1866 = vpop.f32.mrb[0].mxu0
        %v1867 = vpop.f32.mrb[0].mxu0
        %v1868 = vadd.f32 0.0, %v1867
        %v1869 = vpop.f32.mrb[0].mxu0
        %1870 = vdwg.mxu0
        %v1871 = vpack.c.bf16 %v1821, %v1818
        %v1872 = vpack.c.bf16 %v1868, %v1865
        %1875 = vrot.lane.b32.xlu0 %v1871, 96
        %v1876 = vpop.permute.xlu0 %1875
        %1877 = vrot.lane.b32.xlu0 %v1872, 96
        %v1878 = vpop.permute.xlu0 %1877
        %vm1881 = vcmask 1048320
        %1882 = vst.msk [vmem:[#allocation2] sm:$0xff] %vm1881, %v1876
        %1883 = vst.msk [vmem:[#allocation2 + $0x8] sm:$0xff] %vm1881, %v1878
        %v1884 = vld [vmem:[#allocation2] sm:$0xff]
        %v1885 = vld [vmem:[#allocation2 + $0x8] sm:$0xff]
        %v1886 = vld [vmem:[#allocation8] sm:$0xf]
        %v1887 = vld [vmem:[#allocation8 + $0x4] sm:$0xf]
        %v1888 = vld [vmem:[#allocation8 + $0x8] sm:$0xf]
        %v1889 = vld [vmem:[#allocation8 + $0xc] sm:$0xf]
        %v1890 = vld [vmem:[#allocation8 + $0x10] sm:$0xf]
        %v1891 = vld [vmem:[#allocation8 + $0x14] sm:$0xf]
        %v1892 = vld [vmem:[#allocation8 + $0x18] sm:$0xf]
        %v1893 = vld [vmem:[#allocation8 + $0x1c] sm:$0xf]
        %v1894 = vld [vmem:[#allocation8 + $0x20] sm:$0xf]
        %v1895 = vld [vmem:[#allocation8 + $0x24] sm:$0xf]
        %v1896 = vld [vmem:[#allocation8 + $0x28] sm:$0xf]
        %v1897 = vld [vmem:[#allocation8 + $0x2c] sm:$0xf]
        %v1898 = vld [vmem:[#allocation8 + $0x30] sm:$0xf]
        %v1899 = vld [vmem:[#allocation8 + $0x34] sm:$0xf]
        %v1900 = vld [vmem:[#allocation8 + $0x38] sm:$0xf]
        %v1901 = vld [vmem:[#allocation8 + $0x3c] sm:$0xf]
        %v1918 = vunpack.c.l.b16 %v1886
        %v1919 = vunpack.c.l.b16 %v1887
        %v1920 = vunpack.c.l.b16 %v1888
        %v1921 = vunpack.c.l.b16 %v1889
        %v1922 = vunpack.c.l.b16 %v1890
        %v1923 = vunpack.c.l.b16 %v1891
        %v1924 = vunpack.c.l.b16 %v1892
        %v1925 = vunpack.c.l.b16 %v1893
        %v1926 = vunpack.c.l.b16 %v1894
        %v1927 = vunpack.c.l.b16 %v1895
        %v1928 = vunpack.c.l.b16 %v1896
        %v1929 = vunpack.c.l.b16 %v1897
        %v1930 = vunpack.c.l.b16 %v1898
        %v1931 = vunpack.c.l.b16 %v1899
        %v1932 = vunpack.c.l.b16 %v1900
        %v1933 = vunpack.c.l.b16 %v1901
        %v1934 = vpack.c.b16 %v1919, %v1918
        %v1935 = vpack.c.b16 %v1921, %v1920
        %v1936 = vpack.c.b16 %v1923, %v1922
        %v1937 = vpack.c.b16 %v1925, %v1924
        %v1938 = vpack.c.b16 %v1927, %v1926
        %v1939 = vpack.c.b16 %v1929, %v1928
        %v1940 = vpack.c.b16 %v1931, %v1930
        %v1941 = vpack.c.b16 %v1933, %v1932
        %1950 = vmatprep.subr.bf16.mxu0 0
        %1951 = vmatpush1.bf16.msra.mxu0 %v1934
        %1952 = vmatprep.subr.bf16.mxu0 0
        %1953 = vmatpush1.bf16.msra.mxu0 %v1935
        %1954 = vmatprep.subr.bf16.mxu0 0
        %1955 = vmatpush1.bf16.msra.mxu0 %v1936
        %1956 = vmatprep.subr.bf16.mxu0 0
        %1957 = vmatpush1.bf16.msra.mxu0 %v1937
        %1958 = vmatprep.subr.bf16.mxu0 0
        %1959 = vmatpush1.bf16.msra.mxu0 %v1938
        %1960 = vmatprep.subr.bf16.mxu0 0
        %1961 = vmatpush1.bf16.msra.mxu0 %v1939
        %1962 = vmatprep.subr.bf16.mxu0 0
        %1963 = vmatpush1.bf16.msra.mxu0 %v1940
        %1964 = vmatprep.subr.bf16.mxu0 0
        %1965 = vmatpush1.bf16.msra.mxu0 %v1941
        %1966 = vmatprep.subr.bf16.mxu0 0
        %1967 = vmatpush1.bf16.msra.mxu0 0
        %1968 = vmatprep.subr.bf16.mxu0 0
        %1969 = vmatpush1.bf16.msra.mxu0 0
        %1970 = vmatprep.subr.bf16.mxu0 0
        %1971 = vmatpush1.bf16.msra.mxu0 0
        %1972 = vmatprep.subr.bf16.mxu0 0
        %1973 = vmatpush1.bf16.msra.mxu0 0
        %1974 = vmatprep.subr.bf16.mxu0 0
        %1975 = vmatpush1.bf16.msra.mxu0 0
        %1976 = vmatprep.subr.bf16.mxu0 0
        %1977 = vmatpush1.bf16.msra.mxu0 0
        %1978 = vmatprep.subr.bf16.mxu0 0
        %1979 = vmatpush1.bf16.msra.mxu0 0
        %1980 = vmatprep.subr.bf16.mxu0 0
        %1981 = vmatpush1.bf16.msra.mxu0 0
        %1982 = vmatprep.mubr.bf16.mxu0 0
        %1983 = vmatmul.mubr.bf16.gmra.mrb[0].mxu0 %v1884
        %v1984 = vpop.f32.mrb[0].mxu0
        %v1985 = vadd.f32 0.0, %v1984
        %v1986 = vpop.f32.mrb[0].mxu0
        %v1987 = vpop.f32.mrb[0].mxu0
        %v1988 = vadd.f32 0.0, %v1987
        %v1989 = vpop.f32.mrb[0].mxu0
        %1990 = vmatprep.mubr.bf16.mxu0 0
        %1991 = vmatmul.mubr.bf16.gmra.mrb[0].mxu0 %v1885
        %v1992 = vpop.f32.mrb[0].mxu0
        %v1993 = vadd.f32 0.0, %v1992
        %v1994 = vpop.f32.mrb[0].mxu0
        %v1995 = vpop.f32.mrb[0].mxu0
        %v1996 = vadd.f32 0.0, %v1995
        %v1997 = vpop.f32.mrb[0].mxu0
        %1998 = vdwg.mxu0
        %v1999 = vadd.f32 %v521, %v1985
        %v2000 = vadd.f32 %v522, %v1988
        %v2001 = vadd.f32 %v523, %v1993
        %v2002 = vadd.f32 %v524, %v1996
        %v2003 = vld [vmem:[%s6] sm:$0x1]
        %v2005 = vlaneseq
        %v2006 = vshrl.u32 %v2005, 7
        %v2007 = vsub.s32 0, %v2006
        %v2008 = vrot.slane %v2003, %v2007
        %v2010 = vadd.f32 %v1999, %v2008
        %v2011 = vadd.f32 %v2000, %v2008
        %v2012 = vadd.f32 %v2001, %v2008
        %v2013 = vadd.f32 %v2002, %v2008
        %v2014 = vld [vmem:[%s7] sm:$0x1]
        %v2015 = vld [vmem:[%s8] sm:$0x1]
        %2016 = vadd.xlane.f32.xlu0 %v2010
        %v2017 = vpop.xlane.xlu0 %2016
        %2018 = vadd.xlane.f32.xlu0 %v2011
        %v2019 = vpop.xlane.xlu0 %2018
        %2020 = vadd.xlane.f32.xlu0 %v2012
        %v2021 = vpop.xlane.xlu0 %2020
        %2022 = vadd.xlane.f32.xlu0 %v2013
        %v2023 = vpop.xlane.xlu0 %2022
        %v2024 = vmul.f32 %v2017, %v535
        %v2025 = vmul.f32 %v2019, %v535
        %v2026 = vmul.f32 %v2021, %v535
        %v2027 = vmul.f32 %v2023, %v535
        %v2028 = vsub.f32 %v2010, %v2024
        %v2029 = vsub.f32 %v2011, %v2025
        %v2030 = vsub.f32 %v2012, %v2026
        %v2031 = vsub.f32 %v2013, %v2027
        %v2032 = vmul.f32 %v2028, %v2028
        %v2033 = vmul.f32 %v2029, %v2029
        %v2034 = vmul.f32 %v2030, %v2030
        %v2035 = vmul.f32 %v2031, %v2031
        %2036 = vadd.xlane.f32.xlu0 %v2032
        %v2037 = vpop.xlane.xlu0 %2036
        %2038 = vadd.xlane.f32.xlu0 %v2033
        %v2039 = vpop.xlane.xlu0 %2038
        %2040 = vadd.xlane.f32.xlu0 %v2034
        %v2041 = vpop.xlane.xlu0 %2040
        %2042 = vadd.xlane.f32.xlu0 %v2035
        %v2043 = vpop.xlane.xlu0 %2042
        %v2044 = vmul.f32 %v2037, %v535
        %v2045 = vmul.f32 %v2039, %v535
        %v2046 = vmul.f32 %v2041, %v535
        %v2047 = vmul.f32 %v2043, %v535
        %v2048 = vadd.f32 %v2044, 1e-05
        %v2049 = vadd.f32 %v2045, 1e-05
        %v2050 = vadd.f32 %v2046, 1e-05
        %v2051 = vadd.f32 %v2047, 1e-05
        %v2052 = vrsqrt.pop %v2048
        %v2053 = vrsqrt.pop %v2049
        %v2054 = vrsqrt.pop %v2050
        %v2055 = vrsqrt.pop %v2051
        %v2056 = vmul.f32 %v2028, %v2052
        %v2057 = vmul.f32 %v2029, %v2053
        %v2058 = vmul.f32 %v2030, %v2054
        %v2059 = vmul.f32 %v2031, %v2055
        %v2061 = vlaneseq
        %v2062 = vshrl.u32 %v2061, 7
        %v2063 = vsub.s32 0, %v2062
        %v2064 = vrot.slane %v2014, %v2063
        %v2066 = vmul.f32 %v2056, %v2064
        %v2067 = vmul.f32 %v2057, %v2064
        %v2068 = vmul.f32 %v2058, %v2064
        %v2069 = vmul.f32 %v2059, %v2064
        %v2071 = vlaneseq
        %v2072 = vshrl.u32 %v2071, 7
        %v2073 = vsub.s32 0, %v2072
        %v2074 = vrot.slane %v2015, %v2073
        %v2076 = vadd.f32 %v2066, %v2074
        %v2077 = vadd.f32 %v2067, %v2074
        %v2078 = vadd.f32 %v2068, %v2074
        %v2079 = vadd.f32 %v2069, %v2074
        %v2080 = vpack.c.bf16 %v2077, %v2076
        %v2081 = vpack.c.bf16 %v2079, %v2078
        %v2082 = vld [vmem:[#allocation9] sm:$0xff]
        %v2083 = vld [vmem:[#allocation9 + $0x8] sm:$0xff]
        %v2084 = vld [vmem:[#allocation9 + $0x10] sm:$0xff]
        %v2085 = vld [vmem:[#allocation9 + $0x18] sm:$0xff]
        %v2086 = vld [vmem:[#allocation9 + $0x20] sm:$0xff]
        %v2087 = vld [vmem:[#allocation9 + $0x28] sm:$0xff]
        %v2088 = vld [vmem:[#allocation9 + $0x30] sm:$0xff]
        %v2089 = vld [vmem:[#allocation9 + $0x38] sm:$0xff]
        %v2090 = vld [vmem:[#allocation9 + $0x40] sm:$0xff]
        %v2091 = vld [vmem:[#allocation9 + $0x48] sm:$0xff]
        %v2092 = vld [vmem:[#allocation9 + $0x50] sm:$0xff]
        %v2093 = vld [vmem:[#allocation9 + $0x58] sm:$0xff]
        %v2094 = vld [vmem:[#allocation9 + $0x60] sm:$0xff]
        %v2095 = vld [vmem:[#allocation9 + $0x68] sm:$0xff]
        %v2096 = vld [vmem:[#allocation9 + $0x70] sm:$0xff]
        %v2097 = vld [vmem:[#allocation9 + $0x78] sm:$0xff]
        %v2098 = vld [vmem:[%s10] sm:$0x3]
        %v2100 = vlaneseq
        %v2101 = vshrl.u32 %v2100, 7
        %v2102 = vsub.s32 0, %v2101
        %v2103 = vrot.slane %v2098, %v2102
        %v2104 = vlaneseq
        %v2105 = vshrl.u32 %v2104, 7
        %v2106 = vsub.s32 1, %v2105
        %v2107 = vrot.slane %v2098, %v2106
        %v2126 = vunpack.c.l.b16 %v2082
        %v2127 = vunpack.c.h.b16 %v2082
        %v2128 = vunpack.c.l.b16 %v2083
        %v2129 = vunpack.c.h.b16 %v2083
        %v2130 = vunpack.c.l.b16 %v2084
        %v2131 = vunpack.c.h.b16 %v2084
        %v2132 = vunpack.c.l.b16 %v2085
        %v2133 = vunpack.c.h.b16 %v2085
        %v2134 = vunpack.c.l.b16 %v2086
        %v2135 = vunpack.c.h.b16 %v2086
        %v2136 = vunpack.c.l.b16 %v2087
        %v2137 = vunpack.c.h.b16 %v2087
        %v2138 = vunpack.c.l.b16 %v2088
        %v2139 = vunpack.c.h.b16 %v2088
        %v2140 = vunpack.c.l.b16 %v2089
        %v2141 = vunpack.c.h.b16 %v2089
        %v2142 = vunpack.c.l.b16 %v2090
        %v2143 = vunpack.c.h.b16 %v2090
        %v2144 = vunpack.c.l.b16 %v2091
        %v2145 = vunpack.c.h.b16 %v2091
        %v2146 = vunpack.c.l.b16 %v2092
        %v2147 = vunpack.c.h.b16 %v2092
        %v2148 = vunpack.c.l.b16 %v2093
        %v2149 = vunpack.c.h.b16 %v2093
        %v2150 = vunpack.c.l.b16 %v2094
        %v2151 = vunpack.c.h.b16 %v2094
        %v2152 = vunpack.c.l.b16 %v2095
        %v2153 = vunpack.c.h.b16 %v2095
        %v2154 = vunpack.c.l.b16 %v2096
        %v2155 = vunpack.c.h.b16 %v2096
        %v2156 = vunpack.c.l.b16 %v2097
        %v2157 = vunpack.c.h.b16 %v2097
        %v2158 = vpack.c.b16 %v2128, %v2126
        %v2159 = vpack.c.b16 %v2129, %v2127
        %v2160 = vpack.c.b16 %v2132, %v2130
        %v2161 = vpack.c.b16 %v2133, %v2131
        %v2162 = vpack.c.b16 %v2136, %v2134
        %v2163 = vpack.c.b16 %v2137, %v2135
        %v2164 = vpack.c.b16 %v2140, %v2138
        %v2165 = vpack.c.b16 %v2141, %v2139
        %v2166 = vpack.c.b16 %v2144, %v2142
        %v2167 = vpack.c.b16 %v2145, %v2143
        %v2168 = vpack.c.b16 %v2148, %v2146
        %v2169 = vpack.c.b16 %v2149, %v2147
        %v2170 = vpack.c.b16 %v2152, %v2150
        %v2171 = vpack.c.b16 %v2153, %v2151
        %v2172 = vpack.c.b16 %v2156, %v2154
        %v2173 = vpack.c.b16 %v2157, %v2155
        %2190 = vmatprep.subr.bf16.mxu0 %v2159
        %2191 = vmatpush1.bf16.msra.mxu0 %v2158
        %2192 = vmatprep.subr.bf16.mxu0 %v2161
        %2193 = vmatpush1.bf16.msra.mxu0 %v2160
        %2194 = vmatprep.subr.bf16.mxu0 %v2163
        %2195 = vmatpush1.bf16.msra.mxu0 %v2162
        %2196 = vmatprep.subr.bf16.mxu0 %v2165
        %2197 = vmatpush1.bf16.msra.mxu0 %v2164
        %2198 = vmatprep.subr.bf16.mxu0 %v2167
        %2199 = vmatpush1.bf16.msra.mxu0 %v2166
        %2200 = vmatprep.subr.bf16.mxu0 %v2169
        %2201 = vmatpush1.bf16.msra.mxu0 %v2168
        %2202 = vmatprep.subr.bf16.mxu0 %v2171
        %2203 = vmatpush1.bf16.msra.mxu0 %v2170
        %2204 = vmatprep.subr.bf16.mxu0 %v2173
        %2205 = vmatpush1.bf16.msra.mxu0 %v2172
        %2206 = vmatprep.subr.bf16.mxu0 0
        %2207 = vmatpush1.bf16.msra.mxu0 0
        %2208 = vmatprep.subr.bf16.mxu0 0
        %2209 = vmatpush1.bf16.msra.mxu0 0
        %2210 = vmatprep.subr.bf16.mxu0 0
        %2211 = vmatpush1.bf16.msra.mxu0 0
        %2212 = vmatprep.subr.bf16.mxu0 0
        %2213 = vmatpush1.bf16.msra.mxu0 0
        %2214 = vmatprep.subr.bf16.mxu0 0
        %2215 = vmatpush1.bf16.msra.mxu0 0
        %2216 = vmatprep.subr.bf16.mxu0 0
        %2217 = vmatpush1.bf16.msra.mxu0 0
        %2218 = vmatprep.subr.bf16.mxu0 0
        %2219 = vmatpush1.bf16.msra.mxu0 0
        %2220 = vmatprep.subr.bf16.mxu0 0
        %2221 = vmatpush1.bf16.msra.mxu0 0
        %2222 = vmatprep.mubr.bf16.mxu0 0
        %2223 = vmatmul.mubr.bf16.gmra.mrb[0].mxu0 %v2080
        %v2224 = vpop.f32.mrb[0].mxu0
        %v2225 = vadd.f32 %v2103, %v2224
        %v2226 = vpop.f32.mrb[0].mxu0
        %v2227 = vadd.f32 %v2107, %v2226
        %v2228 = vpop.f32.mrb[0].mxu0
        %v2229 = vadd.f32 %v2103, %v2228
        %v2230 = vpop.f32.mrb[0].mxu0
        %v2231 = vadd.f32 %v2107, %v2230
        %2232 = vmatprep.mubr.bf16.mxu0 0
        %2233 = vmatmul.mubr.bf16.gmra.mrb[0].mxu0 %v2081
        %v2234 = vpop.f32.mrb[0].mxu0
        %v2235 = vadd.f32 %v2103, %v2234
        %v2236 = vpop.f32.mrb[0].mxu0
        %v2237 = vadd.f32 %v2107, %v2236
        %v2238 = vpop.f32.mrb[0].mxu0
        %v2239 = vadd.f32 %v2103, %v2238
        %v2240 = vpop.f32.mrb[0].mxu0
        %v2241 = vadd.f32 %v2107, %v2240
        %2242 = vdwg.mxu0
        %v2243 = vmul.f32 %v2225, %v2225
        %v2244 = vmul.f32 %v2227, %v2227
        %v2245 = vmul.f32 %v2229, %v2229
        %v2246 = vmul.f32 %v2231, %v2231
        %v2247 = vmul.f32 %v2235, %v2235
        %v2248 = vmul.f32 %v2237, %v2237
        %v2249 = vmul.f32 %v2239, %v2239
        %v2250 = vmul.f32 %v2241, %v2241
        %v2251 = vmul.f32 %v2225, %v2243
        %v2252 = vmul.f32 %v2227, %v2244
        %v2253 = vmul.f32 %v2229, %v2245
        %v2254 = vmul.f32 %v2231, %v2246
        %v2255 = vmul.f32 %v2235, %v2247
        %v2256 = vmul.f32 %v2237, %v2248
        %v2257 = vmul.f32 %v2239, %v2249
        %v2258 = vmul.f32 %v2241, %v2250
        %v2259 = vmul.f32 %v2251, 0.044715
        %v2260 = vmul.f32 %v2252, 0.044715
        %v2261 = vmul.f32 %v2253, 0.044715
        %v2262 = vmul.f32 %v2254, 0.044715
        %v2263 = vmul.f32 %v2255, 0.044715
        %v2264 = vmul.f32 %v2256, 0.044715
        %v2265 = vmul.f32 %v2257, 0.044715
        %v2266 = vmul.f32 %v2258, 0.044715
        %v2267 = vadd.f32 %v2225, %v2259
        %v2268 = vadd.f32 %v2227, %v2260
        %v2269 = vadd.f32 %v2229, %v2261
        %v2270 = vadd.f32 %v2231, %v2262
        %v2271 = vadd.f32 %v2235, %v2263
        %v2272 = vadd.f32 %v2237, %v2264
        %v2273 = vadd.f32 %v2239, %v2265
        %v2274 = vadd.f32 %v2241, %v2266
        %v2275 = vmul.f32 %v2267, 0.7978846
        %v2276 = vmul.f32 %v2268, 0.7978846
        %v2277 = vmul.f32 %v2269, 0.7978846
        %v2278 = vmul.f32 %v2270, 0.7978846
        %v2279 = vmul.f32 %v2271, 0.7978846
        %v2280 = vmul.f32 %v2272, 0.7978846
        %v2281 = vmul.f32 %v2273, 0.7978846
        %v2282 = vmul.f32 %v2274, 0.7978846
        %v2283 = vtanh.pop %v2275
        %v2284 = vtanh.pop %v2276
        %v2285 = vtanh.pop %v2277
        %v2286 = vtanh.pop %v2278
        %v2287 = vtanh.pop %v2279
        %v2288 = vtanh.pop %v2280
        %v2289 = vtanh.pop %v2281
        %v2290 = vtanh.pop %v2282
        %v2291 = vadd.f32 %v2283, 1.0
        %v2292 = vadd.f32 %v2284, 1.0
        %v2293 = vadd.f32 %v2285, 1.0
        %v2294 = vadd.f32 %v2286, 1.0
        %v2295 = vadd.f32 %v2287, 1.0
        %v2296 = vadd.f32 %v2288, 1.0
        %v2297 = vadd.f32 %v2289, 1.0
        %v2298 = vadd.f32 %v2290, 1.0
        %v2299 = vmul.f32 %v2291, 0.5
        %v2300 = vmul.f32 %v2292, 0.5
        %v2301 = vmul.f32 %v2293, 0.5
        %v2302 = vmul.f32 %v2294, 0.5
        %v2303 = vmul.f32 %v2295, 0.5
        %v2304 = vmul.f32 %v2296, 0.5
        %v2305 = vmul.f32 %v2297, 0.5
        %v2306 = vmul.f32 %v2298, 0.5
        %v2307 = vmul.f32 %v2225, %v2299
        %v2308 = vmul.f32 %v2227, %v2300
        %v2309 = vmul.f32 %v2229, %v2301
        %v2310 = vmul.f32 %v2231, %v2302
        %v2311 = vmul.f32 %v2235, %v2303
        %v2312 = vmul.f32 %v2237, %v2304
        %v2313 = vmul.f32 %v2239, %v2305
        %v2314 = vmul.f32 %v2241, %v2306
        %v2315 = vpack.c.bf16 %v2309, %v2307
        %v2316 = vpack.c.bf16 %v2310, %v2308
        %v2317 = vpack.c.bf16 %v2313, %v2311
        %v2318 = vpack.c.bf16 %v2314, %v2312
        %v2319 = vld [vmem:[#allocation11] sm:$0xf]
        %v2320 = vld [vmem:[#allocation11 + $0x4] sm:$0xf]
        %v2321 = vld [vmem:[#allocation11 + $0x8] sm:$0xf]
        %v2322 = vld [vmem:[#allocation11 + $0xc] sm:$0xf]
        %v2323 = vld [vmem:[#allocation11 + $0x10] sm:$0xf]
        %v2324 = vld [vmem:[#allocation11 + $0x14] sm:$0xf]
        %v2325 = vld [vmem:[#allocation11 + $0x18] sm:$0xf]
        %v2326 = vld [vmem:[#allocation11 + $0x1c] sm:$0xf]
        %v2327 = vld [vmem:[#allocation11 + $0x20] sm:$0xf]
        %v2328 = vld [vmem:[#allocation11 + $0x24] sm:$0xf]
        %v2329 = vld [vmem:[#allocation11 + $0x28] sm:$0xf]
        %v2330 = vld [vmem:[#allocation11 + $0x2c] sm:$0xf]
        %v2331 = vld [vmem:[#allocation11 + $0x30] sm:$0xf]
        %v2332 = vld [vmem:[#allocation11 + $0x34] sm:$0xf]
        %v2333 = vld [vmem:[#allocation11 + $0x38] sm:$0xf]
        %v2334 = vld [vmem:[#allocation11 + $0x3c] sm:$0xf]
        %v2335 = vld [vmem:[#allocation11 + $0x40] sm:$0xf]
        %v2336 = vld [vmem:[#allocation11 + $0x44] sm:$0xf]
        %v2337 = vld [vmem:[#allocation11 + $0x48] sm:$0xf]
        %v2338 = vld [vmem:[#allocation11 + $0x4c] sm:$0xf]
        %v2339 = vld [vmem:[#allocation11 + $0x50] sm:$0xf]
        %v2340 = vld [vmem:[#allocation11 + $0x54] sm:$0xf]
        %v2341 = vld [vmem:[#allocation11 + $0x58] sm:$0xf]
        %v2342 = vld [vmem:[#allocation11 + $0x5c] sm:$0xf]
        %v2343 = vld [vmem:[#allocation11 + $0x60] sm:$0xf]
        %v2344 = vld [vmem:[#allocation11 + $0x64] sm:$0xf]
        %v2345 = vld [vmem:[#allocation11 + $0x68] sm:$0xf]
        %v2346 = vld [vmem:[#allocation11 + $0x6c] sm:$0xf]
        %v2347 = vld [vmem:[#allocation11 + $0x70] sm:$0xf]
        %v2348 = vld [vmem:[#allocation11 + $0x74] sm:$0xf]
        %v2349 = vld [vmem:[#allocation11 + $0x78] sm:$0xf]
        %v2350 = vld [vmem:[#allocation11 + $0x7c] sm:$0xf]
        %v2383 = vunpack.c.l.b16 %v2319
        %v2384 = vunpack.c.l.b16 %v2320
        %v2385 = vunpack.c.l.b16 %v2321
        %v2386 = vunpack.c.l.b16 %v2322
        %v2387 = vunpack.c.l.b16 %v2323
        %v2388 = vunpack.c.l.b16 %v2324
        %v2389 = vunpack.c.l.b16 %v2325
        %v2390 = vunpack.c.l.b16 %v2326
        %v2391 = vunpack.c.l.b16 %v2327
        %v2392 = vunpack.c.l.b16 %v2328
        %v2393 = vunpack.c.l.b16 %v2329
        %v2394 = vunpack.c.l.b16 %v2330
        %v2395 = vunpack.c.l.b16 %v2331
        %v2396 = vunpack.c.l.b16 %v2332
        %v2397 = vunpack.c.l.b16 %v2333
        %v2398 = vunpack.c.l.b16 %v2334
        %v2399 = vunpack.c.l.b16 %v2335
        %v2400 = vunpack.c.l.b16 %v2336
        %v2401 = vunpack.c.l.b16 %v2337
        %v2402 = vunpack.c.l.b16 %v2338
        %v2403 = vunpack.c.l.b16 %v2339
        %v2404 = vunpack.c.l.b16 %v2340
        %v2405 = vunpack.c.l.b16 %v2341
        %v2406 = vunpack.c.l.b16 %v2342
        %v2407 = vunpack.c.l.b16 %v2343
        %v2408 = vunpack.c.l.b16 %v2344
        %v2409 = vunpack.c.l.b16 %v2345
        %v2410 = vunpack.c.l.b16 %v2346
        %v2411 = vunpack.c.l.b16 %v2347
        %v2412 = vunpack.c.l.b16 %v2348
        %v2413 = vunpack.c.l.b16 %v2349
        %v2414 = vunpack.c.l.b16 %v2350
        %v2415 = vpack.c.b16 %v2384, %v2383
        %v2416 = vpack.c.b16 %v2386, %v2385
        %v2417 = vpack.c.b16 %v2388, %v2387
        %v2418 = vpack.c.b16 %v2390, %v2389
        %v2419 = vpack.c.b16 %v2392, %v2391
        %v2420 = vpack.c.b16 %v2394, %v2393
        %v2421 = vpack.c.b16 %v2396, %v2395
        %v2422 = vpack.c.b16 %v2398, %v2397
        %v2423 = vpack.c.b16 %v2400, %v2399
        %v2424 = vpack.c.b16 %v2402, %v2401
        %v2425 = vpack.c.b16 %v2404, %v2403
        %v2426 = vpack.c.b16 %v2406, %v2405
        %v2427 = vpack.c.b16 %v2408, %v2407
        %v2428 = vpack.c.b16 %v2410, %v2409
        %v2429 = vpack.c.b16 %v2412, %v2411
        %v2430 = vpack.c.b16 %v2414, %v2413
        %2447 = vmatprep.subr.bf16.mxu0 0
        %2448 = vmatpush1.bf16.msra.mxu0 %v2415
        %2449 = vmatprep.subr.bf16.mxu0 0
        %2450 = vmatpush1.bf16.msra.mxu0 %v2416
        %2451 = vmatprep.subr.bf16.mxu0 0
        %2452 = vmatpush1.bf16.msra.mxu0 %v2417
        %2453 = vmatprep.subr.bf16.mxu0 0
        %2454 = vmatpush1.bf16.msra.mxu0 %v2418
        %2455 = vmatprep.subr.bf16.mxu0 0
        %2456 = vmatpush1.bf16.msra.mxu0 %v2419
        %2457 = vmatprep.subr.bf16.mxu0 0
        %2458 = vmatpush1.bf16.msra.mxu0 %v2420
        %2459 = vmatprep.subr.bf16.mxu0 0
        %2460 = vmatpush1.bf16.msra.mxu0 %v2421
        %2461 = vmatprep.subr.bf16.mxu0 0
        %2462 = vmatpush1.bf16.msra.mxu0 %v2422
        %2463 = vmatprep.subr.bf16.mxu0 0
        %2464 = vmatpush1.bf16.msra.mxu0 %v2423
        %2465 = vmatprep.subr.bf16.mxu0 0
        %2466 = vmatpush1.bf16.msra.mxu0 %v2424
        %2467 = vmatprep.subr.bf16.mxu0 0
        %2468 = vmatpush1.bf16.msra.mxu0 %v2425
        %2469 = vmatprep.subr.bf16.mxu0 0
        %2470 = vmatpush1.bf16.msra.mxu0 %v2426
        %2471 = vmatprep.subr.bf16.mxu0 0
        %2472 = vmatpush1.bf16.msra.mxu0 %v2427
        %2473 = vmatprep.subr.bf16.mxu0 0
        %2474 = vmatpush1.bf16.msra.mxu0 %v2428
        %2475 = vmatprep.subr.bf16.mxu0 0
        %2476 = vmatpush1.bf16.msra.mxu0 %v2429
        %2477 = vmatprep.subr.bf16.mxu0 0
        %2478 = vmatpush1.bf16.msra.mxu0 %v2430
        %2479 = vmatprep.mubr.bf16.mxu0 %v2316
        %2480 = vmatmul.mubr.bf16.gmra.mrb[0].mxu0 %v2315
        %v2481 = vpop.f32.mrb[0].mxu0
        %v2482 = vadd.f32 0.0, %v2481
        %v2483 = vpop.f32.mrb[0].mxu0
        %v2484 = vpop.f32.mrb[0].mxu0
        %v2485 = vadd.f32 0.0, %v2484
        %v2486 = vpop.f32.mrb[0].mxu0
        %2487 = vmatprep.mubr.bf16.mxu0 %v2318
        %2488 = vmatmul.mubr.bf16.gmra.mrb[0].mxu0 %v2317
        %v2489 = vpop.f32.mrb[0].mxu0
        %v2490 = vadd.f32 0.0, %v2489
        %v2491 = vpop.f32.mrb[0].mxu0
        %v2492 = vpop.f32.mrb[0].mxu0
        %v2493 = vadd.f32 0.0, %v2492
        %v2494 = vpop.f32.mrb[0].mxu0
        %2495 = vdwg.mxu0
        %v2496 = vadd.f32 %v2010, %v2482
        %v2497 = vadd.f32 %v2011, %v2485
        %v2498 = vadd.f32 %v2012, %v2490
        %v2499 = vadd.f32 %v2013, %v2493
        %v2500 = vld [vmem:[%s12] sm:$0x1]
        %v2502 = vlaneseq
        %v2503 = vshrl.u32 %v2502, 7
        %v2504 = vsub.s32 0, %v2503
        %v2505 = vrot.slane %v2500, %v2504
        %v2507 = vadd.f32 %v2496, %v2505
        %v2508 = vadd.f32 %v2497, %v2505
        %v2509 = vadd.f32 %v2498, %v2505
        %v2510 = vadd.f32 %v2499, %v2505
        %2511 = vst [vmem:[%s517] sm:$0xff] %v2507
        %2512 = vst [vmem:[%s517 + $0x8] sm:$0xff] %v2508
        %2513 = vst [vmem:[%s517 + $0x10] sm:$0xff] %v2509
        %2514 = vst [vmem:[%s517 + $0x18] sm:$0xff] %v2510
        %s2515 = sand.u32 %s318, 1
        %s2516 = scalar_lea.sflag [#allocation5], %s2515
        %s2517 = sand.u32 %s318, 1
        %s2518 = smul.addr %s2517, 32
        %s2519 = scalar_lea.vmem [#allocation12], %s2518
        // Predicated region
        $region93: #{tpu_custom_call.1} parent=71 // pred_check
          %p2520 = pneg %p328
        $region94: #{tpu_custom_call.1} parent=71 // pred_check_branch
          %2522 = sbr.rel (%p2520) target = $region96
        $region95: #{tpu_custom_call.1} parent=71 // pred_region
          %s2523 = smul.u32 2, %s32
          %s2525 = ssub.s32 512, 512
          %2526 = vsyncadd %s2516, %s2525
          %s2527 = smul.addr %s2523, 2
          %s2528 = smul.addr %s2527, 128
          %s2529 = scalar_lea.hbm %s13, %s2528
          %s2530 = sshll.u32 %s2519, 4
          %s2531 = int_to_ptr.vmem [resolvable:$true] %s2530
          %2536 = dma.vmem_to_hbm [thread:$0]  %s2531, 512, %s2529, %s2516, 128, 128, 8
        $region96: #{tpu_custom_call.1} parent=71 // pred_fallthru
          _
      $region72: #{tpu_custom_call.1} parent=5 // pred_fallthru
        _
      %p2537 = scmp.le.s32.totalorder 2, %s27
      // Predicated region
      $region97: #{tpu_custom_call.1} parent=5 // pred_check
        %p2538 = pneg %p2537
      $region98: #{tpu_custom_call.1} parent=5 // pred_check_branch
        %2540 = sbr.rel (%p2538) target = $region100
      $region99: #{tpu_custom_call.1} parent=5 // pred_region
        %s2541 = ssub.s32 %s27, 2
        // Predicated region
        $region101: #{tpu_custom_call.1} parent=99 // pred_check
          %p2542 = pneg %p334
        $region102: #{tpu_custom_call.1} parent=99 // pred_check_branch
          %2544 = sbr.rel (%p2542) target = $region104
        $region103: #{tpu_custom_call.1} parent=99 // pred_region
          %s2545 = sand.u32 %s319, 1
          %s2546 = scalar_lea.sflag [#allocation5], %s2545
          %s2547 = sand.u32 %s319, 1
          %s2548 = smul.addr %s2547, 32
          %s2549 = scalar_lea.vmem [#allocation12], %s2548
          %2550 = dma.done %s2546, 512
        $region104: #{tpu_custom_call.1} parent=99 // pred_fallthru
          _
      $region100: #{tpu_custom_call.1} parent=5 // pred_fallthru
        _
    $region6: #{tpu_custom_call.1} parent=1 // loop_footer
      %s31 = sadd.s32 1, %s27
    $region7: #{tpu_custom_call.1} parent=1 // loop_footer_branch
      %26 = sbr.rel target = $region3
    $region8: #{tpu_custom_call.1} parent=1 // loop_exit
      _
    %2551 = vsyncpa [#allocation4], 1
    %s2552 = scalar_lea.sflag [#allocation4], 1
    %2553 = vsyncpa %s2552, 1
    %2554 = vsyncpa [#allocation7], 1
    %2555 = vsyncpa [#allocation10], 1
    %2556 = vsyncpa [#allocation5], 1
    %s2557 = scalar_lea.sflag [#allocation5], 1
    %2558 = vsyncpa %s2557, 1

</llo_original>
